<compile_context>
chip_gen: v7x
topology: tpu7x:2x2x1
jax: 0.10.0
libtpu: 0.0.40
codegen_flags: <defaults>
</compile_context>

<pallas_src>
import functools
import math

import jax
import jax.numpy as jnp
from jax.experimental import pallas as pl
from jax.experimental.pallas import tpu as pltpu


# ----------------------------- tiling helpers -----------------------------

def _fit_tile(dim, target, align):
    """Largest multiple of `align` that divides `dim` and is <= `target`.
    Falls back to the full dim (a full-extent block is always legal)."""
    if dim <= target:
        return dim
    t = (target // align) * align
    while t >= align:
        if dim % t == 0:
            return t
        t -= align
    # NOTE: fallback keeps the full extent; for BERT-family dims (multiples of
    # 128) this never triggers, so it cannot silently blow the VMEM budget.
    return dim


@functools.lru_cache(maxsize=1)
def _tpu_config():
    kind = jax.devices()[0].device_kind.lower()
    if "v5" in kind:
        # v5e: smaller row tile for whole-N (fused-LN) kernels, explicit VMEM limit.
        return dict(tm=512, tn=1024, tk=512, tm_wide=256, ti=512,
                    vmem=96 * 1024 * 1024)
    if "v6" in kind:
        return dict(tm=512, tn=1024, tk=512, tm_wide=512, ti=512,
                    vmem=96 * 1024 * 1024)
    # v7x (64 MiB / TC) or unknown: footprints here are ~10 MiB, 48 MiB is safe.
    return dict(tm=512, tn=1024, tk=512, tm_wide=512, ti=512,
                vmem=48 * 1024 * 1024)


def _compiler_params(dims):
    return pltpu.CompilerParams(dimension_semantics=dims,
                                vmem_limit_bytes=_tpu_config()["vmem"])


def _gelu(y):
    # TODO(synk): mptb BERT may use the exact erf-GELU; tanh approximation used here.
    c = math.sqrt(2.0 / math.pi)
    return 0.5 * y * (1.0 + jnp.tanh(c * (y + 0.044715 * y * y * y)))


# ----------------------------- Pallas kernels -----------------------------

def _linear_kernel(x_ref, w_ref, b_ref, o_ref, acc_ref):
    k = pl.program_id(2)

    @pl.when(k == 0)
    def _():
        acc_ref[...] = jnp.zeros_like(acc_ref)

    acc_ref[...] += jnp.dot(x_ref[...], w_ref[...],
                            preferred_element_type=jnp.float32)

    @pl.when(k == pl.num_programs(2) - 1)
    def _():
        o_ref[...] = (acc_ref[...] + b_ref[...]).astype(o_ref.dtype)


def pallas_linear(x, wt, b):
    """y = x @ wt + b (bf16 in, bf16 out, f32 accumulate); wt is (K, N) bf16."""
    M, K = x.shape
    N = wt.shape[1]
    tc = _tpu_config()
    tm = _fit_tile(M, tc["tm"], 8)
    tn = _fit_tile(N, tc["tn"], 128)
    tk = _fit_tile(K, tc["tk"], 128)
    return pl.pallas_call(
        _linear_kernel,
        out_shape=jax.ShapeDtypeStruct((M, N), jnp.bfloat16),
        grid=(M // tm, N // tn, K // tk),
        in_specs=[
            pl.BlockSpec((tm, tk), lambda i, j, k: (i, k)),
            pl.BlockSpec((tk, tn), lambda i, j, k: (k, j)),
            pl.BlockSpec((1, tn), lambda i, j, k: (0, j)),
        ],
        out_specs=pl.BlockSpec((tm, tn), lambda i, j, k: (i, j)),
        scratch_shapes=[pltpu.VMEM((tm, tn), jnp.float32)],
        compiler_params=_compiler_params(("parallel", "parallel", "arbitrary")),
    )(x, wt, b.reshape(1, N))


def _linear_add_ln_kernel(x_ref, w_ref, b_ref, res_ref, g_ref, beta_ref,
                          o_ref, acc_ref, *, eps):
    k = pl.program_id(1)

    @pl.when(k == 0)
    def _():
        acc_ref[...] = jnp.zeros_like(acc_ref)

    acc_ref[...] += jnp.dot(x_ref[...], w_ref[...],
                            preferred_element_type=jnp.float32)

    @pl.when(k == pl.num_programs(1) - 1)
    def _():
        y = acc_ref[...] + b_ref[...] + res_ref[...].astype(jnp.float32)
        mean = jnp.mean(y, axis=-1, keepdims=True)
        var = jnp.mean(jnp.square(y - mean), axis=-1, keepdims=True)
        o_ref[...] = ((y - mean) * jax.lax.rsqrt(var + eps)
                      * g_ref[...] + beta_ref[...]).astype(o_ref.dtype)


def pallas_linear_add_layernorm(x, wt, b, residual, gamma, beta, eps=1e-12):
    """LayerNorm(x @ wt + b + residual); hidden (N) stays whole in each block."""
    M, K = x.shape
    N = wt.shape[1]
    tc = _tpu_config()
    tm = _fit_tile(M, tc["tm_wide"], 8)
    tk = _fit_tile(K, tc["tk"], 128)
    return pl.pallas_call(
        functools.partial(_linear_add_ln_kernel, eps=eps),
        out_shape=jax.ShapeDtypeStruct((M, N), jnp.bfloat16),
        grid=(M // tm, K // tk),
        in_specs=[
            pl.BlockSpec((tm, tk), lambda i, k: (i, k)),
            pl.BlockSpec((tk, N), lambda i, k: (k, 0)),
            pl.BlockSpec((1, N), lambda i, k: (0, 0)),
            pl.BlockSpec((tm, N), lambda i, k: (i, 0)),
            pl.BlockSpec((1, N), lambda i, k: (0, 0)),
            pl.BlockSpec((1, N), lambda i, k: (0, 0)),
        ],
        out_specs=pl.BlockSpec((tm, N), lambda i, k: (i, 0)),
        scratch_shapes=[pltpu.VMEM((tm, N), jnp.float32)],
        compiler_params=_compiler_params(("parallel", "arbitrary")),
    )(x, wt, b.reshape(1, N), residual, gamma.reshape(1, N), beta.reshape(1, N))


def _ffn_kernel(x_ref, w1_ref, b1_ref, w2_ref, b2_ref, res_ref, g_ref, beta_ref,
                o_ref, acc_ref, *, eps):
    """Fused FFN: gelu(x @ W1 + b1) @ W2, tiled over the intermediate dim, with
    bias + residual + LayerNorm epilogue.  The MxI intermediate never hits HBM."""
    l = pl.program_id(1)

    @pl.when(l == 0)
    def _():
        acc_ref[...] = jnp.zeros_like(acc_ref)

    inter = jnp.dot(x_ref[...], w1_ref[...], preferred_element_type=jnp.float32)
    inter = _gelu(inter + b1_ref[...])
    acc_ref[...] += jnp.dot(inter.astype(jnp.bfloat16), w2_ref[...],
                            preferred_element_type=jnp.float32)

    @pl.when(l == pl.num_programs(1) - 1)
    def _():
        y = acc_ref[...] + b2_ref[...] + res_ref[...].astype(jnp.float32)
        mean = jnp.mean(y, axis=-1, keepdims=True)
        var = jnp.mean(jnp.square(y - mean), axis=-1, keepdims=True)
        o_ref[...] = ((y - mean) * jax.lax.rsqrt(var + eps)
                      * g_ref[...] + beta_ref[...]).astype(o_ref.dtype)


def pallas_ffn(x, w1_t, b1, w2_t, b2, residual, gamma, beta, eps=1e-12):
    M, H = x.shape
    I = w1_t.shape[1]
    tc = _tpu_config()
    tm = _fit_tile(M, tc["tm_wide"], 8)
    ti = _fit_tile(I, tc["ti"], 128)
    return pl.pallas_call(
        functools.partial(_ffn_kernel, eps=eps),
        out_shape=jax.ShapeDtypeStruct((M, H), jnp.bfloat16),
        grid=(M // tm, I // ti),
        in_specs=[
            pl.BlockSpec((tm, H), lambda i, l: (i, 0)),   # x (fetched once per i)
            pl.BlockSpec((H, ti), lambda i, l: (0, l)),   # W1 slice
            pl.BlockSpec((1, ti), lambda i, l: (0, l)),   # b1 slice
            pl.BlockSpec((ti, H), lambda i, l: (l, 0)),   # W2 slice
            pl.BlockSpec((1, H), lambda i, l: (0, 0)),    # b2
            pl.BlockSpec((tm, H), lambda i, l: (i, 0)),   # residual
            pl.BlockSpec((1, H), lambda i, l: (0, 0)),    # LN gamma
            pl.BlockSpec((1, H), lambda i, l: (0, 0)),    # LN beta
        ],
        out_specs=pl.BlockSpec((tm, H), lambda i, l: (i, 0)),
        scratch_shapes=[pltpu.VMEM((tm, H), jnp.float32)],
        compiler_params=_compiler_params(("parallel", "arbitrary")),
    )(x, w1_t, b1.reshape(1, I), w2_t, b2.reshape(1, H),
      residual, gamma.reshape(1, H), beta.reshape(1, H))


def _embed_ln_kernel(we_ref, pe_ref, te_ref, g_ref, b_ref, o_ref, *, eps):
    x = we_ref[0] + pe_ref[0] + te_ref[0]                 # (S, H) f32
    mean = jnp.mean(x, axis=-1, keepdims=True)
    var = jnp.mean(jnp.square(x - mean), axis=-1, keepdims=True)
    o_ref[0] = ((x - mean) * jax.lax.rsqrt(var + eps)
                * g_ref[...] + b_ref[...]).astype(o_ref.dtype)


def pallas_embed_layernorm(we, pe, te, gamma, beta, eps=1e-12):
    """LayerNorm(word + pos + type embeddings), fused sum + LN, bf16 out."""
    BC, S, H = we.shape
    return pl.pallas_call(
        functools.partial(_embed_ln_kernel, eps=eps),
        out_shape=jax.ShapeDtypeStruct((BC, S, H), jnp.bfloat16),
        grid=(BC,),
        in_specs=[
            pl.BlockSpec((1, S, H), lambda b: (b, 0, 0)),
            pl.BlockSpec((1, S, H), lambda b: (0, 0, 0)),   # pos emb broadcast
            pl.BlockSpec((1, S, H), lambda b: (b, 0, 0)),
            pl.BlockSpec((1, H), lambda b: (0, 0)),
            pl.BlockSpec((1, H), lambda b: (0, 0)),
        ],
        out_specs=pl.BlockSpec((1, S, H), lambda b: (b, 0, 0)),
        compiler_params=_compiler_params(("parallel",)),
    )(we, pe, te, gamma.reshape(1, H), beta.reshape(1, H))


def _attention_kernel(q_ref, k_ref, v_ref, bias_ref, o_ref, *, nh, dh, scale):
    bias = bias_ref[0]                                     # (1, S) additive mask bias
    for h in range(nh):                                    # static unroll over heads
        lo = h * dh
        q = q_ref[0, :, lo:lo + dh]                        # (tq, dh) bf16
        k = k_ref[0, :, lo:lo + dh]                        # (S,  dh) bf16
        v = v_ref[0, :, lo:lo + dh]                        # (S,  dh) bf16
        s = jax.lax.dot_general(q, k, (((1,), (1,)), ((), ())),
                                preferred_element_type=jnp.float32) * scale
        s = s + bias
        s = s - jnp.max(s, axis=-1, keepdims=True)
        p = jnp.exp(s)
        p = p * pl.reciprocal(jnp.sum(p, axis=-1, keepdims=True), approx=True)
        ctx = jnp.dot(p.astype(jnp.bfloat16), v, preferred_element_type=jnp.float32)
        o_ref[0, :, lo:lo + dh] = ctx.astype(o_ref.dtype)  # per-head store, no concat


def pallas_attention(qkv, mask_bias, nh, dh, scale):
    """qkv: (BC, S, 3H) packed bf16 projections; mask_bias: (BC, 1, S) f32 bias.
    Q/K/V are addressed as separate H-wide lane blocks of the same array via the
    index_map (last-dim block index 0/1/2), so no (S,3H) block is materialized
    and K/V blocks are fetched once per (batch*choice)."""
    BC, S, threeH = qkv.shape
    H = threeH // 3
    tq = _fit_tile(S, 256, 8)
    return pl.pallas_call(
        functools.partial(_attention_kernel, nh=nh, dh=dh, scale=scale),
        out_shape=jax.ShapeDtypeStruct((BC, S, H), jnp.bfloat16),
        grid=(BC, S // tq),
        in_specs=[
            pl.BlockSpec((1, tq, H), lambda b, qi: (b, qi, 0)),  # Q rows (q tile)
            pl.BlockSpec((1, S, H), lambda b, qi: (b, 0, 1)),    # K (all rows)
            pl.BlockSpec((1, S, H), lambda b, qi: (b, 0, 2)),    # V (all rows)
            pl.BlockSpec((1, 1, S), lambda b, qi: (b, 0, 0)),    # mask bias
        ],
        out_specs=pl.BlockSpec((1, tq, H), lambda b, qi: (b, qi, 0)),
        compiler_params=_compiler_params(("parallel", "parallel")),
    )(qkv, qkv, qkv, mask_bias)


def _pool_cls_kernel(x_ref, wp_ref, bp_ref, wc_ref, bc_ref, o_ref):
    pooled = jnp.tanh(jnp.dot(x_ref[...], wp_ref[...],
                              preferred_element_type=jnp.float32) + bp_ref[...])
    o_ref[...] = (jnp.dot(pooled.astype(jnp.bfloat16), wc_ref[...],
                          preferred_element_type=jnp.float32) + bc_ref[...])


def pallas_pool_classify(x, wp_t, bp, wc_t, bc):
    """Fused pooler (tanh(W x + b)) + classifier (-> (BC, 1)). Small tensors."""
    BC, H = x.shape
    return pl.pallas_call(
        _pool_cls_kernel,
        out_shape=jax.ShapeDtypeStruct((BC, 1), jnp.float32),
        grid=(1,),
        in_specs=[
            pl.BlockSpec((BC, H), lambda i: (0, 0)),
            pl.BlockSpec((H, H), lambda i: (0, 0)),
            pl.BlockSpec((1, H), lambda i: (0, 0)),
            pl.BlockSpec((H, 1), lambda i: (0, 0)),
            pl.BlockSpec((1, 1), lambda i: (0, 0)),
        ],
        out_specs=pl.BlockSpec((BC, 1), lambda i: (0, 0)),
        compiler_params=_compiler_params(("arbitrary",)),
    )(x, wp_t, bp.reshape(1, H), wc_t, bc.reshape(1, 1))


# ----------------------------- params -----------------------------

def init_params(key, cfg):
    H = cfg["hidden_size"]
    I = cfg["intermediate_size"]
    keys = iter(jax.random.split(key, 64))

    def w(shape):
        return jax.random.normal(next(keys), shape, jnp.float32) * cfg["initializer_range"]

    params = {
        "word_emb": w((cfg["vocab_size"], H)),
        "pos_emb": w((cfg["max_position_embeddings"], H)),
        "type_emb": w((cfg["type_vocab_size"], H)),
        "emb_ln_g": jnp.ones((H,), jnp.float32),
        "emb_ln_b": jnp.zeros((H,), jnp.float32),
        "layers": [],
        "pool_w": w((H, H)),
        "pool_b": jnp.zeros((H,), jnp.float32),
        # classifier: torch.fmod(randn, initializer_range), bias = zeros(1)
        "cls_w": jnp.fmod(jax.random.normal(next(keys), (1, H), jnp.float32),
                          cfg["initializer_range"]),
        "cls_b": jnp.zeros((1,), jnp.float32),
    }
    for _ in range(cfg["num_hidden_layers"]):
        params["layers"].append({
            "wq": w((H, H)), "bq": jnp.zeros((H,), jnp.float32),
            "wk": w((H, H)), "bk": jnp.zeros((H,), jnp.float32),
            "wv": w((H, H)), "bv": jnp.zeros((H,), jnp.float32),
            "wo": w((H, H)), "bo": jnp.zeros((H,), jnp.float32),
            "ln1_g": jnp.ones((H,), jnp.float32), "ln1_b": jnp.zeros((H,), jnp.float32),
            "w1": w((I, H)), "b1": jnp.zeros((I,), jnp.float32),
            "w2": w((H, I)), "b2": jnp.zeros((H,), jnp.float32),
            "ln2_g": jnp.ones((H,), jnp.float32), "ln2_b": jnp.zeros((H,), jnp.float32),
        })
    return params


def prepare_params(params):
    """One-time prep: transpose torch (out,in) Linear weights to (in,out),
    cast them to bf16 for the MXU, and pack Q/K/V into a single matmul."""
    def t(w):
        return jnp.transpose(w).astype(jnp.bfloat16)

    prepped = {
        "word_emb": params["word_emb"],
        "pos_emb": params["pos_emb"],
        "type_emb": params["type_emb"],
        "emb_ln_g": params["emb_ln_g"], "emb_ln_b": params["emb_ln_b"],
        "pool_wt": t(params["pool_w"]), "pool_b": params["pool_b"],
        "cls_wt": t(params["cls_w"]), "cls_b": params["cls_b"],
        "layers": [],
    }
    for layer in params["layers"]:
        prepped["layers"].append({
            "wqkv_t": jnp.concatenate(
                [t(layer["wq"]), t(layer["wk"]), t(layer["wv"])], axis=1),
            "bqkv": jnp.concatenate([layer["bq"], layer["bk"], layer["bv"]]),
            "wo_t": t(layer["wo"]), "bo": layer["bo"],
            "ln1_g": layer["ln1_g"], "ln1_b": layer["ln1_b"],
            "w1_t": t(layer["w1"]), "b1": layer["b1"],
            "w2_t": t(layer["w2"]), "b2": layer["b2"],
            "ln2_g": layer["ln2_g"], "ln2_b": layer["ln2_b"],
        })
    return prepped


# ----------------------------- forward (glue) -----------------------------

def multiple_choice_forward(prepped, cfg, input_ids, segment_ids, input_mask):
    B, C, S = input_ids.shape
    BC = B * C
    H = cfg["hidden_size"]
    NH = cfg["num_attention_heads"]
    DH = H // NH
    eps = cfg["layer_norm_eps"]

    # flatten choices: (B, C, S) -> (B*C, S)
    flat_ids = input_ids.reshape(BC, S)
    flat_seg = segment_ids.reshape(BC, S)
    flat_mask = input_mask.reshape(BC, S).astype(jnp.float32)

    # --- embeddings (gathers are glue) ---
    pos_ids = jnp.arange(S, dtype=jnp.int32)
    we = jnp.take(prepped["word_emb"], flat_ids, axis=0)             # (BC, S, H)
    pe = jnp.take(prepped["pos_emb"], pos_ids, axis=0)[None, :, :]   # (1, S, H)
    te = jnp.take(prepped["type_emb"], flat_seg, axis=0)             # (BC, S, H)
    # fused embedding sum + LayerNorm -> bf16 activations
    h = pallas_embed_layernorm(we, pe, te, prepped["emb_ln_g"], prepped["emb_ln_b"],
                               eps=eps).reshape(BC * S, H)
    # dropout: identity at inference

    # additive attention-mask bias, computed once for all layers / heads
    mask_bias = ((1.0 - flat_mask) * (-10000.0)).reshape(BC, 1, S)
    scale = 1.0 / math.sqrt(DH)

    for layer in prepped["layers"]:
        # fused QKV projection: (BC*S, H) @ (H, 3H) -> bf16
        qkv = pallas_linear(h, layer["wqkv_t"], layer["bqkv"]).reshape(BC, S, 3 * H)
        # attention over all heads per (batch*choice, q-tile)
        ctx = pallas_attention(qkv, mask_bias, NH, DH, scale).reshape(BC * S, H)
        # output projection + residual + layernorm, fused
        h = pallas_linear_add_layernorm(ctx, layer["wo_t"], layer["bo"], h,
                                        layer["ln1_g"], layer["ln1_b"], eps=eps)
        # fully fused FFN: up-proj + GELU + down-proj + residual + LN
        h = pallas_ffn(h, layer["w1_t"], layer["b1"], layer["w2_t"], layer["b2"],
                       h, layer["ln2_g"], layer["ln2_b"], eps=eps)

    # --- pooler (tanh on [CLS]) + classifier, fused ---
    first_tok = h.reshape(BC, S, H)[:, 0, :]                         # (BC, H)
    logits = pallas_pool_classify(first_tok, prepped["pool_wt"], prepped["pool_b"],
                                  prepped["cls_wt"], prepped["cls_b"])  # (BC, 1)
    return logits.reshape(B, C)   # logits.view(-1, num_choices)


# ----------------------------- main -----------------------------

if __name__ == "__main__":
    cfg = dict(
        vocab_size=100,
        hidden_size=128,
        num_hidden_layers=2,
        num_attention_heads=4,
        intermediate_size=256,
        max_position_embeddings=16,
        type_vocab_size=2,
        initializer_range=0.02,
        layer_norm_eps=1e-12,
        hidden_dropout_prob=0.1,   # unused at inference
    )

    key = jax.random.PRNGKey(0)
    k_params, k_ids, k_seg = jax.random.split(key, 3)
    params = init_params(k_params, cfg)
    prepped = prepare_params(params)   # one-time transpose / bf16 cast / QKV pack

    B, C, S = 2, 2, 8
    input_ids = jax.random.randint(k_ids, (B, C, S), 0, cfg["vocab_size"], dtype=jnp.int32)
    segment_ids = jax.random.randint(k_seg, (B, C, S), 0, cfg["type_vocab_size"], dtype=jnp.int32)
    lengths = jnp.array([[8, 6], [5, 8]], dtype=jnp.int32)
    input_mask = (jnp.arange(S)[None, None, :] < lengths[:, :, None]).astype(jnp.int32)

    fwd = jax.jit(lambda p, ids, seg, mask: multiple_choice_forward(p, cfg, ids, seg, mask))
    logits = fwd(prepped, input_ids, segment_ids, input_mask)
    logits = jax.block_until_ready(logits)
    assert logits.shape == (B, C) and logits.dtype == jnp.float32
    print("KERNEL_OK")
</pallas_src>

<mosaic_0001>
module attributes {stable_mosaic.version = 11 : i64} {
  func.func @_embed_ln_kernel(%arg0: i32, %arg1: memref<1x8x128xf32, #tpu.memory_space<vmem>>, %arg2: memref<1x8x128xf32, #tpu.memory_space<vmem>>, %arg3: memref<1x8x128xf32, #tpu.memory_space<vmem>>, %arg4: memref<1x128xf32, #tpu.memory_space<vmem>>, %arg5: memref<1x128xf32, #tpu.memory_space<vmem>>, %arg6: memref<1x8x128xbf16, #tpu.memory_space<vmem>>) attributes {dimension_semantics = [#tpu.dimension_semantics<parallel>], iteration_bounds = array<i64: 4>, scalar_prefetch = 0 : i64, scratch_operands = 0 : i64, tpu.core_type = #tpu.core_type<tc>, window_params = [{transform_indices = @transform_0, window_bounds = array<i64: 1, 8, 128>}, {pipeline_mode = #tpu.pipeline_mode<synchronous>, transform_indices = @transform_1, window_bounds = array<i64: 1, 8, 128>}, {transform_indices = @transform_2, window_bounds = array<i64: 1, 8, 128>}, {pipeline_mode = #tpu.pipeline_mode<synchronous>, transform_indices = @transform_3, window_bounds = array<i64: 1, 128>}, {pipeline_mode = #tpu.pipeline_mode<synchronous>, transform_indices = @transform_4, window_bounds = array<i64: 1, 128>}, {transform_indices = @transform_5, window_bounds = array<i64: 1, 8, 128>}]} {
    %c0 = arith.constant 0 : index
    %c0_0 = arith.constant 0 : index
    %c0_1 = arith.constant 0 : index
    %0 = vector.load %arg1[%c0, %c0_0, %c0_1] : memref<1x8x128xf32, #tpu.memory_space<vmem>>, vector<1x8x128xf32>
    %1 = vector.shape_cast %0 : vector<1x8x128xf32> to vector<8x128xf32>
    %c0_2 = arith.constant 0 : index
    %c0_3 = arith.constant 0 : index
    %c0_4 = arith.constant 0 : index
    %2 = vector.load %arg2[%c0_2, %c0_3, %c0_4] : memref<1x8x128xf32, #tpu.memory_space<vmem>>, vector<1x8x128xf32>
    %3 = vector.shape_cast %2 : vector<1x8x128xf32> to vector<8x128xf32>
    %4 = arith.addf %1, %3 : vector<8x128xf32>
    %c0_5 = arith.constant 0 : index
    %c0_6 = arith.constant 0 : index
    %c0_7 = arith.constant 0 : index
    %5 = vector.load %arg3[%c0_5, %c0_6, %c0_7] : memref<1x8x128xf32, #tpu.memory_space<vmem>>, vector<1x8x128xf32>
    %6 = vector.shape_cast %5 : vector<1x8x128xf32> to vector<8x128xf32>
    %7 = arith.addf %4, %6 : vector<8x128xf32>
    %cst = arith.constant dense<0.000000e+00> : vector<8xf32>
    %8 = vector.multi_reduction <add>, %7, %cst [1] : vector<8x128xf32> to vector<8xf32>
    %9 = vector.shape_cast %8 : vector<8xf32> to vector<8x1xf32>
    %cst_8 = arith.constant 1.280000e+02 : f32
    %10 = vector.broadcast %cst_8 : f32 to vector<8x1xf32>
    %11 = arith.divf %9, %10 : vector<8x1xf32>
    %12 = vector.broadcast %11 : vector<8x1xf32> to vector<8x128xf32>
    %13 = arith.subf %7, %12 : vector<8x128xf32>
    %14 = arith.mulf %13, %13 : vector<8x128xf32>
    %cst_9 = arith.constant dense<0.000000e+00> : vector<8xf32>
    %15 = vector.multi_reduction <add>, %14, %cst_9 [1] : vector<8x128xf32> to vector<8xf32>
    %16 = vector.shape_cast %15 : vector<8xf32> to vector<8x1xf32>
    %cst_10 = arith.constant 1.280000e+02 : f32
    %17 = vector.broadcast %cst_10 : f32 to vector<8x1xf32>
    %18 = arith.divf %16, %17 : vector<8x1xf32>
    %19 = vector.broadcast %11 : vector<8x1xf32> to vector<8x128xf32>
    %20 = arith.subf %7, %19 : vector<8x128xf32>
    %cst_11 = arith.constant 9.99999996E-13 : f32
    %21 = vector.broadcast %cst_11 : f32 to vector<8x1xf32>
    %22 = arith.addf %18, %21 : vector<8x1xf32>
    %23 = math.rsqrt %22 : vector<8x1xf32>
    %24 = vector.broadcast %23 : vector<8x1xf32> to vector<8x128xf32>
    %25 = arith.mulf %20, %24 : vector<8x128xf32>
    %c0_12 = arith.constant 0 : index
    %c0_13 = arith.constant 0 : index
    %26 = vector.load %arg4[%c0_12, %c0_13] : memref<1x128xf32, #tpu.memory_space<vmem>>, vector<1x128xf32>
    %27 = vector.broadcast %26 : vector<1x128xf32> to vector<8x128xf32>
    %28 = arith.mulf %25, %27 : vector<8x128xf32>
    %c0_14 = arith.constant 0 : index
    %c0_15 = arith.constant 0 : index
    %29 = vector.load %arg5[%c0_14, %c0_15] : memref<1x128xf32, #tpu.memory_space<vmem>>, vector<1x128xf32>
    %30 = vector.broadcast %29 : vector<1x128xf32> to vector<8x128xf32>
    %31 = arith.addf %28, %30 : vector<8x128xf32>
    %32 = arith.truncf %31 : vector<8x128xf32> to vector<8x128xbf16>
    %c0_16 = arith.constant 0 : index
    %c0_17 = arith.constant 0 : index
    %c0_18 = arith.constant 0 : index
    %33 = vector.load %arg6[%c0_16, %c0_17, %c0_18] : memref<1x8x128xbf16, #tpu.memory_space<vmem>>, vector<1x8x128xbf16>
    %34 = vector.shape_cast %33 : vector<1x8x128xbf16> to vector<8x128xbf16>
    %35 = vector.shape_cast %32 : vector<8x128xbf16> to vector<1x8x128xbf16>
    tpu.vector_store %arg6[%c0_16, %c0_17, %c0_18], %35 {strides = array<i32>} : memref<1x8x128xbf16, #tpu.memory_space<vmem>>, vector<1x8x128xbf16>,
    return
  }
  func.func @transform_0(%arg0: i32) -> (i32, i32, i32) {
    %c0_i32 = arith.constant 0 : i32
    %c0_i32_0 = arith.constant 0 : i32
    %c0_i32_1 = arith.constant 0 : i32
    return %arg0, %c0_i32, %c0_i32_0 : i32, i32, i32
  }
  func.func @transform_1(%arg0: i32) -> (i32, i32, i32) {
    %c0_i32 = arith.constant 0 : i32
    %c0_i32_0 = arith.constant 0 : i32
    %c0_i32_1 = arith.constant 0 : i32
    %c0_i32_2 = arith.constant 0 : i32
    return %c0_i32, %c0_i32_0, %c0_i32_1 : i32, i32, i32
  }
  func.func @transform_2(%arg0: i32) -> (i32, i32, i32) {
    %c0_i32 = arith.constant 0 : i32
    %c0_i32_0 = arith.constant 0 : i32
    %c0_i32_1 = arith.constant 0 : i32
    return %arg0, %c0_i32, %c0_i32_0 : i32, i32, i32
  }
  func.func @transform_3(%arg0: i32) -> (i32, i32) {
    %c0_i32 = arith.constant 0 : i32
    %c0_i32_0 = arith.constant 0 : i32
    %c0_i32_1 = arith.constant 0 : i32
    return %c0_i32, %c0_i32_0 : i32, i32
  }
  func.func @transform_4(%arg0: i32) -> (i32, i32) {
    %c0_i32 = arith.constant 0 : i32
    %c0_i32_0 = arith.constant 0 : i32
    %c0_i32_1 = arith.constant 0 : i32
    return %c0_i32, %c0_i32_0 : i32, i32
  }
  func.func @transform_5(%arg0: i32) -> (i32, i32, i32) {
    %c0_i32 = arith.constant 0 : i32
    %c0_i32_0 = arith.constant 0 : i32
    %c0_i32_1 = arith.constant 0 : i32
    return %arg0, %c0_i32, %c0_i32_0 : i32, i32, i32
  }
}

module attributes {stable_mosaic.version = 11 : i64} {
  func.func @_linear_kernel(%arg0: i32, %arg1: i32, %arg2: i32, %arg3: memref<32x128xbf16, #tpu.memory_space<vmem>>, %arg4: memref<128x384xbf16, #tpu.memory_space<vmem>>, %arg5: memref<1x384xf32, #tpu.memory_space<vmem>>, %arg6: memref<32x384xbf16, #tpu.memory_space<vmem>>, %arg7: memref<32x384xf32, #tpu.memory_space<vmem>>) attributes {dimension_semantics = [#tpu.dimension_semantics<parallel>, #tpu.dimension_semantics<parallel>, #tpu.dimension_semantics<arbitrary>], iteration_bounds = array<i64: 1, 1, 1>, scalar_prefetch = 0 : i64, scratch_operands = 1 : i64, tpu.core_type = #tpu.core_type<tc>, window_params = [{transform_indices = @transform_0, window_bounds = array<i64: 32, 128>}, {transform_indices = @transform_1, window_bounds = array<i64: 128, 384>}, {transform_indices = @transform_2, window_bounds = array<i64: 1, 384>}, {transform_indices = @transform_3, window_bounds = array<i64: 32, 384>}]} {
    %c0_i32 = arith.constant 0 : i32
    %0 = arith.cmpi eq, %arg2, %c0_i32 : i32
    %1 = arith.extui %0 : i1 to i32
    %c0_i32_0 = arith.constant 0 : i32
    %2 = arith.cmpi ne, %1, %c0_i32_0 : i32
    scf.if %2 {
      %cst_10 = arith.constant 0.000000e+00 : f32
      %12 = vector.broadcast %cst_10 : f32 to vector<32x384xf32>
      %c0_11 = arith.constant 0 : index
      %c0_12 = arith.constant 0 : index
      %13 = vector.load %arg7[%c0_11, %c0_12] : memref<32x384xf32, #tpu.memory_space<vmem>>, vector<32x384xf32>
      tpu.vector_store %arg7[%c0_11, %c0_12], %12 {strides = array<i32>} : memref<32x384xf32, #tpu.memory_space<vmem>>, vector<32x384xf32>,
    } else {
    }
    %c0 = arith.constant 0 : index
    %c0_1 = arith.constant 0 : index
    %3 = vector.load %arg7[%c0, %c0_1] : memref<32x384xf32, #tpu.memory_space<vmem>>, vector<32x384xf32>
    %c0_2 = arith.constant 0 : index
    %c0_3 = arith.constant 0 : index
    %4 = vector.load %arg3[%c0_2, %c0_3] : memref<32x128xbf16, #tpu.memory_space<vmem>>, vector<32x128xbf16>
    %c0_4 = arith.constant 0 : index
    %c0_5 = arith.constant 0 : index
    %5 = vector.load %arg4[%c0_4, %c0_5] : memref<128x384xbf16, #tpu.memory_space<vmem>>, vector<128x384xbf16>
    %cst = arith.constant dense<0.000000e+00> : vector<32x384xf32>
    %6 = tpu.matmul %4, %5, %cst {dimension_numbers = #tpu.dot_dimension_numbers<[1], [0], [0], [1], [0, 0, 1, 1], [], []>} : vector<32x128xbf16>, vector<128x384xbf16>, vector<32x384xf32> -> vector<32x384xf32>
    %7 = arith.addf %3, %6 : vector<32x384xf32>
    %c0_6 = arith.constant 0 : index
    %c0_7 = arith.constant 0 : index
    %8 = vector.load %arg7[%c0_6, %c0_7] : memref<32x384xf32, #tpu.memory_space<vmem>>, vector<32x384xf32>
    tpu.vector_store %arg7[%c0_6, %c0_7], %7 {strides = array<i32>} : memref<32x384xf32, #tpu.memory_space<vmem>>, vector<32x384xf32>,
    %c0_i32_8 = arith.constant 0 : i32
    %9 = arith.cmpi eq, %arg2, %c0_i32_8 : i32
    %10 = arith.extui %9 : i1 to i32
    %c0_i32_9 = arith.constant 0 : i32
    %11 = arith.cmpi ne, %10, %c0_i32_9 : i32
    scf.if %11 {
      %c0_10 = arith.constant 0 : index
      %c0_11 = arith.constant 0 : index
      %12 = vector.load %arg7[%c0_10, %c0_11] : memref<32x384xf32, #tpu.memory_space<vmem>>, vector<32x384xf32>
      %c0_12 = arith.constant 0 : index
      %c0_13 = arith.constant 0 : index
      %13 = vector.load %arg5[%c0_12, %c0_13] : memref<1x384xf32, #tpu.memory_space<vmem>>, vector<1x384xf32>
      %14 = vector.broadcast %13 : vector<1x384xf32> to vector<32x384xf32>
      %15 = arith.addf %12, %14 : vector<32x384xf32>
      %16 = arith.truncf %15 : vector<32x384xf32> to vector<32x384xbf16>
      %c0_14 = arith.constant 0 : index
      %c0_15 = arith.constant 0 : index
      %17 = vector.load %arg6[%c0_14, %c0_15] : memref<32x384xbf16, #tpu.memory_space<vmem>>, vector<32x384xbf16>
      tpu.vector_store %arg6[%c0_14, %c0_15], %16 {strides = array<i32>} : memref<32x384xbf16, #tpu.memory_space<vmem>>, vector<32x384xbf16>,
    } else {
    }
    return
  }
  func.func @transform_0(%arg0: i32, %arg1: i32, %arg2: i32) -> (i32, i32) {
    %c0_i32 = arith.constant 0 : i32
    return %arg0, %arg2 : i32, i32
  }
  func.func @transform_1(%arg0: i32, %arg1: i32, %arg2: i32) -> (i32, i32) {
    %c0_i32 = arith.constant 0 : i32
    return %arg2, %arg1 : i32, i32
  }
  func.func @transform_2(%arg0: i32, %arg1: i32, %arg2: i32) -> (i32, i32) {
    %c0_i32 = arith.constant 0 : i32
    %c0_i32_0 = arith.constant 0 : i32
    return %c0_i32, %arg1 : i32, i32
  }
  func.func @transform_3(%arg0: i32, %arg1: i32, %arg2: i32) -> (i32, i32) {
    %c0_i32 = arith.constant 0 : i32
    return %arg0, %arg1 : i32, i32
  }
}

module attributes {stable_mosaic.version = 11 : i64} {
  func.func @_attention_kernel(%arg0: i32, %arg1: i32, %arg2: memref<1x8x128xbf16, #tpu.memory_space<vmem>>, %arg3: memref<1x8x128xbf16, #tpu.memory_space<vmem>>, %arg4: memref<1x8x128xbf16, #tpu.memory_space<vmem>>, %arg5: memref<1x1x8xf32, #tpu.memory_space<vmem>>, %arg6: memref<1x8x128xbf16, #tpu.memory_space<vmem>>) attributes {dimension_semantics = [#tpu.dimension_semantics<parallel>, #tpu.dimension_semantics<parallel>], iteration_bounds = array<i64: 4, 1>, scalar_prefetch = 0 : i64, scratch_operands = 0 : i64, tpu.core_type = #tpu.core_type<tc>, window_params = [{transform_indices = @transform_0, window_bounds = array<i64: 1, 8, 128>}, {transform_indices = @transform_1, window_bounds = array<i64: 1, 8, 128>}, {transform_indices = @transform_2, window_bounds = array<i64: 1, 8, 128>}, {transform_indices = @transform_3, window_bounds = array<i64: 1, 1, 8>}, {transform_indices = @transform_4, window_bounds = array<i64: 1, 8, 128>}]} {
    %c0 = arith.constant 0 : index
    %c0_0 = arith.constant 0 : index
    %c0_1 = arith.constant 0 : index
    %0 = vector.load %arg5[%c0, %c0_0, %c0_1] : memref<1x1x8xf32, #tpu.memory_space<vmem>>, vector<1x1x8xf32>
    %1 = vector.shape_cast %0 : vector<1x1x8xf32> to vector<1x8xf32>
    %c0_2 = arith.constant 0 : index
    %c0_3 = arith.constant 0 : index
    %c0_4 = arith.constant 0 : index
    %2 = vector.load %arg2[%c0_2, %c0_3, %c0_4] : memref<1x8x128xbf16, #tpu.memory_space<vmem>>, vector<1x8x32xbf16>
    %3 = vector.shape_cast %2 : vector<1x8x32xbf16> to vector<8x32xbf16>
    %c0_5 = arith.constant 0 : index
    %c0_6 = arith.constant 0 : index
    %c0_7 = arith.constant 0 : index
    %4 = vector.load %arg3[%c0_5, %c0_6, %c0_7] : memref<1x8x128xbf16, #tpu.memory_space<vmem>>, vector<1x8x32xbf16>
    %5 = vector.shape_cast %4 : vector<1x8x32xbf16> to vector<8x32xbf16>
    %c0_8 = arith.constant 0 : index
    %c0_9 = arith.constant 0 : index
    %c0_10 = arith.constant 0 : index
    %6 = vector.load %arg4[%c0_8, %c0_9, %c0_10] : memref<1x8x128xbf16, #tpu.memory_space<vmem>>, vector<1x8x32xbf16>
    %7 = vector.shape_cast %6 : vector<1x8x32xbf16> to vector<8x32xbf16>
    %cst = arith.constant dense<0.000000e+00> : vector<8x8xf32>
    %8 = tpu.matmul %3, %5, %cst {dimension_numbers = #tpu.dot_dimension_numbers<[1], [1], [0], [0], [0, 0, 1, 0], [], []>} : vector<8x32xbf16>, vector<8x32xbf16>, vector<8x8xf32> -> vector<8x8xf32>
    %cst_11 = arith.constant 0.176776692 : f32
    %9 = vector.broadcast %cst_11 : f32 to vector<8x8xf32>
    %10 = arith.mulf %8, %9 : vector<8x8xf32>
    %11 = vector.broadcast %1 : vector<1x8xf32> to vector<8x8xf32>
    %12 = arith.addf %10, %11 : vector<8x8xf32>
    %cst_12 = arith.constant dense<0xFF800000> : vector<8xf32>
    %13 = vector.multi_reduction <maximumf>, %12, %cst_12 [1] : vector<8x8xf32> to vector<8xf32>
    %14 = vector.shape_cast %13 : vector<8xf32> to vector<8x1xf32>
    %15 = vector.broadcast %14 : vector<8x1xf32> to vector<8x8xf32>
    %16 = arith.subf %12, %15 : vector<8x8xf32>
    %17 = math.exp %16 : vector<8x8xf32>
    %cst_13 = arith.constant dense<0.000000e+00> : vector<8xf32>
    %18 = vector.multi_reduction <add>, %17, %cst_13 [1] : vector<8x8xf32> to vector<8xf32>
    %19 = vector.shape_cast %18 : vector<8xf32> to vector<8x1xf32>
    %20 = tpu.reciprocal %19 {approx = true} : vector<8x1xf32> -> vector<8x1xf32>
    %21 = vector.broadcast %20 : vector<8x1xf32> to vector<8x8xf32>
    %22 = arith.mulf %17, %21 : vector<8x8xf32>
    %23 = arith.truncf %22 : vector<8x8xf32> to vector<8x8xbf16>
    %cst_14 = arith.constant dense<0.000000e+00> : vector<8x32xf32>
    %24 = tpu.matmul %23, %7, %cst_14 {dimension_numbers = #tpu.dot_dimension_numbers<[1], [0], [0], [1], [0, 0, 1, 1], [], []>} : vector<8x8xbf16>, vector<8x32xbf16>, vector<8x32xf32> -> vector<8x32xf32>
    %25 = arith.truncf %24 : vector<8x32xf32> to vector<8x32xbf16>
    %c0_15 = arith.constant 0 : index
    %c0_16 = arith.constant 0 : index
    %c0_17 = arith.constant 0 : index
    %26 = vector.load %arg6[%c0_15, %c0_16, %c0_17] : memref<1x8x128xbf16, #tpu.memory_space<vmem>>, vector<1x8x32xbf16>
    %27 = vector.shape_cast %26 : vector<1x8x32xbf16> to vector<8x32xbf16>
    %28 = vector.shape_cast %25 : vector<8x32xbf16> to vector<1x8x32xbf16>
    tpu.vector_store %arg6[%c0_15, %c0_16, %c0_17], %28 {strides = array<i32>} : memref<1x8x128xbf16, #tpu.memory_space<vmem>>, vector<1x8x32xbf16>,
    %c0_18 = arith.constant 0 : index
    %c0_19 = arith.constant 0 : index
    %c32 = arith.constant 32 : index
    %29 = vector.load %arg2[%c0_18, %c0_19, %c32] : memref<1x8x128xbf16, #tpu.memory_space<vmem>>, vector<1x8x32xbf16>
    %30 = vector.shape_cast %29 : vector<1x8x32xbf16> to vector<8x32xbf16>
    %c0_20 = arith.constant 0 : index
    %c0_21 = arith.constant 0 : index
    %c32_22 = arith.constant 32 : index
    %31 = vector.load %arg3[%c0_20, %c0_21, %c32_22] : memref<1x8x128xbf16, #tpu.memory_space<vmem>>, vector<1x8x32xbf16>
    %32 = vector.shape_cast %31 : vector<1x8x32xbf16> to vector<8x32xbf16>
    %c0_23 = arith.constant 0 : index
    %c0_24 = arith.constant 0 : index
    %c32_25 = arith.constant 32 : index
    %33 = vector.load %arg4[%c0_23, %c0_24, %c32_25] : memref<1x8x128xbf16, #tpu.memory_space<vmem>>, vector<1x8x32xbf16>
    %34 = vector.shape_cast %33 : vector<1x8x32xbf16> to vector<8x32xbf16>
    %cst_26 = arith.constant dense<0.000000e+00> : vector<8x8xf32>
    %35 = tpu.matmul %30, %32, %cst_26 {dimension_numbers = #tpu.dot_dimension_numbers<[1], [1], [0], [0], [0, 0, 1, 0], [], []>} : vector<8x32xbf16>, vector<8x32xbf16>, vector<8x8xf32> -> vector<8x8xf32>
    %cst_27 = arith.constant 0.176776692 : f32
    %36 = vector.broadcast %cst_27 : f32 to vector<8x8xf32>
    %37 = arith.mulf %35, %36 : vector<8x8xf32>
    %38 = vector.broadcast %1 : vector<1x8xf32> to vector<8x8xf32>
    %39 = arith.addf %37, %38 : vector<8x8xf32>
    %cst_28 = arith.constant dense<0xFF800000> : vector<8xf32>
    %40 = vector.multi_reduction <maximumf>, %39, %cst_28 [1] : vector<8x8xf32> to vector<8xf32>
    %41 = vector.shape_cast %40 : vector<8xf32> to vector<8x1xf32>
    %42 = vector.broadcast %41 : vector<8x1xf32> to vector<8x8xf32>
    %43 = arith.subf %39, %42 : vector<8x8xf32>
    %44 = math.exp %43 : vector<8x8xf32>
    %cst_29 = arith.constant dense<0.000000e+00> : vector<8xf32>
    %45 = vector.multi_reduction <add>, %44, %cst_29 [1] : vector<8x8xf32> to vector<8xf32>
    %46 = vector.shape_cast %45 : vector<8xf32> to vector<8x1xf32>
    %47 = tpu.reciprocal %46 {approx = true} : vector<8x1xf32> -> vector<8x1xf32>
    %48 = vector.broadcast %47 : vector<8x1xf32> to vector<8x8xf32>
    %49 = arith.mulf %44, %48 : vector<8x8xf32>
    %50 = arith.truncf %49 : vector<8x8xf32> to vector<8x8xbf16>
    %cst_30 = arith.constant dense<0.000000e+00> : vector<8x32xf32>
    %51 = tpu.matmul %50, %34, %cst_30 {dimension_numbers = #tpu.dot_dimension_numbers<[1], [0], [0], [1], [0, 0, 1, 1], [], []>} : vector<8x8xbf16>, vector<8x32xbf16>, vector<8x32xf32> -> vector<8x32xf32>
    %52 = arith.truncf %51 : vector<8x32xf32> to vector<8x32xbf16>
    %c0_31 = arith.constant 0 : index
    %c0_32 = arith.constant 0 : index
    %c32_33 = arith.constant 32 : index
    %53 = vector.load %arg6[%c0_31, %c0_32, %c32_33] : memref<1x8x128xbf16, #tpu.memory_space<vmem>>, vector<1x8x32xbf16>
    %54 = vector.shape_cast %53 : vector<1x8x32xbf16> to vector<8x32xbf16>
    %55 = vector.shape_cast %52 : vector<8x32xbf16> to vector<1x8x32xbf16>
    tpu.vector_store %arg6[%c0_31, %c0_32, %c32_33], %55 {strides = array<i32>} : memref<1x8x128xbf16, #tpu.memory_space<vmem>>, vector<1x8x32xbf16>,
    %c0_34 = arith.constant 0 : index
    %c0_35 = arith.constant 0 : index
    %c64 = arith.constant 64 : index
    %56 = vector.load %arg2[%c0_34, %c0_35, %c64] : memref<1x8x128xbf16, #tpu.memory_space<vmem>>, vector<1x8x32xbf16>
    %57 = vector.shape_cast %56 : vector<1x8x32xbf16> to vector<8x32xbf16>
    %c0_36 = arith.constant 0 : index
    %c0_37 = arith.constant 0 : index
    %c64_38 = arith.constant 64 : index
    %58 = vector.load %arg3[%c0_36, %c0_37, %c64_38] : memref<1x8x128xbf16, #tpu.memory_space<vmem>>, vector<1x8x32xbf16>
    %59 = vector.shape_cast %58 : vector<1x8x32xbf16> to vector<8x32xbf16>
    %c0_39 = arith.constant 0 : index
    %c0_40 = arith.constant 0 : index
    %c64_41 = arith.constant 64 : index
    %60 = vector.load %arg4[%c0_39, %c0_40, %c64_41] : memref<1x8x128xbf16, #tpu.memory_space<vmem>>, vector<1x8x32xbf16>
    %61 = vector.shape_cast %60 : vector<1x8x32xbf16> to vector<8x32xbf16>
    %cst_42 = arith.constant dense<0.000000e+00> : vector<8x8xf32>
    %62 = tpu.matmul %57, %59, %cst_42 {dimension_numbers = #tpu.dot_dimension_numbers<[1], [1], [0], [0], [0, 0, 1, 0], [], []>} : vector<8x32xbf16>, vector<8x32xbf16>, vector<8x8xf32> -> vector<8x8xf32>
    %cst_43 = arith.constant 0.176776692 : f32
    %63 = vector.broadcast %cst_43 : f32 to vector<8x8xf32>
    %64 = arith.mulf %62, %63 : vector<8x8xf32>
    %65 = vector.broadcast %1 : vector<1x8xf32> to vector<8x8xf32>
    %66 = arith.addf %64, %65 : vector<8x8xf32>
    %cst_44 = arith.constant dense<0xFF800000> : vector<8xf32>
    %67 = vector.multi_reduction <maximumf>, %66, %cst_44 [1] : vector<8x8xf32> to vector<8xf32>
    %68 = vector.shape_cast %67 : vector<8xf32> to vector<8x1xf32>
    %69 = vector.broadcast %68 : vector<8x1xf32> to vector<8x8xf32>
    %70 = arith.subf %66, %69 : vector<8x8xf32>
    %71 = math.exp %70 : vector<8x8xf32>
    %cst_45 = arith.constant dense<0.000000e+00> : vector<8xf32>
    %72 = vector.multi_reduction <add>, %71, %cst_45 [1] : vector<8x8xf32> to vector<8xf32>
    %73 = vector.shape_cast %72 : vector<8xf32> to vector<8x1xf32>
    %74 = tpu.reciprocal %73 {approx = true} : vector<8x1xf32> -> vector<8x1xf32>
    %75 = vector.broadcast %74 : vector<8x1xf32> to vector<8x8xf32>
    %76 = arith.mulf %71, %75 : vector<8x8xf32>
    %77 = arith.truncf %76 : vector<8x8xf32> to vector<8x8xbf16>
    %cst_46 = arith.constant dense<0.000000e+00> : vector<8x32xf32>
    %78 = tpu.matmul %77, %61, %cst_46 {dimension_numbers = #tpu.dot_dimension_numbers<[1], [0], [0], [1], [0, 0, 1, 1], [], []>} : vector<8x8xbf16>, vector<8x32xbf16>, vector<8x32xf32> -> vector<8x32xf32>
    %79 = arith.truncf %78 : vector<8x32xf32> to vector<8x32xbf16>
    %c0_47 = arith.constant 0 : index
    %c0_48 = arith.constant 0 : index
    %c64_49 = arith.constant 64 : index
    %80 = vector.load %arg6[%c0_47, %c0_48, %c64_49] : memref<1x8x128xbf16, #tpu.memory_space<vmem>>, vector<1x8x32xbf16>
    %81 = vector.shape_cast %80 : vector<1x8x32xbf16> to vector<8x32xbf16>
    %82 = vector.shape_cast %79 : vector<8x32xbf16> to vector<1x8x32xbf16>
    tpu.vector_store %arg6[%c0_47, %c0_48, %c64_49], %82 {strides = array<i32>} : memref<1x8x128xbf16, #tpu.memory_space<vmem>>, vector<1x8x32xbf16>,
    %c0_50 = arith.constant 0 : index
    %c0_51 = arith.constant 0 : index
    %c96 = arith.constant 96 : index
    %83 = vector.load %arg2[%c0_50, %c0_51, %c96] : memref<1x8x128xbf16, #tpu.memory_space<vmem>>, vector<1x8x32xbf16>
    %84 = vector.shape_cast %83 : vector<1x8x32xbf16> to vector<8x32xbf16>
    %c0_52 = arith.constant 0 : index
    %c0_53 = arith.constant 0 : index
    %c96_54 = arith.constant 96 : index
    %85 = vector.load %arg3[%c0_52, %c0_53, %c96_54] : memref<1x8x128xbf16, #tpu.memory_space<vmem>>, vector<1x8x32xbf16>
    %86 = vector.shape_cast %85 : vector<1x8x32xbf16> to vector<8x32xbf16>
    %c0_55 = arith.constant 0 : index
    %c0_56 = arith.constant 0 : index
    %c96_57 = arith.constant 96 : index
    %87 = vector.load %arg4[%c0_55, %c0_56, %c96_57] : memref<1x8x128xbf16, #tpu.memory_space<vmem>>, vector<1x8x32xbf16>
    %88 = vector.shape_cast %87 : vector<1x8x32xbf16> to vector<8x32xbf16>
    %cst_58 = arith.constant dense<0.000000e+00> : vector<8x8xf32>
    %89 = tpu.matmul %84, %86, %cst_58 {dimension_numbers = #tpu.dot_dimension_numbers<[1], [1], [0], [0], [0, 0, 1, 0], [], []>} : vector<8x32xbf16>, vector<8x32xbf16>, vector<8x8xf32> -> vector<8x8xf32>
    %cst_59 = arith.constant 0.176776692 : f32
    %90 = vector.broadcast %cst_59 : f32 to vector<8x8xf32>
    %91 = arith.mulf %89, %90 : vector<8x8xf32>
    %92 = vector.broadcast %1 : vector<1x8xf32> to vector<8x8xf32>
    %93 = arith.addf %91, %92 : vector<8x8xf32>
    %cst_60 = arith.constant dense<0xFF800000> : vector<8xf32>
    %94 = vector.multi_reduction <maximumf>, %93, %cst_60 [1] : vector<8x8xf32> to vector<8xf32>
    %95 = vector.shape_cast %94 : vector<8xf32> to vector<8x1xf32>
    %96 = vector.broadcast %95 : vector<8x1xf32> to vector<8x8xf32>
    %97 = arith.subf %93, %96 : vector<8x8xf32>
    %98 = math.exp %97 : vector<8x8xf32>
    %cst_61 = arith.constant dense<0.000000e+00> : vector<8xf32>
    %99 = vector.multi_reduction <add>, %98, %cst_61 [1] : vector<8x8xf32> to vector<8xf32>
    %100 = vector.shape_cast %99 : vector<8xf32> to vector<8x1xf32>
    %101 = tpu.reciprocal %100 {approx = true} : vector<8x1xf32> -> vector<8x1xf32>
    %102 = vector.broadcast %101 : vector<8x1xf32> to vector<8x8xf32>
    %103 = arith.mulf %98, %102 : vector<8x8xf32>
    %104 = arith.truncf %103 : vector<8x8xf32> to vector<8x8xbf16>
    %cst_62 = arith.constant dense<0.000000e+00> : vector<8x32xf32>
    %105 = tpu.matmul %104, %88, %cst_62 {dimension_numbers = #tpu.dot_dimension_numbers<[1], [0], [0], [1], [0, 0, 1, 1], [], []>} : vector<8x8xbf16>, vector<8x32xbf16>, vector<8x32xf32> -> vector<8x32xf32>
    %106 = arith.truncf %105 : vector<8x32xf32> to vector<8x32xbf16>
    %c0_63 = arith.constant 0 : index
    %c0_64 = arith.constant 0 : index
    %c96_65 = arith.constant 96 : index
    %107 = vector.load %arg6[%c0_63, %c0_64, %c96_65] : memref<1x8x128xbf16, #tpu.memory_space<vmem>>, vector<1x8x32xbf16>
    %108 = vector.shape_cast %107 : vector<1x8x32xbf16> to vector<8x32xbf16>
    %109 = vector.shape_cast %106 : vector<8x32xbf16> to vector<1x8x32xbf16>
    tpu.vector_store %arg6[%c0_63, %c0_64, %c96_65], %109 {strides = array<i32>} : memref<1x8x128xbf16, #tpu.memory_space<vmem>>, vector<1x8x32xbf16>,
    return
  }
  func.func @transform_0(%arg0: i32, %arg1: i32) -> (i32, i32, i32) {
    %c0_i32 = arith.constant 0 : i32
    %c0_i32_0 = arith.constant 0 : i32
    return %arg0, %arg1, %c0_i32 : i32, i32, i32
  }
  func.func @transform_1(%arg0: i32, %arg1: i32) -> (i32, i32, i32) {
    %c0_i32 = arith.constant 0 : i32
    %c1_i32 = arith.constant 1 : i32
    %c0_i32_0 = arith.constant 0 : i32
    return %arg0, %c0_i32, %c1_i32 : i32, i32, i32
  }
  func.func @transform_2(%arg0: i32, %arg1: i32) -> (i32, i32, i32) {
    %c0_i32 = arith.constant 0 : i32
    %c2_i32 = arith.constant 2 : i32
    %c0_i32_0 = arith.constant 0 : i32
    return %arg0, %c0_i32, %c2_i32 : i32, i32, i32
  }
  func.func @transform_3(%arg0: i32, %arg1: i32) -> (i32, i32, i32) {
    %c0_i32 = arith.constant 0 : i32
    %c0_i32_0 = arith.constant 0 : i32
    %c0_i32_1 = arith.constant 0 : i32
    return %arg0, %c0_i32, %c0_i32_0 : i32, i32, i32
  }
  func.func @transform_4(%arg0: i32, %arg1: i32) -> (i32, i32, i32) {
    %c0_i32 = arith.constant 0 : i32
    %c0_i32_0 = arith.constant 0 : i32
    return %arg0, %arg1, %c0_i32 : i32, i32, i32
  }
}

module attributes {stable_mosaic.version = 11 : i64} {
  func.func @_linear_add_ln_kernel(%arg0: i32, %arg1: i32, %arg2: memref<32x128xbf16, #tpu.memory_space<vmem>>, %arg3: memref<128x128xbf16, #tpu.memory_space<vmem>>, %arg4: memref<1x128xf32, #tpu.memory_space<vmem>>, %arg5: memref<32x128xbf16, #tpu.memory_space<vmem>>, %arg6: memref<1x128xf32, #tpu.memory_space<vmem>>, %arg7: memref<1x128xf32, #tpu.memory_space<vmem>>, %arg8: memref<32x128xbf16, #tpu.memory_space<vmem>>, %arg9: memref<32x128xf32, #tpu.memory_space<vmem>>) attributes {dimension_semantics = [#tpu.dimension_semantics<parallel>, #tpu.dimension_semantics<arbitrary>], iteration_bounds = array<i64: 1, 1>, scalar_prefetch = 0 : i64, scratch_operands = 1 : i64, tpu.core_type = #tpu.core_type<tc>, window_params = [{transform_indices = @transform_0, window_bounds = array<i64: 32, 128>}, {transform_indices = @transform_1, window_bounds = array<i64: 128, 128>}, {pipeline_mode = #tpu.pipeline_mode<synchronous>, transform_indices = @transform_2, window_bounds = array<i64: 1, 128>}, {transform_indices = @transform_3, window_bounds = array<i64: 32, 128>}, {pipeline_mode = #tpu.pipeline_mode<synchronous>, transform_indices = @transform_4, window_bounds = array<i64: 1, 128>}, {pipeline_mode = #tpu.pipeline_mode<synchronous>, transform_indices = @transform_5, window_bounds = array<i64: 1, 128>}, {transform_indices = @transform_6, window_bounds = array<i64: 32, 128>}]} {
    %c0_i32 = arith.constant 0 : i32
    %0 = arith.cmpi eq, %arg1, %c0_i32 : i32
    %1 = arith.extui %0 : i1 to i32
    %c0_i32_0 = arith.constant 0 : i32
    %2 = arith.cmpi ne, %1, %c0_i32_0 : i32
    scf.if %2 {
      %cst_10 = arith.constant 0.000000e+00 : f32
      %12 = vector.broadcast %cst_10 : f32 to vector<32x128xf32>
      %c0_11 = arith.constant 0 : index
      %c0_12 = arith.constant 0 : index
      %13 = vector.load %arg9[%c0_11, %c0_12] : memref<32x128xf32, #tpu.memory_space<vmem>>, vector<32x128xf32>
      tpu.vector_store %arg9[%c0_11, %c0_12], %12 {strides = array<i32>} : memref<32x128xf32, #tpu.memory_space<vmem>>, vector<32x128xf32>,
    } else {
    }
    %c0 = arith.constant 0 : index
    %c0_1 = arith.constant 0 : index
    %3 = vector.load %arg9[%c0, %c0_1] : memref<32x128xf32, #tpu.memory_space<vmem>>, vector<32x128xf32>
    %c0_2 = arith.constant 0 : index
    %c0_3 = arith.constant 0 : index
    %4 = vector.load %arg2[%c0_2, %c0_3] : memref<32x128xbf16, #tpu.memory_space<vmem>>, vector<32x128xbf16>
    %c0_4 = arith.constant 0 : index
    %c0_5 = arith.constant 0 : index
    %5 = vector.load %arg3[%c0_4, %c0_5] : memref<128x128xbf16, #tpu.memory_space<vmem>>, vector<128x128xbf16>
    %cst = arith.constant dense<0.000000e+00> : vector<32x128xf32>
    %6 = tpu.matmul %4, %5, %cst {dimension_numbers = #tpu.dot_dimension_numbers<[1], [0], [0], [1], [0, 0, 1, 1], [], []>} : vector<32x128xbf16>, vector<128x128xbf16>, vector<32x128xf32> -> vector<32x128xf32>
    %7 = arith.addf %3, %6 : vector<32x128xf32>
    %c0_6 = arith.constant 0 : index
    %c0_7 = arith.constant 0 : index
    %8 = vector.load %arg9[%c0_6, %c0_7] : memref<32x128xf32, #tpu.memory_space<vmem>>, vector<32x128xf32>
    tpu.vector_store %arg9[%c0_6, %c0_7], %7 {strides = array<i32>} : memref<32x128xf32, #tpu.memory_space<vmem>>, vector<32x128xf32>,
    %c0_i32_8 = arith.constant 0 : i32
    %9 = arith.cmpi eq, %arg1, %c0_i32_8 : i32
    %10 = arith.extui %9 : i1 to i32
    %c0_i32_9 = arith.constant 0 : i32
    %11 = arith.cmpi ne, %10, %c0_i32_9 : i32
    scf.if %11 {
      %c0_10 = arith.constant 0 : index
      %c0_11 = arith.constant 0 : index
      %12 = vector.load %arg9[%c0_10, %c0_11] : memref<32x128xf32, #tpu.memory_space<vmem>>, vector<32x128xf32>
      %c0_12 = arith.constant 0 : index
      %c0_13 = arith.constant 0 : index
      %13 = vector.load %arg4[%c0_12, %c0_13] : memref<1x128xf32, #tpu.memory_space<vmem>>, vector<1x128xf32>
      %14 = vector.broadcast %13 : vector<1x128xf32> to vector<32x128xf32>
      %15 = arith.addf %12, %14 : vector<32x128xf32>
      %c0_14 = arith.constant 0 : index
      %c0_15 = arith.constant 0 : index
      %16 = vector.load %arg5[%c0_14, %c0_15] : memref<32x128xbf16, #tpu.memory_space<vmem>>, vector<32x128xbf16>
      %17 = arith.extf %16 : vector<32x128xbf16> to vector<32x128xf32>
      %18 = arith.addf %15, %17 : vector<32x128xf32>
      %cst_16 = arith.constant dense<0.000000e+00> : vector<32xf32>
      %19 = vector.multi_reduction <add>, %18, %cst_16 [1] : vector<32x128xf32> to vector<32xf32>
      %20 = vector.shape_cast %19 : vector<32xf32> to vector<32x1xf32>
      %cst_17 = arith.constant 1.280000e+02 : f32
      %21 = vector.broadcast %cst_17 : f32 to vector<32x1xf32>
      %22 = arith.divf %20, %21 : vector<32x1xf32>
      %23 = vector.broadcast %22 : vector<32x1xf32> to vector<32x128xf32>
      %24 = arith.subf %18, %23 : vector<32x128xf32>
      %25 = arith.mulf %24, %24 : vector<32x128xf32>
      %cst_18 = arith.constant dense<0.000000e+00> : vector<32xf32>
      %26 = vector.multi_reduction <add>, %25, %cst_18 [1] : vector<32x128xf32> to vector<32xf32>
      %27 = vector.shape_cast %26 : vector<32xf32> to vector<32x1xf32>
      %cst_19 = arith.constant 1.280000e+02 : f32
      %28 = vector.broadcast %cst_19 : f32 to vector<32x1xf32>
      %29 = arith.divf %27, %28 : vector<32x1xf32>
      %30 = vector.broadcast %22 : vector<32x1xf32> to vector<32x128xf32>
      %31 = arith.subf %18, %30 : vector<32x128xf32>
      %cst_20 = arith.constant 9.99999996E-13 : f32
      %32 = vector.broadcast %cst_20 : f32 to vector<32x1xf32>
      %33 = arith.addf %29, %32 : vector<32x1xf32>
      %34 = math.rsqrt %33 : vector<32x1xf32>
      %35 = vector.broadcast %34 : vector<32x1xf32> to vector<32x128xf32>
      %36 = arith.mulf %31, %35 : vector<32x128xf32>
      %c0_21 = arith.constant 0 : index
      %c0_22 = arith.constant 0 : index
      %37 = vector.load %arg6[%c0_21, %c0_22] : memref<1x128xf32, #tpu.memory_space<vmem>>, vector<1x128xf32>
      %38 = vector.broadcast %37 : vector<1x128xf32> to vector<32x128xf32>
      %39 = arith.mulf %36, %38 : vector<32x128xf32>
      %c0_23 = arith.constant 0 : index
      %c0_24 = arith.constant 0 : index
      %40 = vector.load %arg7[%c0_23, %c0_24] : memref<1x128xf32, #tpu.memory_space<vmem>>, vector<1x128xf32>
      %41 = vector.broadcast %40 : vector<1x128xf32> to vector<32x128xf32>
      %42 = arith.addf %39, %41 : vector<32x128xf32>
      %43 = arith.truncf %42 : vector<32x128xf32> to vector<32x128xbf16>
      %c0_25 = arith.constant 0 : index
      %c0_26 = arith.constant 0 : index
      %44 = vector.load %arg8[%c0_25, %c0_26] : memref<32x128xbf16, #tpu.memory_space<vmem>>, vector<32x128xbf16>
      tpu.vector_store %arg8[%c0_25, %c0_26], %43 {strides = array<i32>} : memref<32x128xbf16, #tpu.memory_space<vmem>>, vector<32x128xbf16>,
    } else {
    }
    return
  }
  func.func @transform_0(%arg0: i32, %arg1: i32) -> (i32, i32) {
    %c0_i32 = arith.constant 0 : i32
    return %arg0, %arg1 : i32, i32
  }
  func.func @transform_1(%arg0: i32, %arg1: i32) -> (i32, i32) {
    %c0_i32 = arith.constant 0 : i32
    %c0_i32_0 = arith.constant 0 : i32
    return %arg1, %c0_i32 : i32, i32
  }
  func.func @transform_2(%arg0: i32, %arg1: i32) -> (i32, i32) {
    %c0_i32 = arith.constant 0 : i32
    %c0_i32_0 = arith.constant 0 : i32
    %c0_i32_1 = arith.constant 0 : i32
    return %c0_i32, %c0_i32_0 : i32, i32
  }
  func.func @transform_3(%arg0: i32, %arg1: i32) -> (i32, i32) {
    %c0_i32 = arith.constant 0 : i32
    %c0_i32_0 = arith.constant 0 : i32
    return %arg0, %c0_i32 : i32, i32
  }
  func.func @transform_4(%arg0: i32, %arg1: i32) -> (i32, i32) {
    %c0_i32 = arith.constant 0 : i32
    %c0_i32_0 = arith.constant 0 : i32
    %c0_i32_1 = arith.constant 0 : i32
    return %c0_i32, %c0_i32_0 : i32, i32
  }
  func.func @transform_5(%arg0: i32, %arg1: i32) -> (i32, i32) {
    %c0_i32 = arith.constant 0 : i32
    %c0_i32_0 = arith.constant 0 : i32
    %c0_i32_1 = arith.constant 0 : i32
    return %c0_i32, %c0_i32_0 : i32, i32
  }
  func.func @transform_6(%arg0: i32, %arg1: i32) -> (i32, i32) {
    %c0_i32 = arith.constant 0 : i32
    %c0_i32_0 = arith.constant 0 : i32
    return %arg0, %c0_i32 : i32, i32
  }
}

module attributes {stable_mosaic.version = 11 : i64} {
  func.func @_ffn_kernel(%arg0: i32, %arg1: i32, %arg2: memref<32x128xbf16, #tpu.memory_space<vmem>>, %arg3: memref<128x256xbf16, #tpu.memory_space<vmem>>, %arg4: memref<1x256xf32, #tpu.memory_space<vmem>>, %arg5: memref<256x128xbf16, #tpu.memory_space<vmem>>, %arg6: memref<1x128xf32, #tpu.memory_space<vmem>>, %arg7: memref<32x128xbf16, #tpu.memory_space<vmem>>, %arg8: memref<1x128xf32, #tpu.memory_space<vmem>>, %arg9: memref<1x128xf32, #tpu.memory_space<vmem>>, %arg10: memref<32x128xbf16, #tpu.memory_space<vmem>>, %arg11: memref<32x128xf32, #tpu.memory_space<vmem>>) attributes {dimension_semantics = [#tpu.dimension_semantics<parallel>, #tpu.dimension_semantics<arbitrary>], iteration_bounds = array<i64: 1, 1>, scalar_prefetch = 0 : i64, scratch_operands = 1 : i64, tpu.core_type = #tpu.core_type<tc>, window_params = [{transform_indices = @transform_0, window_bounds = array<i64: 32, 128>}, {transform_indices = @transform_1, window_bounds = array<i64: 128, 256>}, {transform_indices = @transform_2, window_bounds = array<i64: 1, 256>}, {transform_indices = @transform_3, window_bounds = array<i64: 256, 128>}, {pipeline_mode = #tpu.pipeline_mode<synchronous>, transform_indices = @transform_4, window_bounds = array<i64: 1, 128>}, {transform_indices = @transform_5, window_bounds = array<i64: 32, 128>}, {pipeline_mode = #tpu.pipeline_mode<synchronous>, transform_indices = @transform_6, window_bounds = array<i64: 1, 128>}, {pipeline_mode = #tpu.pipeline_mode<synchronous>, transform_indices = @transform_7, window_bounds = array<i64: 1, 128>}, {transform_indices = @transform_8, window_bounds = array<i64: 32, 128>}]} {
    %c0_i32 = arith.constant 0 : i32
    %0 = arith.cmpi eq, %arg1, %c0_i32 : i32
    %1 = arith.extui %0 : i1 to i32
    %c0_i32_0 = arith.constant 0 : i32
    %2 = arith.cmpi ne, %1, %c0_i32_0 : i32
    scf.if %2 {
      %cst_19 = arith.constant 0.000000e+00 : f32
      %31 = vector.broadcast %cst_19 : f32 to vector<32x128xf32>
      %c0_20 = arith.constant 0 : index
      %c0_21 = arith.constant 0 : index
      %32 = vector.load %arg11[%c0_20, %c0_21] : memref<32x128xf32, #tpu.memory_space<vmem>>, vector<32x128xf32>
      tpu.vector_store %arg11[%c0_20, %c0_21], %31 {strides = array<i32>} : memref<32x128xf32, #tpu.memory_space<vmem>>, vector<32x128xf32>,
    } else {
    }
    %c0 = arith.constant 0 : index
    %c0_1 = arith.constant 0 : index
    %3 = vector.load %arg2[%c0, %c0_1] : memref<32x128xbf16, #tpu.memory_space<vmem>>, vector<32x128xbf16>
    %c0_2 = arith.constant 0 : index
    %c0_3 = arith.constant 0 : index
    %4 = vector.load %arg3[%c0_2, %c0_3] : memref<128x256xbf16, #tpu.memory_space<vmem>>, vector<128x256xbf16>
    %cst = arith.constant dense<0.000000e+00> : vector<32x256xf32>
    %5 = tpu.matmul %3, %4, %cst {dimension_numbers = #tpu.dot_dimension_numbers<[1], [0], [0], [1], [0, 0, 1, 1], [], []>} : vector<32x128xbf16>, vector<128x256xbf16>, vector<32x256xf32> -> vector<32x256xf32>
    %c0_4 = arith.constant 0 : index
    %c0_5 = arith.constant 0 : index
    %6 = vector.load %arg4[%c0_4, %c0_5] : memref<1x256xf32, #tpu.memory_space<vmem>>, vector<1x256xf32>
    %7 = vector.broadcast %6 : vector<1x256xf32> to vector<32x256xf32>
    %8 = arith.addf %5, %7 : vector<32x256xf32>
    %cst_6 = arith.constant 5.000000e-01 : f32
    %9 = vector.broadcast %cst_6 : f32 to vector<32x256xf32>
    %10 = arith.mulf %9, %8 : vector<32x256xf32>
    %cst_7 = arith.constant 4.471500e-02 : f32
    %11 = vector.broadcast %cst_7 : f32 to vector<32x256xf32>
    %12 = arith.mulf %11, %8 : vector<32x256xf32>
    %13 = arith.mulf %12, %8 : vector<32x256xf32>
    %14 = arith.mulf %13, %8 : vector<32x256xf32>
    %15 = arith.addf %8, %14 : vector<32x256xf32>
    %cst_8 = arith.constant 0.797884583 : f32
    %16 = vector.broadcast %cst_8 : f32 to vector<32x256xf32>
    %17 = arith.mulf %16, %15 : vector<32x256xf32>
    %18 = math.tanh %17 : vector<32x256xf32>
    %cst_9 = arith.constant 1.000000e+00 : f32
    %19 = vector.broadcast %cst_9 : f32 to vector<32x256xf32>
    %20 = arith.addf %19, %18 : vector<32x256xf32>
    %21 = arith.mulf %10, %20 : vector<32x256xf32>
    %c0_10 = arith.constant 0 : index
    %c0_11 = arith.constant 0 : index
    %22 = vector.load %arg11[%c0_10, %c0_11] : memref<32x128xf32, #tpu.memory_space<vmem>>, vector<32x128xf32>
    %23 = arith.truncf %21 : vector<32x256xf32> to vector<32x256xbf16>
    %c0_12 = arith.constant 0 : index
    %c0_13 = arith.constant 0 : index
    %24 = vector.load %arg5[%c0_12, %c0_13] : memref<256x128xbf16, #tpu.memory_space<vmem>>, vector<256x128xbf16>
    %cst_14 = arith.constant dense<0.000000e+00> : vector<32x128xf32>
    %25 = tpu.matmul %23, %24, %cst_14 {dimension_numbers = #tpu.dot_dimension_numbers<[1], [0], [0], [1], [0, 0, 1, 1], [], []>} : vector<32x256xbf16>, vector<256x128xbf16>, vector<32x128xf32> -> vector<32x128xf32>
    %26 = arith.addf %22, %25 : vector<32x128xf32>
    %c0_15 = arith.constant 0 : index
    %c0_16 = arith.constant 0 : index
    %27 = vector.load %arg11[%c0_15, %c0_16] : memref<32x128xf32, #tpu.memory_space<vmem>>, vector<32x128xf32>
    tpu.vector_store %arg11[%c0_15, %c0_16], %26 {strides = array<i32>} : memref<32x128xf32, #tpu.memory_space<vmem>>, vector<32x128xf32>,
    %c0_i32_17 = arith.constant 0 : i32
    %28 = arith.cmpi eq, %arg1, %c0_i32_17 : i32
    %29 = arith.extui %28 : i1 to i32
    %c0_i32_18 = arith.constant 0 : i32
    %30 = arith.cmpi ne, %29, %c0_i32_18 : i32
    scf.if %30 {
      %c0_19 = arith.constant 0 : index
      %c0_20 = arith.constant 0 : index
      %31 = vector.load %arg11[%c0_19, %c0_20] : memref<32x128xf32, #tpu.memory_space<vmem>>, vector<32x128xf32>
      %c0_21 = arith.constant 0 : index
      %c0_22 = arith.constant 0 : index
      %32 = vector.load %arg6[%c0_21, %c0_22] : memref<1x128xf32, #tpu.memory_space<vmem>>, vector<1x128xf32>
      %33 = vector.broadcast %32 : vector<1x128xf32> to vector<32x128xf32>
      %34 = arith.addf %31, %33 : vector<32x128xf32>
      %c0_23 = arith.constant 0 : index
      %c0_24 = arith.constant 0 : index
      %35 = vector.load %arg7[%c0_23, %c0_24] : memref<32x128xbf16, #tpu.memory_space<vmem>>, vector<32x128xbf16>
      %36 = arith.extf %35 : vector<32x128xbf16> to vector<32x128xf32>
      %37 = arith.addf %34, %36 : vector<32x128xf32>
      %cst_25 = arith.constant dense<0.000000e+00> : vector<32xf32>
      %38 = vector.multi_reduction <add>, %37, %cst_25 [1] : vector<32x128xf32> to vector<32xf32>
      %39 = vector.shape_cast %38 : vector<32xf32> to vector<32x1xf32>
      %cst_26 = arith.constant 1.280000e+02 : f32
      %40 = vector.broadcast %cst_26 : f32 to vector<32x1xf32>
      %41 = arith.divf %39, %40 : vector<32x1xf32>
      %42 = vector.broadcast %41 : vector<32x1xf32> to vector<32x128xf32>
      %43 = arith.subf %37, %42 : vector<32x128xf32>
      %44 = arith.mulf %43, %43 : vector<32x128xf32>
      %cst_27 = arith.constant dense<0.000000e+00> : vector<32xf32>
      %45 = vector.multi_reduction <add>, %44, %cst_27 [1] : vector<32x128xf32> to vector<32xf32>
      %46 = vector.shape_cast %45 : vector<32xf32> to vector<32x1xf32>
      %cst_28 = arith.constant 1.280000e+02 : f32
      %47 = vector.broadcast %cst_28 : f32 to vector<32x1xf32>
      %48 = arith.divf %46, %47 : vector<32x1xf32>
      %49 = vector.broadcast %41 : vector<32x1xf32> to vector<32x128xf32>
      %50 = arith.subf %37, %49 : vector<32x128xf32>
      %cst_29 = arith.constant 9.99999996E-13 : f32
      %51 = vector.broadcast %cst_29 : f32 to vector<32x1xf32>
      %52 = arith.addf %48, %51 : vector<32x1xf32>
      %53 = math.rsqrt %52 : vector<32x1xf32>
      %54 = vector.broadcast %53 : vector<32x1xf32> to vector<32x128xf32>
      %55 = arith.mulf %50, %54 : vector<32x128xf32>
      %c0_30 = arith.constant 0 : index
      %c0_31 = arith.constant 0 : index
      %56 = vector.load %arg8[%c0_30, %c0_31] : memref<1x128xf32, #tpu.memory_space<vmem>>, vector<1x128xf32>
      %57 = vector.broadcast %56 : vector<1x128xf32> to vector<32x128xf32>
      %58 = arith.mulf %55, %57 : vector<32x128xf32>
      %c0_32 = arith.constant 0 : index
      %c0_33 = arith.constant 0 : index
      %59 = vector.load %arg9[%c0_32, %c0_33] : memref<1x128xf32, #tpu.memory_space<vmem>>, vector<1x128xf32>
      %60 = vector.broadcast %59 : vector<1x128xf32> to vector<32x128xf32>
      %61 = arith.addf %58, %60 : vector<32x128xf32>
      %62 = arith.truncf %61 : vector<32x128xf32> to vector<32x128xbf16>
      %c0_34 = arith.constant 0 : index
      %c0_35 = arith.constant 0 : index
      %63 = vector.load %arg10[%c0_34, %c0_35] : memref<32x128xbf16, #tpu.memory_space<vmem>>, vector<32x128xbf16>
      tpu.vector_store %arg10[%c0_34, %c0_35], %62 {strides = array<i32>} : memref<32x128xbf16, #tpu.memory_space<vmem>>, vector<32x128xbf16>,
    } else {
    }
    return
  }
  func.func @transform_0(%arg0: i32, %arg1: i32) -> (i32, i32) {
    %c0_i32 = arith.constant 0 : i32
    %c0_i32_0 = arith.constant 0 : i32
    return %arg0, %c0_i32 : i32, i32
  }
  func.func @transform_1(%arg0: i32, %arg1: i32) -> (i32, i32) {
    %c0_i32 = arith.constant 0 : i32
    %c0_i32_0 = arith.constant 0 : i32
    return %c0_i32, %arg1 : i32, i32
  }
  func.func @transform_2(%arg0: i32, %arg1: i32) -> (i32, i32) {
    %c0_i32 = arith.constant 0 : i32
    %c0_i32_0 = arith.constant 0 : i32
    return %c0_i32, %arg1 : i32, i32
  }
  func.func @transform_3(%arg0: i32, %arg1: i32) -> (i32, i32) {
    %c0_i32 = arith.constant 0 : i32
    %c0_i32_0 = arith.constant 0 : i32
    return %arg1, %c0_i32 : i32, i32
  }
  func.func @transform_4(%arg0: i32, %arg1: i32) -> (i32, i32) {
    %c0_i32 = arith.constant 0 : i32
    %c0_i32_0 = arith.constant 0 : i32
    %c0_i32_1 = arith.constant 0 : i32
    return %c0_i32, %c0_i32_0 : i32, i32
  }
  func.func @transform_5(%arg0: i32, %arg1: i32) -> (i32, i32) {
    %c0_i32 = arith.constant 0 : i32
    %c0_i32_0 = arith.constant 0 : i32
    return %arg0, %c0_i32 : i32, i32
  }
  func.func @transform_6(%arg0: i32, %arg1: i32) -> (i32, i32) {
    %c0_i32 = arith.constant 0 : i32
    %c0_i32_0 = arith.constant 0 : i32
    %c0_i32_1 = arith.constant 0 : i32
    return %c0_i32, %c0_i32_0 : i32, i32
  }
  func.func @transform_7(%arg0: i32, %arg1: i32) -> (i32, i32) {
    %c0_i32 = arith.constant 0 : i32
    %c0_i32_0 = arith.constant 0 : i32
    %c0_i32_1 = arith.constant 0 : i32
    return %c0_i32, %c0_i32_0 : i32, i32
  }
  func.func @transform_8(%arg0: i32, %arg1: i32) -> (i32, i32) {
    %c0_i32 = arith.constant 0 : i32
    %c0_i32_0 = arith.constant 0 : i32
    return %arg0, %c0_i32 : i32, i32
  }
}

module attributes {stable_mosaic.version = 11 : i64} {
  func.func @_pool_cls_kernel(%arg0: i32, %arg1: memref<4x128xbf16, #tpu.memory_space<vmem>>, %arg2: memref<128x128xbf16, #tpu.memory_space<vmem>>, %arg3: memref<1x128xf32, #tpu.memory_space<vmem>>, %arg4: memref<128x1xbf16, #tpu.memory_space<vmem>>, %arg5: memref<1x1xf32, #tpu.memory_space<vmem>>, %arg6: memref<4x1xf32, #tpu.memory_space<vmem>>) attributes {dimension_semantics = [#tpu.dimension_semantics<arbitrary>], iteration_bounds = array<i64: 1>, scalar_prefetch = 0 : i64, scratch_operands = 0 : i64, tpu.core_type = #tpu.core_type<tc>, window_params = [{pipeline_mode = #tpu.pipeline_mode<synchronous>, transform_indices = @transform_0, window_bounds = array<i64: 4, 128>}, {pipeline_mode = #tpu.pipeline_mode<synchronous>, transform_indices = @transform_1, window_bounds = array<i64: 128, 128>}, {pipeline_mode = #tpu.pipeline_mode<synchronous>, transform_indices = @transform_2, window_bounds = array<i64: 1, 128>}, {pipeline_mode = #tpu.pipeline_mode<synchronous>, transform_indices = @transform_3, window_bounds = array<i64: 128, 1>}, {pipeline_mode = #tpu.pipeline_mode<synchronous>, transform_indices = @transform_4, window_bounds = array<i64: 1, 1>}, {pipeline_mode = #tpu.pipeline_mode<synchronous>, transform_indices = @transform_5, window_bounds = array<i64: 4, 1>}]} {
    %c0 = arith.constant 0 : index
    %c0_0 = arith.constant 0 : index
    %0 = vector.load %arg1[%c0, %c0_0] : memref<4x128xbf16, #tpu.memory_space<vmem>>, vector<4x128xbf16>
    %c0_1 = arith.constant 0 : index
    %c0_2 = arith.constant 0 : index
    %1 = vector.load %arg2[%c0_1, %c0_2] : memref<128x128xbf16, #tpu.memory_space<vmem>>, vector<128x128xbf16>
    %cst = arith.constant dense<0.000000e+00> : vector<4x128xf32>
    %2 = tpu.matmul %0, %1, %cst {dimension_numbers = #tpu.dot_dimension_numbers<[1], [0], [0], [1], [0, 0, 1, 1], [], []>} : vector<4x128xbf16>, vector<128x128xbf16>, vector<4x128xf32> -> vector<4x128xf32>
    %c0_3 = arith.constant 0 : index
    %c0_4 = arith.constant 0 : index
    %3 = vector.load %arg3[%c0_3, %c0_4] : memref<1x128xf32, #tpu.memory_space<vmem>>, vector<1x128xf32>
    %4 = vector.broadcast %3 : vector<1x128xf32> to vector<4x128xf32>
    %5 = arith.addf %2, %4 : vector<4x128xf32>
    %6 = math.tanh %5 : vector<4x128xf32>
    %7 = arith.truncf %6 : vector<4x128xf32> to vector<4x128xbf16>
    %c0_5 = arith.constant 0 : index
    %c0_6 = arith.constant 0 : index
    %8 = vector.load %arg4[%c0_5, %c0_6] : memref<128x1xbf16, #tpu.memory_space<vmem>>, vector<128x1xbf16>
    %cst_7 = arith.constant dense<0.000000e+00> : vector<4x1xf32>
    %9 = tpu.matmul %7, %8, %cst_7 {dimension_numbers = #tpu.dot_dimension_numbers<[1], [0], [0], [1], [0, 0, 1, 1], [], []>} : vector<4x128xbf16>, vector<128x1xbf16>, vector<4x1xf32> -> vector<4x1xf32>
    %c0_8 = arith.constant 0 : index
    %c0_9 = arith.constant 0 : index
    %10 = vector.load %arg5[%c0_8, %c0_9] : memref<1x1xf32, #tpu.memory_space<vmem>>, vector<1x1xf32>
    %11 = vector.broadcast %10 : vector<1x1xf32> to vector<4x1xf32>
    %12 = arith.addf %9, %11 : vector<4x1xf32>
    %c0_10 = arith.constant 0 : index
    %c0_11 = arith.constant 0 : index
    %13 = vector.load %arg6[%c0_10, %c0_11] : memref<4x1xf32, #tpu.memory_space<vmem>>, vector<4x1xf32>
    tpu.vector_store %arg6[%c0_10, %c0_11], %12 {strides = array<i32>} : memref<4x1xf32, #tpu.memory_space<vmem>>, vector<4x1xf32>,
    return
  }
  func.func @transform_0(%arg0: i32) -> (i32, i32) {
    %c0_i32 = arith.constant 0 : i32
    %c0_i32_0 = arith.constant 0 : i32
    %c0_i32_1 = arith.constant 0 : i32
    return %c0_i32, %c0_i32_0 : i32, i32
  }
  func.func @transform_1(%arg0: i32) -> (i32, i32) {
    %c0_i32 = arith.constant 0 : i32
    %c0_i32_0 = arith.constant 0 : i32
    %c0_i32_1 = arith.constant 0 : i32
    return %c0_i32, %c0_i32_0 : i32, i32
  }
  func.func @transform_2(%arg0: i32) -> (i32, i32) {
    %c0_i32 = arith.constant 0 : i32
    %c0_i32_0 = arith.constant 0 : i32
    %c0_i32_1 = arith.constant 0 : i32
    return %c0_i32, %c0_i32_0 : i32, i32
  }
  func.func @transform_3(%arg0: i32) -> (i32, i32) {
    %c0_i32 = arith.constant 0 : i32
    %c0_i32_0 = arith.constant 0 : i32
    %c0_i32_1 = arith.constant 0 : i32
    return %c0_i32, %c0_i32_0 : i32, i32
  }
  func.func @transform_4(%arg0: i32) -> (i32, i32) {
    %c0_i32 = arith.constant 0 : i32
    %c0_i32_0 = arith.constant 0 : i32
    %c0_i32_1 = arith.constant 0 : i32
    return %c0_i32, %c0_i32_0 : i32, i32
  }
  func.func @transform_5(%arg0: i32) -> (i32, i32) {
    %c0_i32 = arith.constant 0 : i32
    %c0_i32_0 = arith.constant 0 : i32
    %c0_i32_1 = arith.constant 0 : i32
    return %c0_i32, %c0_i32_0 : i32, i32
  }
}

</mosaic_0001>

<llo_original>
// kernel: _lambda_.10
$region0: #{_lambda_.10}
  #allocation0 [shape = 'u32[]', space=smem, size = 0x4, offset = 0x4, fixed_abs, tag = 'smem constant byte address 0x4 - core index']
  #allocation1 [shape = 'u32[144,128]{1,0:T(1,128)}', space=vmem, size = 0x12000, scoped, tag = 'internal scratch']
  %s0 = inlined_call_operand.vmem [shape: f32[4,8,128], index: 0, kind: input, shape index: {}]
  %s1 = inlined_call_operand.vmem [shape: f32[1,8,128], index: 1, kind: input, shape index: {}]
  %s2 = inlined_call_operand.vmem [shape: f32[4,8,128], index: 2, kind: input, shape index: {}]
  %s3 = inlined_call_operand.vmem [shape: f32[1,128], index: 3, kind: input, shape index: {}]
  %s4 = inlined_call_operand.vmem [shape: f32[1,128], index: 4, kind: input, shape index: {}]
  %s5 = inlined_call_operand.vmem [shape: bf16[4,8,128], index: 5, kind: output, shape index: {}]
  %s6 = sld [smem:[#allocation0]]
  $region53: #{_lambda_.10} parent=0
    _
  %s8 = ssub.s32 1, %s6
  %s9 = scalar_select 0, %s8, %s6
  loop: start=0, step=1, limit=6
  $region2: #{_lambda_.10} parent=0 // loop_pre_header
    _
  $region3: #{_lambda_.10} parent=0 // loop_header
    %s11 = sphi 0, %s15
    %p12 = scmp.ge.s32.totalorder %s11, 6
    %s21 = sphi 0, %s23
    %s24 = sphi 0, %s21
    %s25 = sphi 0, %s24
    %s41 = sphi 0, %s25
    %s45 = sphi 0, %s45
    %s47 = sphi 0, %s45
    %s48 = sphi 0, %s47
    %s62 = sphi 0, %s48
    %s68 = sphi 0, %s70
    %s71 = sphi 0, %s68
    %s72 = sphi 0, %s71
    %s88 = sphi 0, %s72
    %s92 = sphi 0, %s92
    %s94 = sphi 0, %s92
    %s95 = sphi 0, %s94
    %s109 = sphi 0, %s95
    %s113 = sphi 0, %s113
    %s115 = sphi 0, %s113
    %s116 = sphi 0, %s115
    %s130 = sphi 0, %s116
    %s136 = sphi 0, %s138
    %s139 = sphi 0, %s136
    %s140 = sphi 0, %s139
    %s156 = sphi 0, %s140
  $region4: #{_lambda_.10} parent=0 // loop_header_branch
    %14 = sbr.rel (%p12) target = $region8
  $region5: #{_lambda_.10} parent=0 // loop_body
    %s16 = ssub.s32 %s11, 1
    %s17 = ssub.s32 %s11, 2
    %s18 = sadd.s32 %s11, 1
    %s19 = ssub.s32 %s11, %s18
    %p20 = scmp.eq.s32.totalorder %s19, 0
    %s22 = sadd.s32 %s21, 1
    %s23 = scalar_select %p20, %s21, %s22
    %p26 = pneg %p20
    %p27 = scmp.eq.s32.totalorder %s11, 3
    %p28 = por %p26, %p27
    %p29 = scmp.ne.s32.totalorder %s21, %s24
    %p30 = scmp.eq.s32.totalorder %s11, 0
    %p31 = por %p29, %p30
    %p32 = scmp.ne.s32.totalorder %s21, %s24
    %p33 = scmp.eq.s32.totalorder %s16, 3
    %p34 = por %p32, %p33
    %p35 = scmp.ne.s32.totalorder %s24, %s25
    %p36 = scmp.eq.s32.totalorder %s16, 0
    %p37 = por %p35, %p36
    %p38 = scmp.ne.s32.totalorder %s24, %s25
    %p39 = scmp.eq.s32.totalorder %s17, 3
    %p40 = por %p38, %p39
    %p42 = scmp.ne.s32.totalorder %s25, %s41
    %p43 = scmp.eq.s32.totalorder %s17, 0
    %p44 = por %p42, %p43
    %s46 = sadd.s32 %s45, 1
    %p49 = scmp.eq.s32.totalorder %s11, 3
    %p50 = scmp.ne.s32.totalorder %s45, %s47
    %p51 = scmp.eq.s32.totalorder %s11, 0
    %p52 = por %p50, %p51
    %p53 = scmp.ne.s32.totalorder %s45, %s47
    %p54 = scmp.eq.s32.totalorder %s16, 3
    %p55 = por %p53, %p54
    %p56 = scmp.ne.s32.totalorder %s47, %s48
    %p57 = scmp.eq.s32.totalorder %s16, 0
    %p58 = por %p56, %p57
    %p59 = scmp.ne.s32.totalorder %s47, %s48
    %p60 = scmp.eq.s32.totalorder %s17, 3
    %p61 = por %p59, %p60
    %p63 = scmp.ne.s32.totalorder %s48, %s62
    %p64 = scmp.eq.s32.totalorder %s17, 0
    %p65 = por %p63, %p64
    %s66 = ssub.s32 %s11, %s18
    %p67 = scmp.eq.s32.totalorder %s66, 0
    %s69 = sadd.s32 %s68, 1
    %s70 = scalar_select %p67, %s68, %s69
    %p73 = pneg %p67
    %p74 = scmp.eq.s32.totalorder %s11, 3
    %p75 = por %p73, %p74
    %p76 = scmp.ne.s32.totalorder %s68, %s71
    %p77 = scmp.eq.s32.totalorder %s11, 0
    %p78 = por %p76, %p77
    %p79 = scmp.ne.s32.totalorder %s68, %s71
    %p80 = scmp.eq.s32.totalorder %s16, 3
    %p81 = por %p79, %p80
    %p82 = scmp.ne.s32.totalorder %s71, %s72
    %p83 = scmp.eq.s32.totalorder %s16, 0
    %p84 = por %p82, %p83
    %p85 = scmp.ne.s32.totalorder %s71, %s72
    %p86 = scmp.eq.s32.totalorder %s17, 3
    %p87 = por %p85, %p86
    %p89 = scmp.ne.s32.totalorder %s72, %s88
    %p90 = scmp.eq.s32.totalorder %s17, 0
    %p91 = por %p89, %p90
    %s93 = sadd.s32 %s92, 1
    %p96 = scmp.eq.s32.totalorder %s11, 3
    %p97 = scmp.ne.s32.totalorder %s92, %s94
    %p98 = scmp.eq.s32.totalorder %s11, 0
    %p99 = por %p97, %p98
    %p100 = scmp.ne.s32.totalorder %s92, %s94
    %p101 = scmp.eq.s32.totalorder %s16, 3
    %p102 = por %p100, %p101
    %p103 = scmp.ne.s32.totalorder %s94, %s95
    %p104 = scmp.eq.s32.totalorder %s16, 0
    %p105 = por %p103, %p104
    %p106 = scmp.ne.s32.totalorder %s94, %s95
    %p107 = scmp.eq.s32.totalorder %s17, 3
    %p108 = por %p106, %p107
    %p110 = scmp.ne.s32.totalorder %s95, %s109
    %p111 = scmp.eq.s32.totalorder %s17, 0
    %p112 = por %p110, %p111
    %s114 = sadd.s32 %s113, 1
    %p117 = scmp.eq.s32.totalorder %s11, 3
    %p118 = scmp.ne.s32.totalorder %s113, %s115
    %p119 = scmp.eq.s32.totalorder %s11, 0
    %p120 = por %p118, %p119
    %p121 = scmp.ne.s32.totalorder %s113, %s115
    %p122 = scmp.eq.s32.totalorder %s16, 3
    %p123 = por %p121, %p122
    %p124 = scmp.ne.s32.totalorder %s115, %s116
    %p125 = scmp.eq.s32.totalorder %s16, 0
    %p126 = por %p124, %p125
    %p127 = scmp.ne.s32.totalorder %s115, %s116
    %p128 = scmp.eq.s32.totalorder %s17, 3
    %p129 = por %p127, %p128
    %p131 = scmp.ne.s32.totalorder %s116, %s130
    %p132 = scmp.eq.s32.totalorder %s17, 0
    %p133 = por %p131, %p132
    %s134 = ssub.s32 %s11, %s18
    %p135 = scmp.eq.s32.totalorder %s134, 0
    %s137 = sadd.s32 %s136, 1
    %s138 = scalar_select %p135, %s136, %s137
    %p141 = pneg %p135
    %p142 = scmp.eq.s32.totalorder %s11, 3
    %p143 = por %p141, %p142
    %p144 = scmp.ne.s32.totalorder %s136, %s139
    %p145 = scmp.eq.s32.totalorder %s11, 0
    %p146 = por %p144, %p145
    %p147 = scmp.ne.s32.totalorder %s136, %s139
    %p148 = scmp.eq.s32.totalorder %s16, 3
    %p149 = por %p147, %p148
    %p150 = scmp.ne.s32.totalorder %s139, %s140
    %p151 = scmp.eq.s32.totalorder %s16, 0
    %p152 = por %p150, %p151
    %p153 = scmp.ne.s32.totalorder %s139, %s140
    %p154 = scmp.eq.s32.totalorder %s17, 3
    %p155 = por %p153, %p154
    %p157 = scmp.ne.s32.totalorder %s140, %s156
    %p158 = scmp.eq.s32.totalorder %s17, 0
    %p159 = por %p157, %p158
    %p160 = scmp.le.s32.totalorder 1, %s11
    %p161 = scmp.lt.s32.totalorder %s11, 5
    %p162 = pnand %p160, %p161
    %p163 = pneg %p162
    // Predicated region
    $region9: #{_lambda_.10} parent=5 // pred_check
      _
    $region10: #{_lambda_.10} parent=5 // pred_check_branch
      %165 = sbr.rel (%p162) target = $region12
    $region11: #{_lambda_.10} parent=5 // pred_region
      %s166 = ssub.s32 %s11, 1
      // Predicated region
      $region13: #{_lambda_.10} parent=11 // pred_check
        %p167 = pneg %p58
      $region14: #{_lambda_.10} parent=11 // pred_check_branch
        %169 = sbr.rel (%p167) target = $region16
      $region15: #{_lambda_.10} parent=11 // pred_region
        _
      $region16: #{_lambda_.10} parent=11 // pred_fallthru
        _
      // Predicated region
      $region17: #{_lambda_.10} parent=11 // pred_check
        %p170 = pneg %p105
      $region18: #{_lambda_.10} parent=11 // pred_check_branch
        %172 = sbr.rel (%p170) target = $region20
      $region19: #{_lambda_.10} parent=11 // pred_region
        _
      $region20: #{_lambda_.10} parent=11 // pred_fallthru
        _
      // Predicated region
      $region21: #{_lambda_.10} parent=11 // pred_check
        %p173 = pneg %p126
      $region22: #{_lambda_.10} parent=11 // pred_check_branch
        %175 = sbr.rel (%p173) target = $region24
      $region23: #{_lambda_.10} parent=11 // pred_region
        _
      $region24: #{_lambda_.10} parent=11 // pred_fallthru
        _
    $region12: #{_lambda_.10} parent=5 // pred_fallthru
      _
    %p176 = scmp.lt.s32.totalorder %s11, 4
    // Predicated region
    $region25: #{_lambda_.10} parent=5 // pred_check
      %p177 = pneg %p176
    $region26: #{_lambda_.10} parent=5 // pred_check_branch
      %179 = sbr.rel (%p177) target = $region28
    $region27: #{_lambda_.10} parent=5 // pred_region
      // Predicated region
      $region29: #{_lambda_.10} parent=27 // pred_check
        %p180 = pneg %p31
      $region30: #{_lambda_.10} parent=27 // pred_check_branch
        %182 = sbr.rel (%p180) target = $region32
      $region31: #{_lambda_.10} parent=27 // pred_region
        %p183 = scmp.lt.s32.totalorder %s11, 3
        %s184 = scalar_select %p183, %s11, 3
        %s185 = smul.addr %s184, 8
        %s186 = scalar_lea.vmem %s0, %s185
      $region32: #{_lambda_.10} parent=27 // pred_fallthru
        _
      // Predicated region
      $region33: #{_lambda_.10} parent=27 // pred_check
        %p187 = pneg %p78
      $region34: #{_lambda_.10} parent=27 // pred_check_branch
        %189 = sbr.rel (%p187) target = $region36
      $region35: #{_lambda_.10} parent=27 // pred_region
        %p190 = scmp.lt.s32.totalorder %s11, 3
        %s191 = scalar_select %p190, %s11, 3
        %s192 = smul.addr %s191, 8
        %s193 = scalar_lea.vmem %s2, %s192
      $region36: #{_lambda_.10} parent=27 // pred_fallthru
        _
    $region28: #{_lambda_.10} parent=5 // pred_fallthru
      _
    %p194 = scmp.le.s32.totalorder 1, %s11
    %p195 = scmp.lt.s32.totalorder %s11, 5
    %p196 = pnand %p194, %p195
    %p197 = pneg %p196
    // Predicated region
    $region37: #{_lambda_.10} parent=5 // pred_check
      _
    $region38: #{_lambda_.10} parent=5 // pred_check_branch
      %199 = sbr.rel (%p196) target = $region40
    $region39: #{_lambda_.10} parent=5 // pred_region
      %s200 = ssub.s32 %s11, 1
      %p201 = scmp.lt.s32.totalorder %s16, 3
      %s202 = scalar_select %p201, %s16, 3
      %s203 = smul.addr %s202, 8
      %s204 = scalar_lea.vmem %s0, %s203
      %p205 = pneg %p37
      %p206 = pneg %p34
      %p207 = pneg %p58
      %p208 = pneg %p55
      %p209 = scmp.lt.s32.totalorder %s16, 3
      %s210 = scalar_select %p209, %s16, 3
      %s211 = smul.addr %s210, 8
      %s212 = scalar_lea.vmem %s2, %s211
      %p213 = pneg %p84
      %p214 = pneg %p81
      %p215 = pneg %p105
      %p216 = pneg %p102
      %p217 = pneg %p126
      %p218 = pneg %p123
      %p219 = pneg %p152
      %p220 = pneg %p149
      %p221 = scmp.lt.s32.totalorder %s16, 3
      %s222 = scalar_select %p221, %s16, 3
      %s223 = smul.addr %s222, 4
      %s224 = scalar_lea.vmem %s5, %s223
      %p225 = scmp.lt.s32.totalorder %s16, 3
      %s226 = scalar_select %p225, %s16, 3
      %s227 = smul.addr %s226, 8
      %s228 = scalar_lea.vmem %s0, %s227
      %p229 = scmp.lt.s32.totalorder %s16, 3
      %s230 = scalar_select %p229, %s16, 3
      %s231 = smul.addr %s230, 8
      %s232 = scalar_lea.vmem %s2, %s231
      %p233 = scmp.lt.s32.totalorder %s16, 3
      %s234 = scalar_select %p233, %s16, 3
      %s235 = smul.addr %s234, 4
      %s236 = scalar_lea.vmem %s5, %s235
      %v237 = vld [vmem:[%s228] sm:$0xff]
      %v238 = vld [vmem:[%s1] sm:$0xff]
      %v239 = vadd.f32 %v237, %v238
      %v240 = vld [vmem:[%s232] sm:$0xff]
      %v241 = vadd.f32 %v239, %v240
      %242 = vadd.xlane.f32.xlu0 %v241
      %v243 = vpop.xlane.xlu0 %242
      %v244 = vrcp.pop 128.0
      %v245 = vmul.f32 %v243, %v244
      %v246 = vsub.f32 %v241, %v245
      %v247 = vmul.f32 %v246, %v246
      %248 = vadd.xlane.f32.xlu0 %v247
      %v249 = vpop.xlane.xlu0 %248
      %v250 = vmul.f32 %v249, %v244
      %v251 = vadd.f32 %v250, 1e-12
      %v252 = vrsqrt.pop %v251
      %v253 = vmul.f32 %v246, %v252
      %v254 = vld [vmem:[%s3] sm:$0x1]
      %v256 = vlaneseq
      %v257 = vshrl.u32 %v256, 7
      %v258 = vsub.s32 0, %v257
      %v259 = vrot.slane %v254, %v258
      %v261 = vmul.f32 %v253, %v259
      %v262 = vld [vmem:[%s4] sm:$0x1]
      %v264 = vlaneseq
      %v265 = vshrl.u32 %v264, 7
      %v266 = vsub.s32 0, %v265
      %v267 = vrot.slane %v262, %v266
      %v269 = vadd.f32 %v261, %v267
      %v270 = vpack.c.bf16 %v269, %v269
      %271 = vst [vmem:[%s236] sm:$0xf] %v270
      %p272 = scmp.lt.s32.totalorder %s16, 3
      %s273 = scalar_select %p272, %s16, 3
      %s274 = smul.addr %s273, 4
      %s275 = scalar_lea.vmem %s5, %s274
      // Predicated region
      $region41: #{_lambda_.10} parent=39 // pred_check
        %p276 = pneg %p149
      $region42: #{_lambda_.10} parent=39 // pred_check_branch
        %278 = sbr.rel (%p276) target = $region44
      $region43: #{_lambda_.10} parent=39 // pred_region
        _
      $region44: #{_lambda_.10} parent=39 // pred_fallthru
        _
    $region40: #{_lambda_.10} parent=5 // pred_fallthru
      _
    %p279 = scmp.le.s32.totalorder 2, %s11
    // Predicated region
    $region45: #{_lambda_.10} parent=5 // pred_check
      %p280 = pneg %p279
    $region46: #{_lambda_.10} parent=5 // pred_check_branch
      %282 = sbr.rel (%p280) target = $region48
    $region47: #{_lambda_.10} parent=5 // pred_region
      %s283 = ssub.s32 %s11, 2
      // Predicated region
      $region49: #{_lambda_.10} parent=47 // pred_check
        %p284 = pneg %p155
      $region50: #{_lambda_.10} parent=47 // pred_check_branch
        %286 = sbr.rel (%p284) target = $region52
      $region51: #{_lambda_.10} parent=47 // pred_region
        %p287 = scmp.lt.s32.totalorder %s17, 3
        %s288 = scalar_select %p287, %s17, 3
        %s289 = smul.addr %s288, 4
        %s290 = scalar_lea.vmem %s5, %s289
      $region52: #{_lambda_.10} parent=47 // pred_fallthru
        _
    $region48: #{_lambda_.10} parent=5 // pred_fallthru
      _
  $region6: #{_lambda_.10} parent=0 // loop_footer
    %s15 = sadd.s32 1, %s11
  $region7: #{_lambda_.10} parent=0 // loop_footer_branch
    %10 = sbr.rel target = $region3
  $region8: #{_lambda_.10} parent=0 // loop_exit
    _

// kernel: _lambda_.13
$region0: #{_lambda_.13}
  #allocation0 [shape = 'u32[]', space=smem, size = 0x4, offset = 0x4, fixed_abs, tag = 'smem constant byte address 0x4 - core index']
  #allocation1 [shape = 'u32[144,128]{1,0:T(1,128)}', space=vmem, size = 0x12000, scoped, tag = 'internal scratch']
  #allocation2 [shape = 'f32[32,128]{1,0:T(8,128)}', space=vmem, size = 0x4000, scoped, tag = 'scratch operand']
  %s0 = inlined_call_operand.vmem [shape: bf16[32,128], index: 0, kind: input, shape index: {}]
  %s1 = inlined_call_operand.vmem [shape: bf16[128,128], index: 1, kind: input, shape index: {}]
  %s2 = inlined_call_operand.vmem [shape: f32[1,128], index: 2, kind: input, shape index: {}]
  %s3 = inlined_call_operand.vmem [shape: bf16[32,128], index: 3, kind: input, shape index: {}]
  %s4 = inlined_call_operand.vmem [shape: f32[1,128], index: 4, kind: input, shape index: {}]
  %s5 = inlined_call_operand.vmem [shape: f32[1,128], index: 5, kind: input, shape index: {}]
  %s6 = inlined_call_operand.vmem [shape: bf16[32,128], index: 6, kind: output, shape index: {}]
  %s7 = sld [smem:[#allocation0]]
  $region42: #{_lambda_.13} parent=0
    _
  %s9 = ssub.s32 1, %s7
  %s10 = scalar_select 0, %s9, %s7
  // Predicated region
  $region2: #{_lambda_.13} parent=0 // pred_check
    _
  $region3: #{_lambda_.13} parent=0 // pred_check_branch
    %12 = sbr.rel (0) target = $region5
  $region4: #{_lambda_.13} parent=0 // pred_region
    _
  $region5: #{_lambda_.13} parent=0 // pred_fallthru
    _
  // Predicated region
  $region6: #{_lambda_.13} parent=0 // pred_check
    _
  $region7: #{_lambda_.13} parent=0 // pred_check_branch
    %14 = sbr.rel (0) target = $region9
  $region8: #{_lambda_.13} parent=0 // pred_region
    _
  $region9: #{_lambda_.13} parent=0 // pred_fallthru
    _
  // Predicated region
  $region10: #{_lambda_.13} parent=0 // pred_check
    _
  $region11: #{_lambda_.13} parent=0 // pred_check_branch
    %16 = sbr.rel (0) target = $region13
  $region12: #{_lambda_.13} parent=0 // pred_region
    _
  $region13: #{_lambda_.13} parent=0 // pred_fallthru
    _
  // Predicated region
  $region14: #{_lambda_.13} parent=0 // pred_check
    _
  $region15: #{_lambda_.13} parent=0 // pred_check_branch
    %18 = sbr.rel (0) target = $region17
  $region16: #{_lambda_.13} parent=0 // pred_region
    _
  $region17: #{_lambda_.13} parent=0 // pred_fallthru
    _
  // Predicated region
  $region18: #{_lambda_.13} parent=0 // pred_check
    _
  $region19: #{_lambda_.13} parent=0 // pred_check_branch
    %20 = sbr.rel (0) target = $region21
  $region20: #{_lambda_.13} parent=0 // pred_region
    _
  $region21: #{_lambda_.13} parent=0 // pred_fallthru
    _
  // Predicated region
  $region22: #{_lambda_.13} parent=0 // pred_check
    _
  $region23: #{_lambda_.13} parent=0 // pred_check_branch
    %22 = sbr.rel (0) target = $region25
  $region24: #{_lambda_.13} parent=0 // pred_region
    _
  $region25: #{_lambda_.13} parent=0 // pred_fallthru
    _
  %p24 = scmp.eq.s32.totalorder 0, 0
  // Predicated region
  $region26: #{_lambda_.13} parent=0 // pred_check
    %p25 = pneg %p24
  $region27: #{_lambda_.13} parent=0 // pred_check_branch
    %27 = sbr.rel (%p25) target = $region29
  $region28: #{_lambda_.13} parent=0 // pred_region
    %28 = vst [vmem:[#allocation2] sm:$0xff] 0.0
    %29 = vst [vmem:[#allocation2 + $0x8] sm:$0xff] 0.0
    %30 = vst [vmem:[#allocation2 + $0x10] sm:$0xff] 0.0
    %31 = vst [vmem:[#allocation2 + $0x18] sm:$0xff] 0.0
  $region29: #{_lambda_.13} parent=0 // pred_fallthru
    _
  %v32 = vld [vmem:[#allocation2] sm:$0xff]
  %v33 = vld [vmem:[#allocation2 + $0x8] sm:$0xff]
  %v34 = vld [vmem:[#allocation2 + $0x10] sm:$0xff]
  %v35 = vld [vmem:[#allocation2 + $0x18] sm:$0xff]
  %v36 = vld [vmem:[%s0] sm:$0xf]
  %v37 = vld [vmem:[%s0 + $0x4] sm:$0xf]
  %v38 = vld [vmem:[%s0 + $0x8] sm:$0xf]
  %v39 = vld [vmem:[%s0 + $0xc] sm:$0xf]
  %v40 = vld [vmem:[%s1] sm:$0xf]
  %v41 = vld [vmem:[%s1 + $0x4] sm:$0xf]
  %v42 = vld [vmem:[%s1 + $0x8] sm:$0xf]
  %v43 = vld [vmem:[%s1 + $0xc] sm:$0xf]
  %v44 = vld [vmem:[%s1 + $0x10] sm:$0xf]
  %v45 = vld [vmem:[%s1 + $0x14] sm:$0xf]
  %v46 = vld [vmem:[%s1 + $0x18] sm:$0xf]
  %v47 = vld [vmem:[%s1 + $0x1c] sm:$0xf]
  %v48 = vld [vmem:[%s1 + $0x20] sm:$0xf]
  %v49 = vld [vmem:[%s1 + $0x24] sm:$0xf]
  %v50 = vld [vmem:[%s1 + $0x28] sm:$0xf]
  %v51 = vld [vmem:[%s1 + $0x2c] sm:$0xf]
  %v52 = vld [vmem:[%s1 + $0x30] sm:$0xf]
  %v53 = vld [vmem:[%s1 + $0x34] sm:$0xf]
  %v54 = vld [vmem:[%s1 + $0x38] sm:$0xf]
  %v55 = vld [vmem:[%s1 + $0x3c] sm:$0xf]
  %v60 = vunpack.c.l.b16 %v36
  %v61 = vunpack.c.l.b16 %v37
  %v62 = vunpack.c.l.b16 %v38
  %v63 = vunpack.c.l.b16 %v39
  %v64 = vpack.c.b16 %v61, %v60
  %v65 = vpack.c.b16 %v63, %v62
  %v84 = vunpack.c.l.b16 %v40
  %v85 = vunpack.c.l.b16 %v41
  %v86 = vunpack.c.l.b16 %v42
  %v87 = vunpack.c.l.b16 %v43
  %v88 = vunpack.c.l.b16 %v44
  %v89 = vunpack.c.l.b16 %v45
  %v90 = vunpack.c.l.b16 %v46
  %v91 = vunpack.c.l.b16 %v47
  %v92 = vunpack.c.l.b16 %v48
  %v93 = vunpack.c.l.b16 %v49
  %v94 = vunpack.c.l.b16 %v50
  %v95 = vunpack.c.l.b16 %v51
  %v96 = vunpack.c.l.b16 %v52
  %v97 = vunpack.c.l.b16 %v53
  %v98 = vunpack.c.l.b16 %v54
  %v99 = vunpack.c.l.b16 %v55
  %v100 = vpack.c.b16 %v85, %v84
  %v101 = vpack.c.b16 %v87, %v86
  %v102 = vpack.c.b16 %v89, %v88
  %v103 = vpack.c.b16 %v91, %v90
  %v104 = vpack.c.b16 %v93, %v92
  %v105 = vpack.c.b16 %v95, %v94
  %v106 = vpack.c.b16 %v97, %v96
  %v107 = vpack.c.b16 %v99, %v98
  %116 = vmatprep.subr.bf16.mxu0 0
  %117 = vmatpush1.bf16.msra.mxu0 %v100
  %118 = vmatprep.subr.bf16.mxu0 0
  %119 = vmatpush1.bf16.msra.mxu0 %v101
  %120 = vmatprep.subr.bf16.mxu0 0
  %121 = vmatpush1.bf16.msra.mxu0 %v102
  %122 = vmatprep.subr.bf16.mxu0 0
  %123 = vmatpush1.bf16.msra.mxu0 %v103
  %124 = vmatprep.subr.bf16.mxu0 0
  %125 = vmatpush1.bf16.msra.mxu0 %v104
  %126 = vmatprep.subr.bf16.mxu0 0
  %127 = vmatpush1.bf16.msra.mxu0 %v105
  %128 = vmatprep.subr.bf16.mxu0 0
  %129 = vmatpush1.bf16.msra.mxu0 %v106
  %130 = vmatprep.subr.bf16.mxu0 0
  %131 = vmatpush1.bf16.msra.mxu0 %v107
  %132 = vmatprep.subr.bf16.mxu0 0
  %133 = vmatpush1.bf16.msra.mxu0 0
  %134 = vmatprep.subr.bf16.mxu0 0
  %135 = vmatpush1.bf16.msra.mxu0 0
  %136 = vmatprep.subr.bf16.mxu0 0
  %137 = vmatpush1.bf16.msra.mxu0 0
  %138 = vmatprep.subr.bf16.mxu0 0
  %139 = vmatpush1.bf16.msra.mxu0 0
  %140 = vmatprep.subr.bf16.mxu0 0
  %141 = vmatpush1.bf16.msra.mxu0 0
  %142 = vmatprep.subr.bf16.mxu0 0
  %143 = vmatpush1.bf16.msra.mxu0 0
  %144 = vmatprep.subr.bf16.mxu0 0
  %145 = vmatpush1.bf16.msra.mxu0 0
  %146 = vmatprep.subr.bf16.mxu0 0
  %147 = vmatpush1.bf16.msra.mxu0 0
  %148 = vmatprep.mubr.bf16.mxu0 0
  %149 = vmatmul.mubr.bf16.gmra.mrb[0].mxu0 %v64
  %v150 = vpop.f32.mrb[0].mxu0
  %v151 = vadd.f32 0.0, %v150
  %v152 = vpop.f32.mrb[0].mxu0
  %v153 = vpop.f32.mrb[0].mxu0
  %v154 = vadd.f32 0.0, %v153
  %v155 = vpop.f32.mrb[0].mxu0
  %156 = vmatprep.mubr.bf16.mxu0 0
  %157 = vmatmul.mubr.bf16.gmra.mrb[0].mxu0 %v65
  %v158 = vpop.f32.mrb[0].mxu0
  %v159 = vadd.f32 0.0, %v158
  %v160 = vpop.f32.mrb[0].mxu0
  %v161 = vpop.f32.mrb[0].mxu0
  %v162 = vadd.f32 0.0, %v161
  %v163 = vpop.f32.mrb[0].mxu0
  %164 = vdwg.mxu0
  %v165 = vadd.f32 %v32, %v151
  %v166 = vadd.f32 %v33, %v154
  %v167 = vadd.f32 %v34, %v159
  %v168 = vadd.f32 %v35, %v162
  %169 = vst [vmem:[#allocation2] sm:$0xff] %v165
  %170 = vst [vmem:[#allocation2 + $0x8] sm:$0xff] %v166
  %171 = vst [vmem:[#allocation2 + $0x10] sm:$0xff] %v167
  %172 = vst [vmem:[#allocation2 + $0x18] sm:$0xff] %v168
  // Predicated region
  $region30: #{_lambda_.13} parent=0 // pred_check
    %p173 = pneg %p24
  $region31: #{_lambda_.13} parent=0 // pred_check_branch
    %175 = sbr.rel (%p173) target = $region33
  $region32: #{_lambda_.13} parent=0 // pred_region
    %v176 = vld [vmem:[#allocation2] sm:$0xff]
    %v177 = vld [vmem:[#allocation2 + $0x8] sm:$0xff]
    %v178 = vld [vmem:[#allocation2 + $0x10] sm:$0xff]
    %v179 = vld [vmem:[#allocation2 + $0x18] sm:$0xff]
    %v180 = vld [vmem:[%s2] sm:$0x1]
    %v182 = vlaneseq
    %v183 = vshrl.u32 %v182, 7
    %v184 = vsub.s32 0, %v183
    %v185 = vrot.slane %v180, %v184
    %v187 = vadd.f32 %v176, %v185
    %v188 = vadd.f32 %v177, %v185
    %v189 = vadd.f32 %v178, %v185
    %v190 = vadd.f32 %v179, %v185
    %v191 = vld [vmem:[%s3] sm:$0xf]
    %v192 = vld [vmem:[%s3 + $0x4] sm:$0xf]
    %v193 = vld [vmem:[%s3 + $0x8] sm:$0xf]
    %v194 = vld [vmem:[%s3 + $0xc] sm:$0xf]
    %v195 = vunpack.c.l.bf16 %v191
    %v196 = vunpack.c.l.bf16 %v192
    %v197 = vunpack.c.l.bf16 %v193
    %v198 = vunpack.c.l.bf16 %v194
    %v199 = vadd.f32 %v187, %v195
    %v200 = vadd.f32 %v188, %v196
    %v201 = vadd.f32 %v189, %v197
    %v202 = vadd.f32 %v190, %v198
    %203 = vadd.xlane.f32.xlu0 %v199
    %v204 = vpop.xlane.xlu0 %203
    %205 = vadd.xlane.f32.xlu0 %v200
    %v206 = vpop.xlane.xlu0 %205
    %207 = vadd.xlane.f32.xlu0 %v201
    %v208 = vpop.xlane.xlu0 %207
    %209 = vadd.xlane.f32.xlu0 %v202
    %v210 = vpop.xlane.xlu0 %209
    %v211 = vrcp.pop 128.0
    %v212 = vmul.f32 %v204, %v211
    %v213 = vmul.f32 %v206, %v211
    %v214 = vmul.f32 %v208, %v211
    %v215 = vmul.f32 %v210, %v211
    %v216 = vsub.f32 %v199, %v212
    %v217 = vsub.f32 %v200, %v213
    %v218 = vsub.f32 %v201, %v214
    %v219 = vsub.f32 %v202, %v215
    %v220 = vmul.f32 %v216, %v216
    %v221 = vmul.f32 %v217, %v217
    %v222 = vmul.f32 %v218, %v218
    %v223 = vmul.f32 %v219, %v219
    %224 = vadd.xlane.f32.xlu0 %v220
    %v225 = vpop.xlane.xlu0 %224
    %226 = vadd.xlane.f32.xlu0 %v221
    %v227 = vpop.xlane.xlu0 %226
    %228 = vadd.xlane.f32.xlu0 %v222
    %v229 = vpop.xlane.xlu0 %228
    %230 = vadd.xlane.f32.xlu0 %v223
    %v231 = vpop.xlane.xlu0 %230
    %v232 = vmul.f32 %v225, %v211
    %v233 = vmul.f32 %v227, %v211
    %v234 = vmul.f32 %v229, %v211
    %v235 = vmul.f32 %v231, %v211
    %v236 = vadd.f32 %v232, 1e-12
    %v237 = vadd.f32 %v233, 1e-12
    %v238 = vadd.f32 %v234, 1e-12
    %v239 = vadd.f32 %v235, 1e-12
    %v240 = vrsqrt.pop %v236
    %v241 = vrsqrt.pop %v237
    %v242 = vrsqrt.pop %v238
    %v243 = vrsqrt.pop %v239
    %v244 = vmul.f32 %v216, %v240
    %v245 = vmul.f32 %v217, %v241
    %v246 = vmul.f32 %v218, %v242
    %v247 = vmul.f32 %v219, %v243
    %v248 = vld [vmem:[%s4] sm:$0x1]
    %v250 = vlaneseq
    %v251 = vshrl.u32 %v250, 7
    %v252 = vsub.s32 0, %v251
    %v253 = vrot.slane %v248, %v252
    %v255 = vmul.f32 %v244, %v253
    %v256 = vmul.f32 %v245, %v253
    %v257 = vmul.f32 %v246, %v253
    %v258 = vmul.f32 %v247, %v253
    %v259 = vld [vmem:[%s5] sm:$0x1]
    %v261 = vlaneseq
    %v262 = vshrl.u32 %v261, 7
    %v263 = vsub.s32 0, %v262
    %v264 = vrot.slane %v259, %v263
    %v266 = vadd.f32 %v255, %v264
    %v267 = vadd.f32 %v256, %v264
    %v268 = vadd.f32 %v257, %v264
    %v269 = vadd.f32 %v258, %v264
    %v270 = vpack.c.bf16 %v267, %v266
    %v271 = vpack.c.bf16 %v269, %v268
    %v274 = vunpack.c.l.b16 %v270
    %v275 = vunpack.c.h.b16 %v270
    %v276 = vunpack.c.l.b16 %v271
    %v277 = vunpack.c.h.b16 %v271
    %v278 = vpack.c.b16 %v274, %v274
    %v279 = vpack.c.b16 %v275, %v275
    %v280 = vpack.c.b16 %v276, %v276
    %v281 = vpack.c.b16 %v277, %v277
    %286 = vst [vmem:[%s6] sm:$0xf] %v278
    %287 = vst [vmem:[%s6 + $0x4] sm:$0xf] %v279
    %288 = vst [vmem:[%s6 + $0x8] sm:$0xf] %v280
    %289 = vst [vmem:[%s6 + $0xc] sm:$0xf] %v281
  $region33: #{_lambda_.13} parent=0 // pred_fallthru
    _
  // Predicated region
  $region34: #{_lambda_.13} parent=0 // pred_check
    _
  $region35: #{_lambda_.13} parent=0 // pred_check_branch
    %291 = sbr.rel (0) target = $region37
  $region36: #{_lambda_.13} parent=0 // pred_region
    _
  $region37: #{_lambda_.13} parent=0 // pred_fallthru
    _
  // Predicated region
  $region38: #{_lambda_.13} parent=0 // pred_check
    _
  $region39: #{_lambda_.13} parent=0 // pred_check_branch
    %293 = sbr.rel (0) target = $region41
  $region40: #{_lambda_.13} parent=0 // pred_region
    _
  $region41: #{_lambda_.13} parent=0 // pred_fallthru
    _

// kernel: _lambda_.11
$region0: #{_lambda_.11}
  #allocation0 [shape = 'u32[]', space=smem, size = 0x4, offset = 0x4, fixed_abs, tag = 'smem constant byte address 0x4 - core index']
  #allocation1 [shape = 'u32[144,128]{1,0:T(1,128)}', space=vmem, size = 0x12000, scoped, tag = 'internal scratch']
  #allocation2 [shape = 'f32[32,384]{1,0:T(8,128)}', space=vmem, size = 0xc000, scoped, tag = 'scratch operand']
  %s0 = inlined_call_operand.vmem [shape: bf16[32,128], index: 0, kind: input, shape index: {}]
  %s1 = inlined_call_operand.vmem [shape: bf16[128,384], index: 1, kind: input, shape index: {}]
  %s2 = inlined_call_operand.vmem [shape: f32[1,384], index: 2, kind: input, shape index: {}]
  %s3 = inlined_call_operand.vmem [shape: bf16[32,384], index: 3, kind: output, shape index: {}]
  %s4 = sld [smem:[#allocation0]]
  $region30: #{_lambda_.11} parent=0
    _
  %s6 = ssub.s32 1, %s4
  %s7 = scalar_select 0, %s6, %s4
  // Predicated region
  $region2: #{_lambda_.11} parent=0 // pred_check
    _
  $region3: #{_lambda_.11} parent=0 // pred_check_branch
    %9 = sbr.rel (0) target = $region5
  $region4: #{_lambda_.11} parent=0 // pred_region
    _
  $region5: #{_lambda_.11} parent=0 // pred_fallthru
    _
  // Predicated region
  $region6: #{_lambda_.11} parent=0 // pred_check
    _
  $region7: #{_lambda_.11} parent=0 // pred_check_branch
    %11 = sbr.rel (0) target = $region9
  $region8: #{_lambda_.11} parent=0 // pred_region
    _
  $region9: #{_lambda_.11} parent=0 // pred_fallthru
    _
  // Predicated region
  $region10: #{_lambda_.11} parent=0 // pred_check
    _
  $region11: #{_lambda_.11} parent=0 // pred_check_branch
    %13 = sbr.rel (0) target = $region13
  $region12: #{_lambda_.11} parent=0 // pred_region
    _
  $region13: #{_lambda_.11} parent=0 // pred_fallthru
    _
  %p15 = scmp.eq.s32.totalorder 0, 0
  // Predicated region
  $region14: #{_lambda_.11} parent=0 // pred_check
    %p16 = pneg %p15
  $region15: #{_lambda_.11} parent=0 // pred_check_branch
    %18 = sbr.rel (%p16) target = $region17
  $region16: #{_lambda_.11} parent=0 // pred_region
    %19 = vst [vmem:[#allocation2] sm:$0xff] 0.0
    %20 = vst [vmem:[#allocation2 + $0x8] sm:$0xff] 0.0
    %21 = vst [vmem:[#allocation2 + $0x10] sm:$0xff] 0.0
    %22 = vst [vmem:[#allocation2 + $0x18] sm:$0xff] 0.0
    %23 = vst [vmem:[#allocation2 + $0x20] sm:$0xff] 0.0
    %24 = vst [vmem:[#allocation2 + $0x28] sm:$0xff] 0.0
    %25 = vst [vmem:[#allocation2 + $0x30] sm:$0xff] 0.0
    %26 = vst [vmem:[#allocation2 + $0x38] sm:$0xff] 0.0
    %27 = vst [vmem:[#allocation2 + $0x40] sm:$0xff] 0.0
    %28 = vst [vmem:[#allocation2 + $0x48] sm:$0xff] 0.0
    %29 = vst [vmem:[#allocation2 + $0x50] sm:$0xff] 0.0
    %30 = vst [vmem:[#allocation2 + $0x58] sm:$0xff] 0.0
  $region17: #{_lambda_.11} parent=0 // pred_fallthru
    _
  %v31 = vld [vmem:[#allocation2] sm:$0xff]
  %v32 = vld [vmem:[#allocation2 + $0x8] sm:$0xff]
  %v33 = vld [vmem:[#allocation2 + $0x10] sm:$0xff]
  %v34 = vld [vmem:[#allocation2 + $0x18] sm:$0xff]
  %v35 = vld [vmem:[#allocation2 + $0x20] sm:$0xff]
  %v36 = vld [vmem:[#allocation2 + $0x28] sm:$0xff]
  %v37 = vld [vmem:[#allocation2 + $0x30] sm:$0xff]
  %v38 = vld [vmem:[#allocation2 + $0x38] sm:$0xff]
  %v39 = vld [vmem:[#allocation2 + $0x40] sm:$0xff]
  %v40 = vld [vmem:[#allocation2 + $0x48] sm:$0xff]
  %v41 = vld [vmem:[#allocation2 + $0x50] sm:$0xff]
  %v42 = vld [vmem:[#allocation2 + $0x58] sm:$0xff]
  %v43 = vld [vmem:[%s0] sm:$0xf]
  %v44 = vld [vmem:[%s0 + $0x4] sm:$0xf]
  %v45 = vld [vmem:[%s0 + $0x8] sm:$0xf]
  %v46 = vld [vmem:[%s0 + $0xc] sm:$0xf]
  %v47 = vld [vmem:[%s1] sm:$0xff]
  %v48 = vld [vmem:[%s1 + $0x8] sm:$0xf]
  %v49 = vld [vmem:[%s1 + $0xc] sm:$0xff]
  %v50 = vld [vmem:[%s1 + $0x14] sm:$0xf]
  %v51 = vld [vmem:[%s1 + $0x18] sm:$0xff]
  %v52 = vld [vmem:[%s1 + $0x20] sm:$0xf]
  %v53 = vld [vmem:[%s1 + $0x24] sm:$0xff]
  %v54 = vld [vmem:[%s1 + $0x2c] sm:$0xf]
  %v55 = vld [vmem:[%s1 + $0x30] sm:$0xff]
  %v56 = vld [vmem:[%s1 + $0x38] sm:$0xf]
  %v57 = vld [vmem:[%s1 + $0x3c] sm:$0xff]
  %v58 = vld [vmem:[%s1 + $0x44] sm:$0xf]
  %v59 = vld [vmem:[%s1 + $0x48] sm:$0xff]
  %v60 = vld [vmem:[%s1 + $0x50] sm:$0xf]
  %v61 = vld [vmem:[%s1 + $0x54] sm:$0xff]
  %v62 = vld [vmem:[%s1 + $0x5c] sm:$0xf]
  %v63 = vld [vmem:[%s1 + $0x60] sm:$0xff]
  %v64 = vld [vmem:[%s1 + $0x68] sm:$0xf]
  %v65 = vld [vmem:[%s1 + $0x6c] sm:$0xff]
  %v66 = vld [vmem:[%s1 + $0x74] sm:$0xf]
  %v67 = vld [vmem:[%s1 + $0x78] sm:$0xff]
  %v68 = vld [vmem:[%s1 + $0x80] sm:$0xf]
  %v69 = vld [vmem:[%s1 + $0x84] sm:$0xff]
  %v70 = vld [vmem:[%s1 + $0x8c] sm:$0xf]
  %v71 = vld [vmem:[%s1 + $0x90] sm:$0xff]
  %v72 = vld [vmem:[%s1 + $0x98] sm:$0xf]
  %v73 = vld [vmem:[%s1 + $0x9c] sm:$0xff]
  %v74 = vld [vmem:[%s1 + $0xa4] sm:$0xf]
  %v75 = vld [vmem:[%s1 + $0xa8] sm:$0xff]
  %v76 = vld [vmem:[%s1 + $0xb0] sm:$0xf]
  %v77 = vld [vmem:[%s1 + $0xb4] sm:$0xff]
  %v78 = vld [vmem:[%s1 + $0xbc] sm:$0xf]
  %v83 = vunpack.c.l.b16 %v43
  %v84 = vunpack.c.l.b16 %v44
  %v85 = vunpack.c.l.b16 %v45
  %v86 = vunpack.c.l.b16 %v46
  %v87 = vpack.c.b16 %v84, %v83
  %v88 = vpack.c.b16 %v86, %v85
  %v123 = vunpack.c.l.b16 %v47
  %v124 = vunpack.c.h.b16 %v47
  %v125 = vunpack.c.l.b16 %v48
  %v126 = vunpack.c.l.b16 %v49
  %v127 = vunpack.c.h.b16 %v49
  %v128 = vunpack.c.l.b16 %v50
  %v129 = vunpack.c.l.b16 %v51
  %v130 = vunpack.c.h.b16 %v51
  %v131 = vunpack.c.l.b16 %v52
  %v132 = vunpack.c.l.b16 %v53
  %v133 = vunpack.c.h.b16 %v53
  %v134 = vunpack.c.l.b16 %v54
  %v135 = vunpack.c.l.b16 %v55
  %v136 = vunpack.c.h.b16 %v55
  %v137 = vunpack.c.l.b16 %v56
  %v138 = vunpack.c.l.b16 %v57
  %v139 = vunpack.c.h.b16 %v57
  %v140 = vunpack.c.l.b16 %v58
  %v141 = vunpack.c.l.b16 %v59
  %v142 = vunpack.c.h.b16 %v59
  %v143 = vunpack.c.l.b16 %v60
  %v144 = vunpack.c.l.b16 %v61
  %v145 = vunpack.c.h.b16 %v61
  %v146 = vunpack.c.l.b16 %v62
  %v147 = vunpack.c.l.b16 %v63
  %v148 = vunpack.c.h.b16 %v63
  %v149 = vunpack.c.l.b16 %v64
  %v150 = vunpack.c.l.b16 %v65
  %v151 = vunpack.c.h.b16 %v65
  %v152 = vunpack.c.l.b16 %v66
  %v153 = vunpack.c.l.b16 %v67
  %v154 = vunpack.c.h.b16 %v67
  %v155 = vunpack.c.l.b16 %v68
  %v156 = vunpack.c.l.b16 %v69
  %v157 = vunpack.c.h.b16 %v69
  %v158 = vunpack.c.l.b16 %v70
  %v159 = vunpack.c.l.b16 %v71
  %v160 = vunpack.c.h.b16 %v71
  %v161 = vunpack.c.l.b16 %v72
  %v162 = vunpack.c.l.b16 %v73
  %v163 = vunpack.c.h.b16 %v73
  %v164 = vunpack.c.l.b16 %v74
  %v165 = vunpack.c.l.b16 %v75
  %v166 = vunpack.c.h.b16 %v75
  %v167 = vunpack.c.l.b16 %v76
  %v168 = vunpack.c.l.b16 %v77
  %v169 = vunpack.c.h.b16 %v77
  %v170 = vunpack.c.l.b16 %v78
  %v171 = vpack.c.b16 %v126, %v123
  %v172 = vpack.c.b16 %v127, %v124
  %v173 = vpack.c.b16 %v128, %v125
  %v174 = vpack.c.b16 %v132, %v129
  %v175 = vpack.c.b16 %v133, %v130
  %v176 = vpack.c.b16 %v134, %v131
  %v177 = vpack.c.b16 %v138, %v135
  %v178 = vpack.c.b16 %v139, %v136
  %v179 = vpack.c.b16 %v140, %v137
  %v180 = vpack.c.b16 %v144, %v141
  %v181 = vpack.c.b16 %v145, %v142
  %v182 = vpack.c.b16 %v146, %v143
  %v183 = vpack.c.b16 %v150, %v147
  %v184 = vpack.c.b16 %v151, %v148
  %v185 = vpack.c.b16 %v152, %v149
  %v186 = vpack.c.b16 %v156, %v153
  %v187 = vpack.c.b16 %v157, %v154
  %v188 = vpack.c.b16 %v158, %v155
  %v189 = vpack.c.b16 %v162, %v159
  %v190 = vpack.c.b16 %v163, %v160
  %v191 = vpack.c.b16 %v164, %v161
  %v192 = vpack.c.b16 %v168, %v165
  %v193 = vpack.c.b16 %v169, %v166
  %v194 = vpack.c.b16 %v170, %v167
  %219 = vmatprep.subr.bf16.mxu0 %v172
  %220 = vmatpush1.bf16.msra.mxu0 %v171
  %221 = vmatprep.subr.bf16.mxu0 %v175
  %222 = vmatpush1.bf16.msra.mxu0 %v174
  %223 = vmatprep.subr.bf16.mxu0 %v178
  %224 = vmatpush1.bf16.msra.mxu0 %v177
  %225 = vmatprep.subr.bf16.mxu0 %v181
  %226 = vmatpush1.bf16.msra.mxu0 %v180
  %227 = vmatprep.subr.bf16.mxu0 %v184
  %228 = vmatpush1.bf16.msra.mxu0 %v183
  %229 = vmatprep.subr.bf16.mxu0 %v187
  %230 = vmatpush1.bf16.msra.mxu0 %v186
  %231 = vmatprep.subr.bf16.mxu0 %v190
  %232 = vmatpush1.bf16.msra.mxu0 %v189
  %233 = vmatprep.subr.bf16.mxu0 %v193
  %234 = vmatpush1.bf16.msra.mxu0 %v192
  %235 = vmatprep.subr.bf16.mxu0 0
  %236 = vmatpush1.bf16.msra.mxu0 0
  %237 = vmatprep.subr.bf16.mxu0 0
  %238 = vmatpush1.bf16.msra.mxu0 0
  %239 = vmatprep.subr.bf16.mxu0 0
  %240 = vmatpush1.bf16.msra.mxu0 0
  %241 = vmatprep.subr.bf16.mxu0 0
  %242 = vmatpush1.bf16.msra.mxu0 0
  %243 = vmatprep.subr.bf16.mxu0 0
  %244 = vmatpush1.bf16.msra.mxu0 0
  %245 = vmatprep.subr.bf16.mxu0 0
  %246 = vmatpush1.bf16.msra.mxu0 0
  %247 = vmatprep.subr.bf16.mxu0 0
  %248 = vmatpush1.bf16.msra.mxu0 0
  %249 = vmatprep.subr.bf16.mxu0 0
  %250 = vmatpush1.bf16.msra.mxu0 0
  %251 = vmatprep.mubr.bf16.mxu0 0
  %252 = vmatmul.mubr.bf16.gmra.mrb[0].mxu0 %v87
  %v253 = vpop.f32.mrb[0].mxu0
  %v254 = vadd.f32 0.0, %v253
  %v255 = vpop.f32.mrb[0].mxu0
  %v256 = vadd.f32 0.0, %v255
  %v257 = vpop.f32.mrb[0].mxu0
  %v258 = vadd.f32 0.0, %v257
  %v259 = vpop.f32.mrb[0].mxu0
  %v260 = vadd.f32 0.0, %v259
  %261 = vmatprep.mubr.bf16.mxu0 0
  %262 = vmatmul.mubr.bf16.gmra.mrb[0].mxu0 %v88
  %v263 = vpop.f32.mrb[0].mxu0
  %v264 = vadd.f32 0.0, %v263
  %v265 = vpop.f32.mrb[0].mxu0
  %v266 = vadd.f32 0.0, %v265
  %v267 = vpop.f32.mrb[0].mxu0
  %v268 = vadd.f32 0.0, %v267
  %v269 = vpop.f32.mrb[0].mxu0
  %v270 = vadd.f32 0.0, %v269
  %271 = vdwg.mxu0
  %272 = vmatprep.subr.bf16.mxu0 0
  %273 = vmatpush1.bf16.msra.mxu0 %v173
  %274 = vmatprep.subr.bf16.mxu0 0
  %275 = vmatpush1.bf16.msra.mxu0 %v176
  %276 = vmatprep.subr.bf16.mxu0 0
  %277 = vmatpush1.bf16.msra.mxu0 %v179
  %278 = vmatprep.subr.bf16.mxu0 0
  %279 = vmatpush1.bf16.msra.mxu0 %v182
  %280 = vmatprep.subr.bf16.mxu0 0
  %281 = vmatpush1.bf16.msra.mxu0 %v185
  %282 = vmatprep.subr.bf16.mxu0 0
  %283 = vmatpush1.bf16.msra.mxu0 %v188
  %284 = vmatprep.subr.bf16.mxu0 0
  %285 = vmatpush1.bf16.msra.mxu0 %v191
  %286 = vmatprep.subr.bf16.mxu0 0
  %287 = vmatpush1.bf16.msra.mxu0 %v194
  %288 = vmatprep.subr.bf16.mxu0 0
  %289 = vmatpush1.bf16.msra.mxu0 0
  %290 = vmatprep.subr.bf16.mxu0 0
  %291 = vmatpush1.bf16.msra.mxu0 0
  %292 = vmatprep.subr.bf16.mxu0 0
  %293 = vmatpush1.bf16.msra.mxu0 0
  %294 = vmatprep.subr.bf16.mxu0 0
  %295 = vmatpush1.bf16.msra.mxu0 0
  %296 = vmatprep.subr.bf16.mxu0 0
  %297 = vmatpush1.bf16.msra.mxu0 0
  %298 = vmatprep.subr.bf16.mxu0 0
  %299 = vmatpush1.bf16.msra.mxu0 0
  %300 = vmatprep.subr.bf16.mxu0 0
  %301 = vmatpush1.bf16.msra.mxu0 0
  %302 = vmatprep.subr.bf16.mxu0 0
  %303 = vmatpush1.bf16.msra.mxu0 0
  %304 = vmatprep.mubr.bf16.mxu0 0
  %305 = vmatmul.mubr.bf16.gmra.mrb[0].mxu0 %v87
  %v306 = vpop.f32.mrb[0].mxu0
  %v307 = vadd.f32 0.0, %v306
  %v308 = vpop.f32.mrb[0].mxu0
  %v309 = vpop.f32.mrb[0].mxu0
  %v310 = vadd.f32 0.0, %v309
  %v311 = vpop.f32.mrb[0].mxu0
  %312 = vmatprep.mubr.bf16.mxu0 0
  %313 = vmatmul.mubr.bf16.gmra.mrb[0].mxu0 %v88
  %v314 = vpop.f32.mrb[0].mxu0
  %v315 = vadd.f32 0.0, %v314
  %v316 = vpop.f32.mrb[0].mxu0
  %v317 = vpop.f32.mrb[0].mxu0
  %v318 = vadd.f32 0.0, %v317
  %v319 = vpop.f32.mrb[0].mxu0
  %320 = vdwg.mxu0
  %v321 = vadd.f32 %v31, %v254
  %v322 = vadd.f32 %v32, %v256
  %v323 = vadd.f32 %v33, %v307
  %v324 = vadd.f32 %v34, %v258
  %v325 = vadd.f32 %v35, %v260
  %v326 = vadd.f32 %v36, %v310
  %v327 = vadd.f32 %v37, %v264
  %v328 = vadd.f32 %v38, %v266
  %v329 = vadd.f32 %v39, %v315
  %v330 = vadd.f32 %v40, %v268
  %v331 = vadd.f32 %v41, %v270
  %v332 = vadd.f32 %v42, %v318
  %333 = vst [vmem:[#allocation2] sm:$0xff] %v321
  %334 = vst [vmem:[#allocation2 + $0x8] sm:$0xff] %v322
  %335 = vst [vmem:[#allocation2 + $0x10] sm:$0xff] %v323
  %336 = vst [vmem:[#allocation2 + $0x18] sm:$0xff] %v324
  %337 = vst [vmem:[#allocation2 + $0x20] sm:$0xff] %v325
  %338 = vst [vmem:[#allocation2 + $0x28] sm:$0xff] %v326
  %339 = vst [vmem:[#allocation2 + $0x30] sm:$0xff] %v327
  %340 = vst [vmem:[#allocation2 + $0x38] sm:$0xff] %v328
  %341 = vst [vmem:[#allocation2 + $0x40] sm:$0xff] %v329
  %342 = vst [vmem:[#allocation2 + $0x48] sm:$0xff] %v330
  %343 = vst [vmem:[#allocation2 + $0x50] sm:$0xff] %v331
  %344 = vst [vmem:[#allocation2 + $0x58] sm:$0xff] %v332
  // Predicated region
  $region18: #{_lambda_.11} parent=0 // pred_check
    %p345 = pneg %p15
  $region19: #{_lambda_.11} parent=0 // pred_check_branch
    %347 = sbr.rel (%p345) target = $region21
  $region20: #{_lambda_.11} parent=0 // pred_region
    %v348 = vld [vmem:[#allocation2] sm:$0xff]
    %v349 = vld [vmem:[#allocation2 + $0x8] sm:$0xff]
    %v350 = vld [vmem:[#allocation2 + $0x10] sm:$0xff]
    %v351 = vld [vmem:[#allocation2 + $0x18] sm:$0xff]
    %v352 = vld [vmem:[#allocation2 + $0x20] sm:$0xff]
    %v353 = vld [vmem:[#allocation2 + $0x28] sm:$0xff]
    %v354 = vld [vmem:[#allocation2 + $0x30] sm:$0xff]
    %v355 = vld [vmem:[#allocation2 + $0x38] sm:$0xff]
    %v356 = vld [vmem:[#allocation2 + $0x40] sm:$0xff]
    %v357 = vld [vmem:[#allocation2 + $0x48] sm:$0xff]
    %v358 = vld [vmem:[#allocation2 + $0x50] sm:$0xff]
    %v359 = vld [vmem:[#allocation2 + $0x58] sm:$0xff]
    %v360 = vld [vmem:[%s2] sm:$0x7]
    %v362 = vlaneseq
    %v363 = vshrl.u32 %v362, 7
    %v364 = vsub.s32 0, %v363
    %v365 = vrot.slane %v360, %v364
    %v366 = vlaneseq
    %v367 = vshrl.u32 %v366, 7
    %v368 = vsub.s32 1, %v367
    %v369 = vrot.slane %v360, %v368
    %v370 = vlaneseq
    %v371 = vshrl.u32 %v370, 7
    %v372 = vsub.s32 2, %v371
    %v373 = vrot.slane %v360, %v372
    %v377 = vadd.f32 %v348, %v365
    %v378 = vadd.f32 %v349, %v369
    %v379 = vadd.f32 %v350, %v373
    %v380 = vadd.f32 %v351, %v365
    %v381 = vadd.f32 %v352, %v369
    %v382 = vadd.f32 %v353, %v373
    %v383 = vadd.f32 %v354, %v365
    %v384 = vadd.f32 %v355, %v369
    %v385 = vadd.f32 %v356, %v373
    %v386 = vadd.f32 %v357, %v365
    %v387 = vadd.f32 %v358, %v369
    %v388 = vadd.f32 %v359, %v373
    %v389 = vpack.c.bf16 %v380, %v377
    %v390 = vpack.c.bf16 %v381, %v378
    %v391 = vpack.c.bf16 %v382, %v379
    %v392 = vpack.c.bf16 %v386, %v383
    %v393 = vpack.c.bf16 %v387, %v384
    %v394 = vpack.c.bf16 %v388, %v385
    %v401 = vunpack.c.l.b16 %v389
    %v402 = vunpack.c.l.b16 %v390
    %v403 = vunpack.c.l.b16 %v391
    %v404 = vunpack.c.h.b16 %v389
    %v405 = vunpack.c.h.b16 %v390
    %v406 = vunpack.c.h.b16 %v391
    %v407 = vunpack.c.l.b16 %v392
    %v408 = vunpack.c.l.b16 %v393
    %v409 = vunpack.c.l.b16 %v394
    %v410 = vunpack.c.h.b16 %v392
    %v411 = vunpack.c.h.b16 %v393
    %v412 = vunpack.c.h.b16 %v394
    %v413 = vpack.c.b16 %v402, %v401
    %v414 = vpack.c.b16 %v403, %v403
    %v415 = vpack.c.b16 %v405, %v404
    %v416 = vpack.c.b16 %v406, %v406
    %v417 = vpack.c.b16 %v408, %v407
    %v418 = vpack.c.b16 %v409, %v409
    %v419 = vpack.c.b16 %v411, %v410
    %v420 = vpack.c.b16 %v412, %v412
    %429 = vst [vmem:[%s3] sm:$0xff] %v413
    %430 = vst [vmem:[%s3 + $0x8] sm:$0xf] %v414
    %431 = vst [vmem:[%s3 + $0xc] sm:$0xff] %v415
    %432 = vst [vmem:[%s3 + $0x14] sm:$0xf] %v416
    %433 = vst [vmem:[%s3 + $0x18] sm:$0xff] %v417
    %434 = vst [vmem:[%s3 + $0x20] sm:$0xf] %v418
    %435 = vst [vmem:[%s3 + $0x24] sm:$0xff] %v419
    %436 = vst [vmem:[%s3 + $0x2c] sm:$0xf] %v420
  $region21: #{_lambda_.11} parent=0 // pred_fallthru
    _
  // Predicated region
  $region22: #{_lambda_.11} parent=0 // pred_check
    _
  $region23: #{_lambda_.11} parent=0 // pred_check_branch
    %438 = sbr.rel (0) target = $region25
  $region24: #{_lambda_.11} parent=0 // pred_region
    _
  $region25: #{_lambda_.11} parent=0 // pred_fallthru
    _
  // Predicated region
  $region26: #{_lambda_.11} parent=0 // pred_check
    _
  $region27: #{_lambda_.11} parent=0 // pred_check_branch
    %440 = sbr.rel (0) target = $region29
  $region28: #{_lambda_.11} parent=0 // pred_region
    _
  $region29: #{_lambda_.11} parent=0 // pred_fallthru
    _

// kernel: _lambda_.12
$region0: #{_lambda_.12}
  #allocation0 [shape = 'u32[]', space=smem, size = 0x4, offset = 0x4, fixed_abs, tag = 'smem constant byte address 0x4 - core index']
  #allocation1 [shape = 'u32[144,128]{1,0:T(1,128)}', space=vmem, size = 0x12000, scoped, tag = 'internal scratch']
  %s0 = inlined_call_operand.vmem [shape: bf16[4,8,384], index: 0, kind: input, shape index: {}, may-alias: {0,1,2}]
  %s1 = inlined_call_operand.vmem [shape: bf16[4,8,384], index: 1, kind: input, shape index: {}, may-alias: {0,1,2}]
  %s2 = inlined_call_operand.vmem [shape: bf16[4,8,384], index: 2, kind: input, shape index: {}, may-alias: {0,1,2}]
  %s3 = inlined_call_operand.vmem [shape: f32[4,1,8], index: 3, kind: input, shape index: {}]
  %s4 = inlined_call_operand.vmem [shape: bf16[4,8,128], index: 4, kind: output, shape index: {}]
  %s5 = sld [smem:[#allocation0]]
  $region49: #{_lambda_.12} parent=0
    _
  %s7 = ssub.s32 1, %s5
  %s8 = scalar_select 0, %s7, %s5
  loop: start=0, step=1, limit=6
  $region2: #{_lambda_.12} parent=0 // loop_pre_header
    _
  $region3: #{_lambda_.12} parent=0 // loop_header
    %s10 = sphi 0, %s14
    %p11 = scmp.ge.s32.totalorder %s10, 6
    %s17 = sphi 0, %s29
    %s18 = sphi 0, %s25
    %s19 = sphi 0, %s17
    %s20 = sphi 0, %s18
    %s21 = sphi 0, %s19
    %s22 = sphi 0, %s20
    %s34 = sphi 0, %s36
    %s37 = sphi 0, %s34
    %s38 = sphi 0, %s37
    %s54 = sphi 0, %s38
    %s60 = sphi 0, %s62
    %s63 = sphi 0, %s60
    %s64 = sphi 0, %s63
    %s80 = sphi 0, %s64
    %s86 = sphi 0, %s88
    %s89 = sphi 0, %s86
    %s90 = sphi 0, %s89
    %s106 = sphi 0, %s90
    %s112 = sphi 0, %s114
    %s115 = sphi 0, %s112
    %s116 = sphi 0, %s115
    %s132 = sphi 0, %s116
    %s140 = sphi 0, %s142
    %s143 = sphi 0, %s140
    %s144 = sphi 0, %s143
    %s160 = sphi 0, %s144
  $region4: #{_lambda_.12} parent=0 // loop_header_branch
    %13 = sbr.rel (%p11) target = $region8
  $region5: #{_lambda_.12} parent=0 // loop_body
    %s15 = ssub.s32 %s10, 1
    %s16 = ssub.s32 %s10, 2
    %s23 = sadd.s32 1, %s18
    %p24 = scmp.ge.s32.totalorder %s23, 1
    %s25 = scalar_select %p24, 0, %s23
    %s26 = sadd.s32 1, %s17
    %s27 = scalar_select %p24, %s26, %s17
    %p28 = scmp.ge.s32.totalorder %s27, 4
    %s29 = scalar_select %p28, 0, %s27
    %s30 = ssub.s32 %s17, %s29
    %s31 = ssub.s32 %s18, %s25
    %s32 = sor.u32 %s30, %s31
    %p33 = scmp.eq.s32.totalorder %s32, 0
    %s35 = sadd.s32 %s34, 1
    %s36 = scalar_select %p33, %s34, %s35
    %p39 = pneg %p33
    %p40 = scmp.eq.s32.totalorder %s10, 3
    %p41 = por %p39, %p40
    %p42 = scmp.ne.s32.totalorder %s34, %s37
    %p43 = scmp.eq.s32.totalorder %s10, 0
    %p44 = por %p42, %p43
    %p45 = scmp.ne.s32.totalorder %s34, %s37
    %p46 = scmp.eq.s32.totalorder %s15, 3
    %p47 = por %p45, %p46
    %p48 = scmp.ne.s32.totalorder %s37, %s38
    %p49 = scmp.eq.s32.totalorder %s15, 0
    %p50 = por %p48, %p49
    %p51 = scmp.ne.s32.totalorder %s37, %s38
    %p52 = scmp.eq.s32.totalorder %s16, 3
    %p53 = por %p51, %p52
    %p55 = scmp.ne.s32.totalorder %s38, %s54
    %p56 = scmp.eq.s32.totalorder %s16, 0
    %p57 = por %p55, %p56
    %s58 = ssub.s32 %s17, %s29
    %p59 = scmp.eq.s32.totalorder %s58, 0
    %s61 = sadd.s32 %s60, 1
    %s62 = scalar_select %p59, %s60, %s61
    %p65 = pneg %p59
    %p66 = scmp.eq.s32.totalorder %s10, 3
    %p67 = por %p65, %p66
    %p68 = scmp.ne.s32.totalorder %s60, %s63
    %p69 = scmp.eq.s32.totalorder %s10, 0
    %p70 = por %p68, %p69
    %p71 = scmp.ne.s32.totalorder %s60, %s63
    %p72 = scmp.eq.s32.totalorder %s15, 3
    %p73 = por %p71, %p72
    %p74 = scmp.ne.s32.totalorder %s63, %s64
    %p75 = scmp.eq.s32.totalorder %s15, 0
    %p76 = por %p74, %p75
    %p77 = scmp.ne.s32.totalorder %s63, %s64
    %p78 = scmp.eq.s32.totalorder %s16, 3
    %p79 = por %p77, %p78
    %p81 = scmp.ne.s32.totalorder %s64, %s80
    %p82 = scmp.eq.s32.totalorder %s16, 0
    %p83 = por %p81, %p82
    %s84 = ssub.s32 %s17, %s29
    %p85 = scmp.eq.s32.totalorder %s84, 0
    %s87 = sadd.s32 %s86, 1
    %s88 = scalar_select %p85, %s86, %s87
    %p91 = pneg %p85
    %p92 = scmp.eq.s32.totalorder %s10, 3
    %p93 = por %p91, %p92
    %p94 = scmp.ne.s32.totalorder %s86, %s89
    %p95 = scmp.eq.s32.totalorder %s10, 0
    %p96 = por %p94, %p95
    %p97 = scmp.ne.s32.totalorder %s86, %s89
    %p98 = scmp.eq.s32.totalorder %s15, 3
    %p99 = por %p97, %p98
    %p100 = scmp.ne.s32.totalorder %s89, %s90
    %p101 = scmp.eq.s32.totalorder %s15, 0
    %p102 = por %p100, %p101
    %p103 = scmp.ne.s32.totalorder %s89, %s90
    %p104 = scmp.eq.s32.totalorder %s16, 3
    %p105 = por %p103, %p104
    %p107 = scmp.ne.s32.totalorder %s90, %s106
    %p108 = scmp.eq.s32.totalorder %s16, 0
    %p109 = por %p107, %p108
    %s110 = ssub.s32 %s17, %s29
    %p111 = scmp.eq.s32.totalorder %s110, 0
    %s113 = sadd.s32 %s112, 1
    %s114 = scalar_select %p111, %s112, %s113
    %p117 = pneg %p111
    %p118 = scmp.eq.s32.totalorder %s10, 3
    %p119 = por %p117, %p118
    %p120 = scmp.ne.s32.totalorder %s112, %s115
    %p121 = scmp.eq.s32.totalorder %s10, 0
    %p122 = por %p120, %p121
    %p123 = scmp.ne.s32.totalorder %s112, %s115
    %p124 = scmp.eq.s32.totalorder %s15, 3
    %p125 = por %p123, %p124
    %p126 = scmp.ne.s32.totalorder %s115, %s116
    %p127 = scmp.eq.s32.totalorder %s15, 0
    %p128 = por %p126, %p127
    %p129 = scmp.ne.s32.totalorder %s115, %s116
    %p130 = scmp.eq.s32.totalorder %s16, 3
    %p131 = por %p129, %p130
    %p133 = scmp.ne.s32.totalorder %s116, %s132
    %p134 = scmp.eq.s32.totalorder %s16, 0
    %p135 = por %p133, %p134
    %s136 = ssub.s32 %s17, %s29
    %s137 = ssub.s32 %s18, %s25
    %s138 = sor.u32 %s136, %s137
    %p139 = scmp.eq.s32.totalorder %s138, 0
    %s141 = sadd.s32 %s140, 1
    %s142 = scalar_select %p139, %s140, %s141
    %p145 = pneg %p139
    %p146 = scmp.eq.s32.totalorder %s10, 3
    %p147 = por %p145, %p146
    %p148 = scmp.ne.s32.totalorder %s140, %s143
    %p149 = scmp.eq.s32.totalorder %s10, 0
    %p150 = por %p148, %p149
    %p151 = scmp.ne.s32.totalorder %s140, %s143
    %p152 = scmp.eq.s32.totalorder %s15, 3
    %p153 = por %p151, %p152
    %p154 = scmp.ne.s32.totalorder %s143, %s144
    %p155 = scmp.eq.s32.totalorder %s15, 0
    %p156 = por %p154, %p155
    %p157 = scmp.ne.s32.totalorder %s143, %s144
    %p158 = scmp.eq.s32.totalorder %s16, 3
    %p159 = por %p157, %p158
    %p161 = scmp.ne.s32.totalorder %s144, %s160
    %p162 = scmp.eq.s32.totalorder %s16, 0
    %p163 = por %p161, %p162
    %p164 = scmp.le.s32.totalorder 1, %s10
    %p165 = scmp.lt.s32.totalorder %s10, 5
    %p166 = pnand %p164, %p165
    %p167 = pneg %p166
    // Predicated region
    $region9: #{_lambda_.12} parent=5 // pred_check
      _
    $region10: #{_lambda_.12} parent=5 // pred_check_branch
      %169 = sbr.rel (%p166) target = $region12
    $region11: #{_lambda_.12} parent=5 // pred_region
      %s170 = ssub.s32 %s10, 1
    $region12: #{_lambda_.12} parent=5 // pred_fallthru
      _
    %p171 = scmp.lt.s32.totalorder %s10, 4
    // Predicated region
    $region13: #{_lambda_.12} parent=5 // pred_check
      %p172 = pneg %p171
    $region14: #{_lambda_.12} parent=5 // pred_check_branch
      %174 = sbr.rel (%p172) target = $region16
    $region15: #{_lambda_.12} parent=5 // pred_region
      // Predicated region
      $region17: #{_lambda_.12} parent=15 // pred_check
        %p175 = pneg %p44
      $region18: #{_lambda_.12} parent=15 // pred_check_branch
        %177 = sbr.rel (%p175) target = $region20
      $region19: #{_lambda_.12} parent=15 // pred_region
        %p178 = scmp.lt.s32.totalorder %s17, 3
        %s179 = scalar_select %p178, %s17, 3
        %p180 = scmp.lt.s32.totalorder %s18, 0
        %s181 = scalar_select %p180, %s18, 0
        %s182 = smul.addr %s181, 3
        %s183 = smul.addr %s179, 3
        %s184 = sadd.s32 %s182, %s183
        %s185 = smul.addr %s184, 4
        %s186 = scalar_lea.vmem %s0, %s185
      $region20: #{_lambda_.12} parent=15 // pred_fallthru
        _
      // Predicated region
      $region21: #{_lambda_.12} parent=15 // pred_check
        %p187 = pneg %p70
      $region22: #{_lambda_.12} parent=15 // pred_check_branch
        %189 = sbr.rel (%p187) target = $region24
      $region23: #{_lambda_.12} parent=15 // pred_region
        %p190 = scmp.lt.s32.totalorder %s17, 3
        %s191 = scalar_select %p190, %s17, 3
        %s192 = smul.addr %s191, 3
        %s193 = sadd.s32 1, %s192
        %s194 = smul.addr %s193, 4
        %s195 = scalar_lea.vmem %s1, %s194
      $region24: #{_lambda_.12} parent=15 // pred_fallthru
        _
      // Predicated region
      $region25: #{_lambda_.12} parent=15 // pred_check
        %p196 = pneg %p96
      $region26: #{_lambda_.12} parent=15 // pred_check_branch
        %198 = sbr.rel (%p196) target = $region28
      $region27: #{_lambda_.12} parent=15 // pred_region
        %p199 = scmp.lt.s32.totalorder %s17, 3
        %s200 = scalar_select %p199, %s17, 3
        %s201 = smul.addr %s200, 3
        %s202 = sadd.s32 2, %s201
        %s203 = smul.addr %s202, 4
        %s204 = scalar_lea.vmem %s2, %s203
      $region28: #{_lambda_.12} parent=15 // pred_fallthru
        _
      // Predicated region
      $region29: #{_lambda_.12} parent=15 // pred_check
        %p205 = pneg %p122
      $region30: #{_lambda_.12} parent=15 // pred_check_branch
        %207 = sbr.rel (%p205) target = $region32
      $region31: #{_lambda_.12} parent=15 // pred_region
        %p208 = scmp.lt.s32.totalorder %s17, 3
        %s209 = scalar_select %p208, %s17, 3
        %s210 = scalar_lea.vmem %s3, %s209
      $region32: #{_lambda_.12} parent=15 // pred_fallthru
        _
    $region16: #{_lambda_.12} parent=5 // pred_fallthru
      _
    %p211 = scmp.le.s32.totalorder 1, %s10
    %p212 = scmp.lt.s32.totalorder %s10, 5
    %p213 = pnand %p211, %p212
    %p214 = pneg %p213
    // Predicated region
    $region33: #{_lambda_.12} parent=5 // pred_check
      _
    $region34: #{_lambda_.12} parent=5 // pred_check_branch
      %216 = sbr.rel (%p213) target = $region36
    $region35: #{_lambda_.12} parent=5 // pred_region
      %s217 = ssub.s32 %s10, 1
      %p218 = scmp.lt.s32.totalorder %s19, 3
      %s219 = scalar_select %p218, %s19, 3
      %p220 = scmp.lt.s32.totalorder %s20, 0
      %s221 = scalar_select %p220, %s20, 0
      %s222 = smul.addr %s221, 3
      %s223 = smul.addr %s219, 3
      %s224 = sadd.s32 %s222, %s223
      %s225 = smul.addr %s224, 4
      %s226 = scalar_lea.vmem %s0, %s225
      %p227 = pneg %p50
      %p228 = pneg %p47
      %p229 = scmp.lt.s32.totalorder %s19, 3
      %s230 = scalar_select %p229, %s19, 3
      %s231 = smul.addr %s230, 3
      %s232 = sadd.s32 1, %s231
      %s233 = smul.addr %s232, 4
      %s234 = scalar_lea.vmem %s1, %s233
      %p235 = pneg %p76
      %p236 = pneg %p73
      %p237 = scmp.lt.s32.totalorder %s19, 3
      %s238 = scalar_select %p237, %s19, 3
      %s239 = smul.addr %s238, 3
      %s240 = sadd.s32 2, %s239
      %s241 = smul.addr %s240, 4
      %s242 = scalar_lea.vmem %s2, %s241
      %p243 = pneg %p102
      %p244 = pneg %p99
      %p245 = scmp.lt.s32.totalorder %s19, 3
      %s246 = scalar_select %p245, %s19, 3
      %s247 = scalar_lea.vmem %s3, %s246
      %p248 = pneg %p128
      %p249 = pneg %p125
      %p250 = pneg %p156
      %p251 = pneg %p153
      %p252 = scmp.lt.s32.totalorder %s19, 3
      %s253 = scalar_select %p252, %s19, 3
      %p254 = scmp.lt.s32.totalorder %s20, 0
      %s255 = scalar_select %p254, %s20, 0
      %s256 = sadd.s32 %s255, %s253
      %s257 = smul.addr %s256, 4
      %s258 = scalar_lea.vmem %s4, %s257
      %p259 = scmp.lt.s32.totalorder %s19, 3
      %s260 = scalar_select %p259, %s19, 3
      %p261 = scmp.lt.s32.totalorder %s20, 0
      %s262 = scalar_select %p261, %s20, 0
      %s263 = smul.addr %s262, 3
      %s264 = smul.addr %s260, 3
      %s265 = sadd.s32 %s263, %s264
      %s266 = smul.addr %s265, 4
      %s267 = scalar_lea.vmem %s0, %s266
      %p268 = scmp.lt.s32.totalorder %s19, 3
      %s269 = scalar_select %p268, %s19, 3
      %s270 = smul.addr %s269, 3
      %s271 = sadd.s32 1, %s270
      %s272 = smul.addr %s271, 4
      %s273 = scalar_lea.vmem %s1, %s272
      %p274 = scmp.lt.s32.totalorder %s19, 3
      %s275 = scalar_select %p274, %s19, 3
      %s276 = smul.addr %s275, 3
      %s277 = sadd.s32 2, %s276
      %s278 = smul.addr %s277, 4
      %s279 = scalar_lea.vmem %s2, %s278
      %p280 = scmp.lt.s32.totalorder %s19, 3
      %s281 = scalar_select %p280, %s19, 3
      %s282 = scalar_lea.vmem %s3, %s281
      %p283 = scmp.lt.s32.totalorder %s19, 3
      %s284 = scalar_select %p283, %s19, 3
      %p285 = scmp.lt.s32.totalorder %s20, 0
      %s286 = scalar_select %p285, %s20, 0
      %s287 = sadd.s32 %s286, %s284
      %s288 = smul.addr %s287, 4
      %s289 = scalar_lea.vmem %s4, %s288
      %v291 = vld [vmem:[%s282] sm:$0x1]
      %v292 = vld [vmem:[%s267] sm:$0xf]
      %v293 = vld [vmem:[%s273] sm:$0xf]
      %v294 = vld [vmem:[%s279] sm:$0xf]
      %vm295 = vcmask 261120
      %v297 = vsel %vm295, %v292, 0
      %v300 = vsel %vm295, %v293, 0
      %302 = vmatprep.subr.bf16.mxu0 0
      %303 = vmatpush1.bf16.xpose.msra.mxu0 %v300
      %304 = vmatprep.subr.bf16.mxu0 0
      %305 = vmatpush1.bf16.xpose.msra.mxu0 0
      %306 = vmatprep.subr.bf16.mxu0 0
      %307 = vmatpush1.bf16.xpose.msra.mxu0 0
      %308 = vmatprep.subr.bf16.mxu0 0
      %309 = vmatpush1.bf16.xpose.msra.mxu0 0
      %310 = vmatprep.subr.bf16.mxu0 0
      %311 = vmatpush1.bf16.xpose.msra.mxu0 0
      %312 = vmatprep.subr.bf16.mxu0 0
      %313 = vmatpush1.bf16.xpose.msra.mxu0 0
      %314 = vmatprep.subr.bf16.mxu0 0
      %315 = vmatpush1.bf16.xpose.msra.mxu0 0
      %316 = vmatprep.subr.bf16.mxu0 0
      %317 = vmatpush1.bf16.xpose.msra.mxu0 0
      %318 = vmatprep.subr.bf16.mxu0 0
      %319 = vmatpush1.bf16.xpose.msra.mxu0 0
      %320 = vmatprep.subr.bf16.mxu0 0
      %321 = vmatpush1.bf16.xpose.msra.mxu0 0
      %322 = vmatprep.subr.bf16.mxu0 0
      %323 = vmatpush1.bf16.xpose.msra.mxu0 0
      %324 = vmatprep.subr.bf16.mxu0 0
      %325 = vmatpush1.bf16.xpose.msra.mxu0 0
      %326 = vmatprep.subr.bf16.mxu0 0
      %327 = vmatpush1.bf16.xpose.msra.mxu0 0
      %328 = vmatprep.subr.bf16.mxu0 0
      %329 = vmatpush1.bf16.xpose.msra.mxu0 0
      %330 = vmatprep.subr.bf16.mxu0 0
      %331 = vmatpush1.bf16.xpose.msra.mxu0 0
      %332 = vmatprep.subr.bf16.mxu0 0
      %333 = vmatpush1.bf16.xpose.msra.mxu0 0
      %334 = vmatprep.mubr.bf16.mxu0 0
      %335 = vmatmul.mubr.bf16.gmra.mrb[0].mxu0 %v297
      %v336 = vpop.f32.mrb[0].mxu0
      %v337 = vadd.f32 0.0, %v336
      %v338 = vpop.f32.mrb[0].mxu0
      %v339 = vpop.f32.mrb[0].mxu0
      %v340 = vpop.f32.mrb[0].mxu0
      %341 = vdwg.mxu0
      %v342 = vmul.f32 %v337, 0.17677669
      %v344 = vlaneseq
      %v345 = vshrl.u32 %v344, 7
      %v346 = vsub.s32 0, %v345
      %v347 = vrot.slane %v291, %v346
      %v349 = vadd.f32 %v342, %v347
      %vm350 = vcmask 64512
      %v351 = vsel %vm350, %v349, -inf
      %352 = vmax.xlane.f32.xlu0 %v351
      %v353 = vpop.xlane.xlu0 %352
      %v354 = vsub.f32 %v349, %v353
      %v355 = vmul.f32 %v354, 1.442695
      %v356 = vpow.pop %v355
      %v357 = vsel %vm350, %v356, 0.0
      %358 = vadd.xlane.f32.xlu0 %v357
      %v359 = vpop.xlane.xlu0 %358
      %v360 = vrcp.pop %v359
      %v361 = vmul.f32 %v356, %v360
      %v362 = vpack.c.bf16 %v361, %v361
      %v364 = vsel %vm350, %v362, 0
      %vm366 = vcmask 1043456
      %v368 = vsel %vm366, %v294, 0
      %370 = vmatprep.subr.bf16.mxu0 0
      %371 = vmatpush1.bf16.msra.mxu0 %v368
      %372 = vmatprep.subr.bf16.mxu0 0
      %373 = vmatpush1.bf16.msra.mxu0 0
      %374 = vmatprep.subr.bf16.mxu0 0
      %375 = vmatpush1.bf16.msra.mxu0 0
      %376 = vmatprep.subr.bf16.mxu0 0
      %377 = vmatpush1.bf16.msra.mxu0 0
      %378 = vmatprep.subr.bf16.mxu0 0
      %379 = vmatpush1.bf16.msra.mxu0 0
      %380 = vmatprep.subr.bf16.mxu0 0
      %381 = vmatpush1.bf16.msra.mxu0 0
      %382 = vmatprep.subr.bf16.mxu0 0
      %383 = vmatpush1.bf16.msra.mxu0 0
      %384 = vmatprep.subr.bf16.mxu0 0
      %385 = vmatpush1.bf16.msra.mxu0 0
      %386 = vmatprep.subr.bf16.mxu0 0
      %387 = vmatpush1.bf16.msra.mxu0 0
      %388 = vmatprep.subr.bf16.mxu0 0
      %389 = vmatpush1.bf16.msra.mxu0 0
      %390 = vmatprep.subr.bf16.mxu0 0
      %391 = vmatpush1.bf16.msra.mxu0 0
      %392 = vmatprep.subr.bf16.mxu0 0
      %393 = vmatpush1.bf16.msra.mxu0 0
      %394 = vmatprep.subr.bf16.mxu0 0
      %395 = vmatpush1.bf16.msra.mxu0 0
      %396 = vmatprep.subr.bf16.mxu0 0
      %397 = vmatpush1.bf16.msra.mxu0 0
      %398 = vmatprep.subr.bf16.mxu0 0
      %399 = vmatpush1.bf16.msra.mxu0 0
      %400 = vmatprep.subr.bf16.mxu0 0
      %401 = vmatpush1.bf16.msra.mxu0 0
      %402 = vmatprep.mubr.bf16.mxu0 0
      %403 = vmatmul.mubr.bf16.gmra.mrb[0].mxu0 %v364
      %v404 = vpop.f32.mrb[0].mxu0
      %v405 = vadd.f32 0.0, %v404
      %v406 = vpop.f32.mrb[0].mxu0
      %v407 = vpop.f32.mrb[0].mxu0
      %v408 = vpop.f32.mrb[0].mxu0
      %409 = vdwg.mxu0
      %v410 = vpack.c.bf16 %v405, %v405
      %vm411 = vcmask 257024
      %412 = vst.msk [vmem:[%s289] sm:$0xf] %vm411, %v410
      %v413 = vld [vmem:[%s267] sm:$0xf]
      %v414 = vld [vmem:[%s273] sm:$0xf]
      %v415 = vld [vmem:[%s279] sm:$0xf]
      %v417 = vunpack.c.l.b16 %v413
      %v418 = vpack.c.b16 %v417, %v417
      %419 = vrot.lane.b32.xlu0 %v418, 96
      %v420 = vpop.permute.xlu0 %419
      %v422 = vunpack.c.l.b16 %v414
      %v423 = vpack.c.b16 %v422, %v422
      %424 = vrot.lane.b32.xlu0 %v423, 96
      %v425 = vpop.permute.xlu0 %424
      %v427 = vsel %vm295, %v420, 0
      %v430 = vsel %vm295, %v425, 0
      %432 = vmatprep.subr.bf16.mxu0 0
      %433 = vmatpush1.bf16.xpose.msra.mxu0 %v430
      %434 = vmatprep.subr.bf16.mxu0 0
      %435 = vmatpush1.bf16.xpose.msra.mxu0 0
      %436 = vmatprep.subr.bf16.mxu0 0
      %437 = vmatpush1.bf16.xpose.msra.mxu0 0
      %438 = vmatprep.subr.bf16.mxu0 0
      %439 = vmatpush1.bf16.xpose.msra.mxu0 0
      %440 = vmatprep.subr.bf16.mxu0 0
      %441 = vmatpush1.bf16.xpose.msra.mxu0 0
      %442 = vmatprep.subr.bf16.mxu0 0
      %443 = vmatpush1.bf16.xpose.msra.mxu0 0
      %444 = vmatprep.subr.bf16.mxu0 0
      %445 = vmatpush1.bf16.xpose.msra.mxu0 0
      %446 = vmatprep.subr.bf16.mxu0 0
      %447 = vmatpush1.bf16.xpose.msra.mxu0 0
      %448 = vmatprep.subr.bf16.mxu0 0
      %449 = vmatpush1.bf16.xpose.msra.mxu0 0
      %450 = vmatprep.subr.bf16.mxu0 0
      %451 = vmatpush1.bf16.xpose.msra.mxu0 0
      %452 = vmatprep.subr.bf16.mxu0 0
      %453 = vmatpush1.bf16.xpose.msra.mxu0 0
      %454 = vmatprep.subr.bf16.mxu0 0
      %455 = vmatpush1.bf16.xpose.msra.mxu0 0
      %456 = vmatprep.subr.bf16.mxu0 0
      %457 = vmatpush1.bf16.xpose.msra.mxu0 0
      %458 = vmatprep.subr.bf16.mxu0 0
      %459 = vmatpush1.bf16.xpose.msra.mxu0 0
      %460 = vmatprep.subr.bf16.mxu0 0
      %461 = vmatpush1.bf16.xpose.msra.mxu0 0
      %462 = vmatprep.subr.bf16.mxu0 0
      %463 = vmatpush1.bf16.xpose.msra.mxu0 0
      %464 = vmatprep.mubr.bf16.mxu0 0
      %465 = vmatmul.mubr.bf16.gmra.mrb[0].mxu0 %v427
      %v466 = vpop.f32.mrb[0].mxu0
      %v467 = vadd.f32 0.0, %v466
      %v468 = vpop.f32.mrb[0].mxu0
      %v469 = vpop.f32.mrb[0].mxu0
      %v470 = vpop.f32.mrb[0].mxu0
      %471 = vdwg.mxu0
      %v472 = vmul.f32 %v467, 0.17677669
      %v473 = vadd.f32 %v472, %v347
      %v474 = vsel %vm350, %v473, -inf
      %475 = vmax.xlane.f32.xlu0 %v474
      %v476 = vpop.xlane.xlu0 %475
      %v477 = vsub.f32 %v473, %v476
      %v478 = vmul.f32 %v477, 1.442695
      %v479 = vpow.pop %v478
      %v480 = vsel %vm350, %v479, 0.0
      %481 = vadd.xlane.f32.xlu0 %v480
      %v482 = vpop.xlane.xlu0 %481
      %v483 = vrcp.pop %v482
      %v484 = vmul.f32 %v479, %v483
      %v485 = vpack.c.bf16 %v484, %v484
      %v487 = vunpack.c.l.b16 %v415
      %v488 = vpack.c.b16 %v487, %v487
      %489 = vrot.lane.b32.xlu0 %v488, 96
      %v490 = vpop.permute.xlu0 %489
      %v492 = vsel %vm350, %v485, 0
      %v495 = vsel %vm366, %v490, 0
      %497 = vmatprep.subr.bf16.mxu0 0
      %498 = vmatpush1.bf16.msra.mxu0 %v495
      %499 = vmatprep.subr.bf16.mxu0 0
      %500 = vmatpush1.bf16.msra.mxu0 0
      %501 = vmatprep.subr.bf16.mxu0 0
      %502 = vmatpush1.bf16.msra.mxu0 0
      %503 = vmatprep.subr.bf16.mxu0 0
      %504 = vmatpush1.bf16.msra.mxu0 0
      %505 = vmatprep.subr.bf16.mxu0 0
      %506 = vmatpush1.bf16.msra.mxu0 0
      %507 = vmatprep.subr.bf16.mxu0 0
      %508 = vmatpush1.bf16.msra.mxu0 0
      %509 = vmatprep.subr.bf16.mxu0 0
      %510 = vmatpush1.bf16.msra.mxu0 0
      %511 = vmatprep.subr.bf16.mxu0 0
      %512 = vmatpush1.bf16.msra.mxu0 0
      %513 = vmatprep.subr.bf16.mxu0 0
      %514 = vmatpush1.bf16.msra.mxu0 0
      %515 = vmatprep.subr.bf16.mxu0 0
      %516 = vmatpush1.bf16.msra.mxu0 0
      %517 = vmatprep.subr.bf16.mxu0 0
      %518 = vmatpush1.bf16.msra.mxu0 0
      %519 = vmatprep.subr.bf16.mxu0 0
      %520 = vmatpush1.bf16.msra.mxu0 0
      %521 = vmatprep.subr.bf16.mxu0 0
      %522 = vmatpush1.bf16.msra.mxu0 0
      %523 = vmatprep.subr.bf16.mxu0 0
      %524 = vmatpush1.bf16.msra.mxu0 0
      %525 = vmatprep.subr.bf16.mxu0 0
      %526 = vmatpush1.bf16.msra.mxu0 0
      %527 = vmatprep.subr.bf16.mxu0 0
      %528 = vmatpush1.bf16.msra.mxu0 0
      %529 = vmatprep.mubr.bf16.mxu0 0
      %530 = vmatmul.mubr.bf16.gmra.mrb[0].mxu0 %v492
      %v531 = vpop.f32.mrb[0].mxu0
      %v532 = vadd.f32 0.0, %v531
      %v533 = vpop.f32.mrb[0].mxu0
      %v534 = vpop.f32.mrb[0].mxu0
      %v535 = vpop.f32.mrb[0].mxu0
      %536 = vdwg.mxu0
      %v537 = vpack.c.bf16 %v532, %v532
      %v539 = vunpack.c.l.b16 %v537
      %v540 = vpack.c.b16 %v539, %v539
      %541 = vrot.lane.b32.xlu0 %v540, 32
      %v542 = vpop.permute.xlu0 %541
      %vm544 = vcmask 519424
      %545 = vst.msk [vmem:[%s289] sm:$0xf] %vm544, %v542
      %v546 = vld [vmem:[%s267] sm:$0xf]
      %v547 = vld [vmem:[%s273] sm:$0xf]
      %v548 = vld [vmem:[%s279] sm:$0xf]
      %v550 = vunpack.c.l.b16 %v546
      %v551 = vpack.c.b16 %v550, %v550
      %552 = vrot.lane.b32.xlu0 %v551, 64
      %v553 = vpop.permute.xlu0 %552
      %v555 = vunpack.c.l.b16 %v547
      %v556 = vpack.c.b16 %v555, %v555
      %557 = vrot.lane.b32.xlu0 %v556, 64
      %v558 = vpop.permute.xlu0 %557
      %v560 = vsel %vm295, %v553, 0
      %v563 = vsel %vm295, %v558, 0
      %565 = vmatprep.subr.bf16.mxu0 0
      %566 = vmatpush1.bf16.xpose.msra.mxu0 %v563
      %567 = vmatprep.subr.bf16.mxu0 0
      %568 = vmatpush1.bf16.xpose.msra.mxu0 0
      %569 = vmatprep.subr.bf16.mxu0 0
      %570 = vmatpush1.bf16.xpose.msra.mxu0 0
      %571 = vmatprep.subr.bf16.mxu0 0
      %572 = vmatpush1.bf16.xpose.msra.mxu0 0
      %573 = vmatprep.subr.bf16.mxu0 0
      %574 = vmatpush1.bf16.xpose.msra.mxu0 0
      %575 = vmatprep.subr.bf16.mxu0 0
      %576 = vmatpush1.bf16.xpose.msra.mxu0 0
      %577 = vmatprep.subr.bf16.mxu0 0
      %578 = vmatpush1.bf16.xpose.msra.mxu0 0
      %579 = vmatprep.subr.bf16.mxu0 0
      %580 = vmatpush1.bf16.xpose.msra.mxu0 0
      %581 = vmatprep.subr.bf16.mxu0 0
      %582 = vmatpush1.bf16.xpose.msra.mxu0 0
      %583 = vmatprep.subr.bf16.mxu0 0
      %584 = vmatpush1.bf16.xpose.msra.mxu0 0
      %585 = vmatprep.subr.bf16.mxu0 0
      %586 = vmatpush1.bf16.xpose.msra.mxu0 0
      %587 = vmatprep.subr.bf16.mxu0 0
      %588 = vmatpush1.bf16.xpose.msra.mxu0 0
      %589 = vmatprep.subr.bf16.mxu0 0
      %590 = vmatpush1.bf16.xpose.msra.mxu0 0
      %591 = vmatprep.subr.bf16.mxu0 0
      %592 = vmatpush1.bf16.xpose.msra.mxu0 0
      %593 = vmatprep.subr.bf16.mxu0 0
      %594 = vmatpush1.bf16.xpose.msra.mxu0 0
      %595 = vmatprep.subr.bf16.mxu0 0
      %596 = vmatpush1.bf16.xpose.msra.mxu0 0
      %597 = vmatprep.mubr.bf16.mxu0 0
      %598 = vmatmul.mubr.bf16.gmra.mrb[0].mxu0 %v560
      %v599 = vpop.f32.mrb[0].mxu0
      %v600 = vadd.f32 0.0, %v599
      %v601 = vpop.f32.mrb[0].mxu0
      %v602 = vpop.f32.mrb[0].mxu0
      %v603 = vpop.f32.mrb[0].mxu0
      %604 = vdwg.mxu0
      %v605 = vmul.f32 %v600, 0.17677669
      %v606 = vadd.f32 %v605, %v347
      %v607 = vsel %vm350, %v606, -inf
      %608 = vmax.xlane.f32.xlu0 %v607
      %v609 = vpop.xlane.xlu0 %608
      %v610 = vsub.f32 %v606, %v609
      %v611 = vmul.f32 %v610, 1.442695
      %v612 = vpow.pop %v611
      %v613 = vsel %vm350, %v612, 0.0
      %614 = vadd.xlane.f32.xlu0 %v613
      %v615 = vpop.xlane.xlu0 %614
      %v616 = vrcp.pop %v615
      %v617 = vmul.f32 %v612, %v616
      %v618 = vpack.c.bf16 %v617, %v617
      %v620 = vunpack.c.l.b16 %v548
      %v621 = vpack.c.b16 %v620, %v620
      %622 = vrot.lane.b32.xlu0 %v621, 64
      %v623 = vpop.permute.xlu0 %622
      %v625 = vsel %vm350, %v618, 0
      %v628 = vsel %vm366, %v623, 0
      %630 = vmatprep.subr.bf16.mxu0 0
      %631 = vmatpush1.bf16.msra.mxu0 %v628
      %632 = vmatprep.subr.bf16.mxu0 0
      %633 = vmatpush1.bf16.msra.mxu0 0
      %634 = vmatprep.subr.bf16.mxu0 0
      %635 = vmatpush1.bf16.msra.mxu0 0
      %636 = vmatprep.subr.bf16.mxu0 0
      %637 = vmatpush1.bf16.msra.mxu0 0
      %638 = vmatprep.subr.bf16.mxu0 0
      %639 = vmatpush1.bf16.msra.mxu0 0
      %640 = vmatprep.subr.bf16.mxu0 0
      %641 = vmatpush1.bf16.msra.mxu0 0
      %642 = vmatprep.subr.bf16.mxu0 0
      %643 = vmatpush1.bf16.msra.mxu0 0
      %644 = vmatprep.subr.bf16.mxu0 0
      %645 = vmatpush1.bf16.msra.mxu0 0
      %646 = vmatprep.subr.bf16.mxu0 0
      %647 = vmatpush1.bf16.msra.mxu0 0
      %648 = vmatprep.subr.bf16.mxu0 0
      %649 = vmatpush1.bf16.msra.mxu0 0
      %650 = vmatprep.subr.bf16.mxu0 0
      %651 = vmatpush1.bf16.msra.mxu0 0
      %652 = vmatprep.subr.bf16.mxu0 0
      %653 = vmatpush1.bf16.msra.mxu0 0
      %654 = vmatprep.subr.bf16.mxu0 0
      %655 = vmatpush1.bf16.msra.mxu0 0
      %656 = vmatprep.subr.bf16.mxu0 0
      %657 = vmatpush1.bf16.msra.mxu0 0
      %658 = vmatprep.subr.bf16.mxu0 0
      %659 = vmatpush1.bf16.msra.mxu0 0
      %660 = vmatprep.subr.bf16.mxu0 0
      %661 = vmatpush1.bf16.msra.mxu0 0
      %662 = vmatprep.mubr.bf16.mxu0 0
      %663 = vmatmul.mubr.bf16.gmra.mrb[0].mxu0 %v625
      %v664 = vpop.f32.mrb[0].mxu0
      %v665 = vadd.f32 0.0, %v664
      %v666 = vpop.f32.mrb[0].mxu0
      %v667 = vpop.f32.mrb[0].mxu0
      %v668 = vpop.f32.mrb[0].mxu0
      %669 = vdwg.mxu0
      %v670 = vpack.c.bf16 %v665, %v665
      %v672 = vunpack.c.l.b16 %v670
      %v673 = vpack.c.b16 %v672, %v672
      %674 = vrot.lane.b32.xlu0 %v673, 64
      %v675 = vpop.permute.xlu0 %674
      %vm677 = vcmask 781824
      %678 = vst.msk [vmem:[%s289] sm:$0xf] %vm677, %v675
      %v679 = vld [vmem:[%s267] sm:$0xf]
      %v680 = vld [vmem:[%s273] sm:$0xf]
      %v681 = vld [vmem:[%s279] sm:$0xf]
      %v683 = vunpack.c.l.b16 %v679
      %v684 = vpack.c.b16 %v683, %v683
      %685 = vrot.lane.b32.xlu0 %v684, 32
      %v686 = vpop.permute.xlu0 %685
      %v688 = vunpack.c.l.b16 %v680
      %v689 = vpack.c.b16 %v688, %v688
      %690 = vrot.lane.b32.xlu0 %v689, 32
      %v691 = vpop.permute.xlu0 %690
      %v693 = vsel %vm295, %v686, 0
      %v696 = vsel %vm295, %v691, 0
      %698 = vmatprep.subr.bf16.mxu0 0
      %699 = vmatpush1.bf16.xpose.msra.mxu0 %v696
      %700 = vmatprep.subr.bf16.mxu0 0
      %701 = vmatpush1.bf16.xpose.msra.mxu0 0
      %702 = vmatprep.subr.bf16.mxu0 0
      %703 = vmatpush1.bf16.xpose.msra.mxu0 0
      %704 = vmatprep.subr.bf16.mxu0 0
      %705 = vmatpush1.bf16.xpose.msra.mxu0 0
      %706 = vmatprep.subr.bf16.mxu0 0
      %707 = vmatpush1.bf16.xpose.msra.mxu0 0
      %708 = vmatprep.subr.bf16.mxu0 0
      %709 = vmatpush1.bf16.xpose.msra.mxu0 0
      %710 = vmatprep.subr.bf16.mxu0 0
      %711 = vmatpush1.bf16.xpose.msra.mxu0 0
      %712 = vmatprep.subr.bf16.mxu0 0
      %713 = vmatpush1.bf16.xpose.msra.mxu0 0
      %714 = vmatprep.subr.bf16.mxu0 0
      %715 = vmatpush1.bf16.xpose.msra.mxu0 0
      %716 = vmatprep.subr.bf16.mxu0 0
      %717 = vmatpush1.bf16.xpose.msra.mxu0 0
      %718 = vmatprep.subr.bf16.mxu0 0
      %719 = vmatpush1.bf16.xpose.msra.mxu0 0
      %720 = vmatprep.subr.bf16.mxu0 0
      %721 = vmatpush1.bf16.xpose.msra.mxu0 0
      %722 = vmatprep.subr.bf16.mxu0 0
      %723 = vmatpush1.bf16.xpose.msra.mxu0 0
      %724 = vmatprep.subr.bf16.mxu0 0
      %725 = vmatpush1.bf16.xpose.msra.mxu0 0
      %726 = vmatprep.subr.bf16.mxu0 0
      %727 = vmatpush1.bf16.xpose.msra.mxu0 0
      %728 = vmatprep.subr.bf16.mxu0 0
      %729 = vmatpush1.bf16.xpose.msra.mxu0 0
      %730 = vmatprep.mubr.bf16.mxu0 0
      %731 = vmatmul.mubr.bf16.gmra.mrb[0].mxu0 %v693
      %v732 = vpop.f32.mrb[0].mxu0
      %v733 = vadd.f32 0.0, %v732
      %v734 = vpop.f32.mrb[0].mxu0
      %v735 = vpop.f32.mrb[0].mxu0
      %v736 = vpop.f32.mrb[0].mxu0
      %737 = vdwg.mxu0
      %v738 = vmul.f32 %v733, 0.17677669
      %v739 = vadd.f32 %v738, %v347
      %v740 = vsel %vm350, %v739, -inf
      %741 = vmax.xlane.f32.xlu0 %v740
      %v742 = vpop.xlane.xlu0 %741
      %v743 = vsub.f32 %v739, %v742
      %v744 = vmul.f32 %v743, 1.442695
      %v745 = vpow.pop %v744
      %v746 = vsel %vm350, %v745, 0.0
      %747 = vadd.xlane.f32.xlu0 %v746
      %v748 = vpop.xlane.xlu0 %747
      %v749 = vrcp.pop %v748
      %v750 = vmul.f32 %v745, %v749
      %v751 = vpack.c.bf16 %v750, %v750
      %v753 = vunpack.c.l.b16 %v681
      %v754 = vpack.c.b16 %v753, %v753
      %755 = vrot.lane.b32.xlu0 %v754, 32
      %v756 = vpop.permute.xlu0 %755
      %v758 = vsel %vm350, %v751, 0
      %v761 = vsel %vm366, %v756, 0
      %763 = vmatprep.subr.bf16.mxu0 0
      %764 = vmatpush1.bf16.msra.mxu0 %v761
      %765 = vmatprep.subr.bf16.mxu0 0
      %766 = vmatpush1.bf16.msra.mxu0 0
      %767 = vmatprep.subr.bf16.mxu0 0
      %768 = vmatpush1.bf16.msra.mxu0 0
      %769 = vmatprep.subr.bf16.mxu0 0
      %770 = vmatpush1.bf16.msra.mxu0 0
      %771 = vmatprep.subr.bf16.mxu0 0
      %772 = vmatpush1.bf16.msra.mxu0 0
      %773 = vmatprep.subr.bf16.mxu0 0
      %774 = vmatpush1.bf16.msra.mxu0 0
      %775 = vmatprep.subr.bf16.mxu0 0
      %776 = vmatpush1.bf16.msra.mxu0 0
      %777 = vmatprep.subr.bf16.mxu0 0
      %778 = vmatpush1.bf16.msra.mxu0 0
      %779 = vmatprep.subr.bf16.mxu0 0
      %780 = vmatpush1.bf16.msra.mxu0 0
      %781 = vmatprep.subr.bf16.mxu0 0
      %782 = vmatpush1.bf16.msra.mxu0 0
      %783 = vmatprep.subr.bf16.mxu0 0
      %784 = vmatpush1.bf16.msra.mxu0 0
      %785 = vmatprep.subr.bf16.mxu0 0
      %786 = vmatpush1.bf16.msra.mxu0 0
      %787 = vmatprep.subr.bf16.mxu0 0
      %788 = vmatpush1.bf16.msra.mxu0 0
      %789 = vmatprep.subr.bf16.mxu0 0
      %790 = vmatpush1.bf16.msra.mxu0 0
      %791 = vmatprep.subr.bf16.mxu0 0
      %792 = vmatpush1.bf16.msra.mxu0 0
      %793 = vmatprep.subr.bf16.mxu0 0
      %794 = vmatpush1.bf16.msra.mxu0 0
      %795 = vmatprep.mubr.bf16.mxu0 0
      %796 = vmatmul.mubr.bf16.gmra.mrb[0].mxu0 %v758
      %v797 = vpop.f32.mrb[0].mxu0
      %v798 = vadd.f32 0.0, %v797
      %v799 = vpop.f32.mrb[0].mxu0
      %v800 = vpop.f32.mrb[0].mxu0
      %v801 = vpop.f32.mrb[0].mxu0
      %802 = vdwg.mxu0
      %v803 = vpack.c.bf16 %v798, %v798
      %v805 = vunpack.c.l.b16 %v803
      %v806 = vpack.c.b16 %v805, %v805
      %807 = vrot.lane.b32.xlu0 %v806, 96
      %v808 = vpop.permute.xlu0 %807
      %vm810 = vcmask 1044224
      %811 = vst.msk [vmem:[%s289] sm:$0xf] %vm810, %v808
      %p812 = scmp.lt.s32.totalorder %s19, 3
      %s813 = scalar_select %p812, %s19, 3
      %p814 = scmp.lt.s32.totalorder %s20, 0
      %s815 = scalar_select %p814, %s20, 0
      %s816 = sadd.s32 %s815, %s813
      %s817 = smul.addr %s816, 4
      %s818 = scalar_lea.vmem %s4, %s817
      // Predicated region
      $region37: #{_lambda_.12} parent=35 // pred_check
        %p819 = pneg %p153
      $region38: #{_lambda_.12} parent=35 // pred_check_branch
        %821 = sbr.rel (%p819) target = $region40
      $region39: #{_lambda_.12} parent=35 // pred_region
        _
      $region40: #{_lambda_.12} parent=35 // pred_fallthru
        _
    $region36: #{_lambda_.12} parent=5 // pred_fallthru
      _
    %p822 = scmp.le.s32.totalorder 2, %s10
    // Predicated region
    $region41: #{_lambda_.12} parent=5 // pred_check
      %p823 = pneg %p822
    $region42: #{_lambda_.12} parent=5 // pred_check_branch
      %825 = sbr.rel (%p823) target = $region44
    $region43: #{_lambda_.12} parent=5 // pred_region
      %s826 = ssub.s32 %s10, 2
      // Predicated region
      $region45: #{_lambda_.12} parent=43 // pred_check
        %p827 = pneg %p159
      $region46: #{_lambda_.12} parent=43 // pred_check_branch
        %829 = sbr.rel (%p827) target = $region48
      $region47: #{_lambda_.12} parent=43 // pred_region
        %p830 = scmp.lt.s32.totalorder %s21, 3
        %s831 = scalar_select %p830, %s21, 3
        %p832 = scmp.lt.s32.totalorder %s22, 0
        %s833 = scalar_select %p832, %s22, 0
        %s834 = sadd.s32 %s833, %s831
        %s835 = smul.addr %s834, 4
        %s836 = scalar_lea.vmem %s4, %s835
      $region48: #{_lambda_.12} parent=43 // pred_fallthru
        _
    $region44: #{_lambda_.12} parent=5 // pred_fallthru
      _
  $region6: #{_lambda_.12} parent=0 // loop_footer
    %s14 = sadd.s32 1, %s10
  $region7: #{_lambda_.12} parent=0 // loop_footer_branch
    %9 = sbr.rel target = $region3
  $region8: #{_lambda_.12} parent=0 // loop_exit
    _

// kernel: _lambda_.19
$region0: #{_lambda_.19}
  #allocation0 [shape = 'u32[]', space=smem, size = 0x4, offset = 0x4, fixed_abs, tag = 'smem constant byte address 0x4 - core index']
  #allocation1 [shape = 'u32[144,128]{1,0:T(1,128)}', space=vmem, size = 0x12000, scoped, tag = 'internal scratch']
  #allocation2 [shape = 'f32[1,1]{1,0:T(1,128)S(1)}', space=vmem, size = 0x200, scoped, tag = 'scoped memory for _lambda_.19']
  %s0 = inlined_call_operand.vmem [shape: bf16[4,128], index: 0, kind: input, shape index: {}]
  %s1 = inlined_call_operand.vmem [shape: bf16[128,128], index: 1, kind: input, shape index: {}]
  %s2 = inlined_call_operand.vmem [shape: f32[1,128], index: 2, kind: input, shape index: {}]
  %s3 = inlined_call_operand.vmem [shape: bf16[128,1], index: 3, kind: input, shape index: {}]
  %s4 = inlined_call_operand.<no memory space> [shape: f32[1,1], index: 4, kind: input, shape index: {}]
  %s5 = inlined_call_operand.vmem [shape: f32[4,1], index: 5, kind: output, shape index: {}]
  %s6 = sld [smem:[#allocation0]]
  $region30: #{_lambda_.19} parent=0
    _
  %s8 = ssub.s32 1, %s6
  %s9 = scalar_select 0, %s8, %s6
  %v10 = vstv %s4
  %11 = vst [vmem:[#allocation2] sm:$0x1] %v10
  // Predicated region
  $region2: #{_lambda_.19} parent=0 // pred_check
    _
  $region3: #{_lambda_.19} parent=0 // pred_check_branch
    %13 = sbr.rel (0) target = $region5
  $region4: #{_lambda_.19} parent=0 // pred_region
    _
  $region5: #{_lambda_.19} parent=0 // pred_fallthru
    _
  // Predicated region
  $region6: #{_lambda_.19} parent=0 // pred_check
    _
  $region7: #{_lambda_.19} parent=0 // pred_check_branch
    %15 = sbr.rel (0) target = $region9
  $region8: #{_lambda_.19} parent=0 // pred_region
    _
  $region9: #{_lambda_.19} parent=0 // pred_fallthru
    _
  // Predicated region
  $region10: #{_lambda_.19} parent=0 // pred_check
    _
  $region11: #{_lambda_.19} parent=0 // pred_check_branch
    %17 = sbr.rel (0) target = $region13
  $region12: #{_lambda_.19} parent=0 // pred_region
    _
  $region13: #{_lambda_.19} parent=0 // pred_fallthru
    _
  // Predicated region
  $region14: #{_lambda_.19} parent=0 // pred_check
    _
  $region15: #{_lambda_.19} parent=0 // pred_check_branch
    %19 = sbr.rel (0) target = $region17
  $region16: #{_lambda_.19} parent=0 // pred_region
    _
  $region17: #{_lambda_.19} parent=0 // pred_fallthru
    _
  // Predicated region
  $region18: #{_lambda_.19} parent=0 // pred_check
    _
  $region19: #{_lambda_.19} parent=0 // pred_check_branch
    %21 = sbr.rel (0) target = $region21
  $region20: #{_lambda_.19} parent=0 // pred_region
    _
  $region21: #{_lambda_.19} parent=0 // pred_fallthru
    _
  %v23 = vld [vmem:[%s0] sm:$0x3]
  %v24 = vld [vmem:[%s1] sm:$0xf]
  %v25 = vld [vmem:[%s1 + $0x4] sm:$0xf]
  %v26 = vld [vmem:[%s1 + $0x8] sm:$0xf]
  %v27 = vld [vmem:[%s1 + $0xc] sm:$0xf]
  %v28 = vld [vmem:[%s1 + $0x10] sm:$0xf]
  %v29 = vld [vmem:[%s1 + $0x14] sm:$0xf]
  %v30 = vld [vmem:[%s1 + $0x18] sm:$0xf]
  %v31 = vld [vmem:[%s1 + $0x1c] sm:$0xf]
  %v32 = vld [vmem:[%s1 + $0x20] sm:$0xf]
  %v33 = vld [vmem:[%s1 + $0x24] sm:$0xf]
  %v34 = vld [vmem:[%s1 + $0x28] sm:$0xf]
  %v35 = vld [vmem:[%s1 + $0x2c] sm:$0xf]
  %v36 = vld [vmem:[%s1 + $0x30] sm:$0xf]
  %v37 = vld [vmem:[%s1 + $0x34] sm:$0xf]
  %v38 = vld [vmem:[%s1 + $0x38] sm:$0xf]
  %v39 = vld [vmem:[%s1 + $0x3c] sm:$0xf]
  %v40 = vld [vmem:[%s2] sm:$0x1]
  %v42 = vlaneseq
  %v43 = vshrl.u32 %v42, 7
  %v44 = vsub.s32 0, %v43
  %v45 = vrot.slane %v40, %v44
  %v63 = vunpack.c.l.b16 %v24
  %v64 = vunpack.c.l.b16 %v25
  %v65 = vunpack.c.l.b16 %v26
  %v66 = vunpack.c.l.b16 %v27
  %v67 = vunpack.c.l.b16 %v28
  %v68 = vunpack.c.l.b16 %v29
  %v69 = vunpack.c.l.b16 %v30
  %v70 = vunpack.c.l.b16 %v31
  %v71 = vunpack.c.l.b16 %v32
  %v72 = vunpack.c.l.b16 %v33
  %v73 = vunpack.c.l.b16 %v34
  %v74 = vunpack.c.l.b16 %v35
  %v75 = vunpack.c.l.b16 %v36
  %v76 = vunpack.c.l.b16 %v37
  %v77 = vunpack.c.l.b16 %v38
  %v78 = vunpack.c.l.b16 %v39
  %v79 = vpack.c.b16 %v64, %v63
  %v80 = vpack.c.b16 %v66, %v65
  %v81 = vpack.c.b16 %v68, %v67
  %v82 = vpack.c.b16 %v70, %v69
  %v83 = vpack.c.b16 %v72, %v71
  %v84 = vpack.c.b16 %v74, %v73
  %v85 = vpack.c.b16 %v76, %v75
  %v86 = vpack.c.b16 %v78, %v77
  %95 = vmatprep.subr.bf16.mxu0 0
  %96 = vmatpush1.bf16.msra.mxu0 %v79
  %97 = vmatprep.subr.bf16.mxu0 0
  %98 = vmatpush1.bf16.msra.mxu0 %v80
  %99 = vmatprep.subr.bf16.mxu0 0
  %100 = vmatpush1.bf16.msra.mxu0 %v81
  %101 = vmatprep.subr.bf16.mxu0 0
  %102 = vmatpush1.bf16.msra.mxu0 %v82
  %103 = vmatprep.subr.bf16.mxu0 0
  %104 = vmatpush1.bf16.msra.mxu0 %v83
  %105 = vmatprep.subr.bf16.mxu0 0
  %106 = vmatpush1.bf16.msra.mxu0 %v84
  %107 = vmatprep.subr.bf16.mxu0 0
  %108 = vmatpush1.bf16.msra.mxu0 %v85
  %109 = vmatprep.subr.bf16.mxu0 0
  %110 = vmatpush1.bf16.msra.mxu0 %v86
  %111 = vmatprep.subr.bf16.mxu0 0
  %112 = vmatpush1.bf16.msra.mxu0 0
  %113 = vmatprep.subr.bf16.mxu0 0
  %114 = vmatpush1.bf16.msra.mxu0 0
  %115 = vmatprep.subr.bf16.mxu0 0
  %116 = vmatpush1.bf16.msra.mxu0 0
  %117 = vmatprep.subr.bf16.mxu0 0
  %118 = vmatpush1.bf16.msra.mxu0 0
  %119 = vmatprep.subr.bf16.mxu0 0
  %120 = vmatpush1.bf16.msra.mxu0 0
  %121 = vmatprep.subr.bf16.mxu0 0
  %122 = vmatpush1.bf16.msra.mxu0 0
  %123 = vmatprep.subr.bf16.mxu0 0
  %124 = vmatpush1.bf16.msra.mxu0 0
  %125 = vmatprep.subr.bf16.mxu0 0
  %126 = vmatpush1.bf16.msra.mxu0 0
  %127 = vmatprep.mubr.bf16.mxu0 0
  %128 = vmatmul.mubr.bf16.gmra.mrb[0].mxu0 %v23
  %v129 = vpop.f32.mrb[0].mxu0
  %v130 = vadd.f32 %v45, %v129
  %v131 = vpop.f32.mrb[0].mxu0
  %v132 = vpop.f32.mrb[0].mxu0
  %v133 = vpop.f32.mrb[0].mxu0
  %134 = vdwg.mxu0
  %v135 = vtanh.pop %v130
  %v136 = vpack.c.bf16 %v135, %v135
  %v137 = vld [vmem:[%s3] sm:$0xf]
  %v138 = vld [vmem:[%s3 + $0x4] sm:$0xf]
  %v139 = vld [vmem:[%s3 + $0x8] sm:$0xf]
  %v140 = vld [vmem:[%s3 + $0xc] sm:$0xf]
  %v141 = vld [vmem:[%s3 + $0x10] sm:$0xf]
  %v142 = vld [vmem:[%s3 + $0x14] sm:$0xf]
  %v143 = vld [vmem:[%s3 + $0x18] sm:$0xf]
  %v144 = vld [vmem:[%s3 + $0x1c] sm:$0xf]
  %v145 = vld [vmem:[%s3 + $0x20] sm:$0xf]
  %v146 = vld [vmem:[%s3 + $0x24] sm:$0xf]
  %v147 = vld [vmem:[%s3 + $0x28] sm:$0xf]
  %v148 = vld [vmem:[%s3 + $0x2c] sm:$0xf]
  %v149 = vld [vmem:[%s3 + $0x30] sm:$0xf]
  %v150 = vld [vmem:[%s3 + $0x34] sm:$0xf]
  %v151 = vld [vmem:[%s3 + $0x38] sm:$0xf]
  %v152 = vld [vmem:[%s3 + $0x3c] sm:$0xf]
  %v153 = vld [vmem:[#allocation2] sm:$0x1]
  %v155 = vlaneseq
  %v156 = vshrl.u32 %v155, 7
  %v157 = vsub.s32 0, %v156
  %v158 = vrot.slane %v153, %v157
  %v176 = vunpack.c.l.b16 %v137
  %v177 = vunpack.c.l.b16 %v138
  %v178 = vunpack.c.l.b16 %v139
  %v179 = vunpack.c.l.b16 %v140
  %v180 = vunpack.c.l.b16 %v141
  %v181 = vunpack.c.l.b16 %v142
  %v182 = vunpack.c.l.b16 %v143
  %v183 = vunpack.c.l.b16 %v144
  %v184 = vunpack.c.l.b16 %v145
  %v185 = vunpack.c.l.b16 %v146
  %v186 = vunpack.c.l.b16 %v147
  %v187 = vunpack.c.l.b16 %v148
  %v188 = vunpack.c.l.b16 %v149
  %v189 = vunpack.c.l.b16 %v150
  %v190 = vunpack.c.l.b16 %v151
  %v191 = vunpack.c.l.b16 %v152
  %v192 = vpack.c.b16 %v177, %v176
  %v193 = vpack.c.b16 %v179, %v178
  %v194 = vpack.c.b16 %v181, %v180
  %v195 = vpack.c.b16 %v183, %v182
  %v196 = vpack.c.b16 %v185, %v184
  %v197 = vpack.c.b16 %v187, %v186
  %v198 = vpack.c.b16 %v189, %v188
  %v199 = vpack.c.b16 %v191, %v190
  %208 = vmatprep.subr.bf16.mxu0 0
  %209 = vmatpush1.bf16.msra.mxu0 %v192
  %210 = vmatprep.subr.bf16.mxu0 0
  %211 = vmatpush1.bf16.msra.mxu0 %v193
  %212 = vmatprep.subr.bf16.mxu0 0
  %213 = vmatpush1.bf16.msra.mxu0 %v194
  %214 = vmatprep.subr.bf16.mxu0 0
  %215 = vmatpush1.bf16.msra.mxu0 %v195
  %216 = vmatprep.subr.bf16.mxu0 0
  %217 = vmatpush1.bf16.msra.mxu0 %v196
  %218 = vmatprep.subr.bf16.mxu0 0
  %219 = vmatpush1.bf16.msra.mxu0 %v197
  %220 = vmatprep.subr.bf16.mxu0 0
  %221 = vmatpush1.bf16.msra.mxu0 %v198
  %222 = vmatprep.subr.bf16.mxu0 0
  %223 = vmatpush1.bf16.msra.mxu0 %v199
  %224 = vmatprep.subr.bf16.mxu0 0
  %225 = vmatpush1.bf16.msra.mxu0 0
  %226 = vmatprep.subr.bf16.mxu0 0
  %227 = vmatpush1.bf16.msra.mxu0 0
  %228 = vmatprep.subr.bf16.mxu0 0
  %229 = vmatpush1.bf16.msra.mxu0 0
  %230 = vmatprep.subr.bf16.mxu0 0
  %231 = vmatpush1.bf16.msra.mxu0 0
  %232 = vmatprep.subr.bf16.mxu0 0
  %233 = vmatpush1.bf16.msra.mxu0 0
  %234 = vmatprep.subr.bf16.mxu0 0
  %235 = vmatpush1.bf16.msra.mxu0 0
  %236 = vmatprep.subr.bf16.mxu0 0
  %237 = vmatpush1.bf16.msra.mxu0 0
  %238 = vmatprep.subr.bf16.mxu0 0
  %239 = vmatpush1.bf16.msra.mxu0 0
  %240 = vmatprep.mubr.bf16.mxu0 0
  %241 = vmatmul.mubr.bf16.gmra.mrb[0].mxu0 %v136
  %v242 = vpop.f32.mrb[0].mxu0
  %v243 = vadd.f32 %v158, %v242
  %v244 = vpop.f32.mrb[0].mxu0
  %v245 = vpop.f32.mrb[0].mxu0
  %v246 = vpop.f32.mrb[0].mxu0
  %247 = vdwg.mxu0
  %vm248 = vcmask 3072
  %249 = vst.msk [vmem:[%s5] sm:$0xf] %vm248, %v243
  // Predicated region
  $region22: #{_lambda_.19} parent=0 // pred_check
    _
  $region23: #{_lambda_.19} parent=0 // pred_check_branch
    %251 = sbr.rel (0) target = $region25
  $region24: #{_lambda_.19} parent=0 // pred_region
    _
  $region25: #{_lambda_.19} parent=0 // pred_fallthru
    _
  // Predicated region
  $region26: #{_lambda_.19} parent=0 // pred_check
    _
  $region27: #{_lambda_.19} parent=0 // pred_check_branch
    %253 = sbr.rel (0) target = $region29
  $region28: #{_lambda_.19} parent=0 // pred_region
    _
  $region29: #{_lambda_.19} parent=0 // pred_fallthru
    _

// kernel: _lambda_.14
$region0: #{_lambda_.14}
  #allocation0 [shape = 'u32[]', space=smem, size = 0x4, offset = 0x4, fixed_abs, tag = 'smem constant byte address 0x4 - core index']
  #allocation1 [shape = 'u32[144,128]{1,0:T(1,128)}', space=vmem, size = 0x12000, scoped, tag = 'internal scratch']
  #allocation2 [shape = 'f32[32,128]{1,0:T(8,128)}', space=vmem, size = 0x4000, scoped, tag = 'scratch operand']
  %s0 = inlined_call_operand.vmem [shape: bf16[32,128], index: 0, kind: input, shape index: {}, may-alias: {0,5}]
  %s1 = inlined_call_operand.vmem [shape: bf16[128,256], index: 1, kind: input, shape index: {}]
  %s2 = inlined_call_operand.vmem [shape: f32[1,256], index: 2, kind: input, shape index: {}]
  %s3 = inlined_call_operand.vmem [shape: bf16[256,128], index: 3, kind: input, shape index: {}]
  %s4 = inlined_call_operand.vmem [shape: f32[1,128], index: 4, kind: input, shape index: {}]
  %s5 = inlined_call_operand.vmem [shape: bf16[32,128], index: 5, kind: input, shape index: {}, may-alias: {0,5}]
  %s6 = inlined_call_operand.vmem [shape: f32[1,128], index: 6, kind: input, shape index: {}]
  %s7 = inlined_call_operand.vmem [shape: f32[1,128], index: 7, kind: input, shape index: {}]
  %s8 = inlined_call_operand.vmem [shape: bf16[32,128], index: 8, kind: output, shape index: {}]
  %s9 = sld [smem:[#allocation0]]
  $region50: #{_lambda_.14} parent=0
    _
  %s11 = ssub.s32 1, %s9
  %s12 = scalar_select 0, %s11, %s9
  // Predicated region
  $region2: #{_lambda_.14} parent=0 // pred_check
    _
  $region3: #{_lambda_.14} parent=0 // pred_check_branch
    %14 = sbr.rel (0) target = $region5
  $region4: #{_lambda_.14} parent=0 // pred_region
    _
  $region5: #{_lambda_.14} parent=0 // pred_fallthru
    _
  // Predicated region
  $region6: #{_lambda_.14} parent=0 // pred_check
    _
  $region7: #{_lambda_.14} parent=0 // pred_check_branch
    %16 = sbr.rel (0) target = $region9
  $region8: #{_lambda_.14} parent=0 // pred_region
    _
  $region9: #{_lambda_.14} parent=0 // pred_fallthru
    _
  // Predicated region
  $region10: #{_lambda_.14} parent=0 // pred_check
    _
  $region11: #{_lambda_.14} parent=0 // pred_check_branch
    %18 = sbr.rel (0) target = $region13
  $region12: #{_lambda_.14} parent=0 // pred_region
    _
  $region13: #{_lambda_.14} parent=0 // pred_fallthru
    _
  // Predicated region
  $region14: #{_lambda_.14} parent=0 // pred_check
    _
  $region15: #{_lambda_.14} parent=0 // pred_check_branch
    %20 = sbr.rel (0) target = $region17
  $region16: #{_lambda_.14} parent=0 // pred_region
    _
  $region17: #{_lambda_.14} parent=0 // pred_fallthru
    _
  // Predicated region
  $region18: #{_lambda_.14} parent=0 // pred_check
    _
  $region19: #{_lambda_.14} parent=0 // pred_check_branch
    %22 = sbr.rel (0) target = $region21
  $region20: #{_lambda_.14} parent=0 // pred_region
    _
  $region21: #{_lambda_.14} parent=0 // pred_fallthru
    _
  // Predicated region
  $region22: #{_lambda_.14} parent=0 // pred_check
    _
  $region23: #{_lambda_.14} parent=0 // pred_check_branch
    %24 = sbr.rel (0) target = $region25
  $region24: #{_lambda_.14} parent=0 // pred_region
    _
  $region25: #{_lambda_.14} parent=0 // pred_fallthru
    _
  // Predicated region
  $region26: #{_lambda_.14} parent=0 // pred_check
    _
  $region27: #{_lambda_.14} parent=0 // pred_check_branch
    %26 = sbr.rel (0) target = $region29
  $region28: #{_lambda_.14} parent=0 // pred_region
    _
  $region29: #{_lambda_.14} parent=0 // pred_fallthru
    _
  // Predicated region
  $region30: #{_lambda_.14} parent=0 // pred_check
    _
  $region31: #{_lambda_.14} parent=0 // pred_check_branch
    %28 = sbr.rel (0) target = $region33
  $region32: #{_lambda_.14} parent=0 // pred_region
    _
  $region33: #{_lambda_.14} parent=0 // pred_fallthru
    _
  %p30 = scmp.eq.s32.totalorder 0, 0
  // Predicated region
  $region34: #{_lambda_.14} parent=0 // pred_check
    %p31 = pneg %p30
  $region35: #{_lambda_.14} parent=0 // pred_check_branch
    %33 = sbr.rel (%p31) target = $region37
  $region36: #{_lambda_.14} parent=0 // pred_region
    %34 = vst [vmem:[#allocation2] sm:$0xff] 0.0
    %35 = vst [vmem:[#allocation2 + $0x8] sm:$0xff] 0.0
    %36 = vst [vmem:[#allocation2 + $0x10] sm:$0xff] 0.0
    %37 = vst [vmem:[#allocation2 + $0x18] sm:$0xff] 0.0
  $region37: #{_lambda_.14} parent=0 // pred_fallthru
    _
  %v38 = vld [vmem:[%s0] sm:$0xf]
  %v39 = vld [vmem:[%s0 + $0x4] sm:$0xf]
  %v40 = vld [vmem:[%s0 + $0x8] sm:$0xf]
  %v41 = vld [vmem:[%s0 + $0xc] sm:$0xf]
  %v42 = vld [vmem:[%s1] sm:$0xff]
  %v43 = vld [vmem:[%s1 + $0x8] sm:$0xff]
  %v44 = vld [vmem:[%s1 + $0x10] sm:$0xff]
  %v45 = vld [vmem:[%s1 + $0x18] sm:$0xff]
  %v46 = vld [vmem:[%s1 + $0x20] sm:$0xff]
  %v47 = vld [vmem:[%s1 + $0x28] sm:$0xff]
  %v48 = vld [vmem:[%s1 + $0x30] sm:$0xff]
  %v49 = vld [vmem:[%s1 + $0x38] sm:$0xff]
  %v50 = vld [vmem:[%s1 + $0x40] sm:$0xff]
  %v51 = vld [vmem:[%s1 + $0x48] sm:$0xff]
  %v52 = vld [vmem:[%s1 + $0x50] sm:$0xff]
  %v53 = vld [vmem:[%s1 + $0x58] sm:$0xff]
  %v54 = vld [vmem:[%s1 + $0x60] sm:$0xff]
  %v55 = vld [vmem:[%s1 + $0x68] sm:$0xff]
  %v56 = vld [vmem:[%s1 + $0x70] sm:$0xff]
  %v57 = vld [vmem:[%s1 + $0x78] sm:$0xff]
  %v58 = vld [vmem:[%s2] sm:$0x3]
  %v60 = vlaneseq
  %v61 = vshrl.u32 %v60, 7
  %v62 = vsub.s32 0, %v61
  %v63 = vrot.slane %v58, %v62
  %v64 = vlaneseq
  %v65 = vshrl.u32 %v64, 7
  %v66 = vsub.s32 1, %v65
  %v67 = vrot.slane %v58, %v66
  %v74 = vunpack.c.l.b16 %v38
  %v75 = vunpack.c.l.b16 %v39
  %v76 = vunpack.c.l.b16 %v40
  %v77 = vunpack.c.l.b16 %v41
  %v78 = vpack.c.b16 %v75, %v74
  %v79 = vpack.c.b16 %v77, %v76
  %v98 = vunpack.c.l.b16 %v42
  %v99 = vunpack.c.h.b16 %v42
  %v100 = vunpack.c.l.b16 %v43
  %v101 = vunpack.c.h.b16 %v43
  %v102 = vunpack.c.l.b16 %v44
  %v103 = vunpack.c.h.b16 %v44
  %v104 = vunpack.c.l.b16 %v45
  %v105 = vunpack.c.h.b16 %v45
  %v106 = vunpack.c.l.b16 %v46
  %v107 = vunpack.c.h.b16 %v46
  %v108 = vunpack.c.l.b16 %v47
  %v109 = vunpack.c.h.b16 %v47
  %v110 = vunpack.c.l.b16 %v48
  %v111 = vunpack.c.h.b16 %v48
  %v112 = vunpack.c.l.b16 %v49
  %v113 = vunpack.c.h.b16 %v49
  %v114 = vunpack.c.l.b16 %v50
  %v115 = vunpack.c.h.b16 %v50
  %v116 = vunpack.c.l.b16 %v51
  %v117 = vunpack.c.h.b16 %v51
  %v118 = vunpack.c.l.b16 %v52
  %v119 = vunpack.c.h.b16 %v52
  %v120 = vunpack.c.l.b16 %v53
  %v121 = vunpack.c.h.b16 %v53
  %v122 = vunpack.c.l.b16 %v54
  %v123 = vunpack.c.h.b16 %v54
  %v124 = vunpack.c.l.b16 %v55
  %v125 = vunpack.c.h.b16 %v55
  %v126 = vunpack.c.l.b16 %v56
  %v127 = vunpack.c.h.b16 %v56
  %v128 = vunpack.c.l.b16 %v57
  %v129 = vunpack.c.h.b16 %v57
  %v130 = vpack.c.b16 %v100, %v98
  %v131 = vpack.c.b16 %v101, %v99
  %v132 = vpack.c.b16 %v104, %v102
  %v133 = vpack.c.b16 %v105, %v103
  %v134 = vpack.c.b16 %v108, %v106
  %v135 = vpack.c.b16 %v109, %v107
  %v136 = vpack.c.b16 %v112, %v110
  %v137 = vpack.c.b16 %v113, %v111
  %v138 = vpack.c.b16 %v116, %v114
  %v139 = vpack.c.b16 %v117, %v115
  %v140 = vpack.c.b16 %v120, %v118
  %v141 = vpack.c.b16 %v121, %v119
  %v142 = vpack.c.b16 %v124, %v122
  %v143 = vpack.c.b16 %v125, %v123
  %v144 = vpack.c.b16 %v128, %v126
  %v145 = vpack.c.b16 %v129, %v127
  %162 = vmatprep.subr.bf16.mxu0 %v131
  %163 = vmatpush1.bf16.msra.mxu0 %v130
  %164 = vmatprep.subr.bf16.mxu0 %v133
  %165 = vmatpush1.bf16.msra.mxu0 %v132
  %166 = vmatprep.subr.bf16.mxu0 %v135
  %167 = vmatpush1.bf16.msra.mxu0 %v134
  %168 = vmatprep.subr.bf16.mxu0 %v137
  %169 = vmatpush1.bf16.msra.mxu0 %v136
  %170 = vmatprep.subr.bf16.mxu0 %v139
  %171 = vmatpush1.bf16.msra.mxu0 %v138
  %172 = vmatprep.subr.bf16.mxu0 %v141
  %173 = vmatpush1.bf16.msra.mxu0 %v140
  %174 = vmatprep.subr.bf16.mxu0 %v143
  %175 = vmatpush1.bf16.msra.mxu0 %v142
  %176 = vmatprep.subr.bf16.mxu0 %v145
  %177 = vmatpush1.bf16.msra.mxu0 %v144
  %178 = vmatprep.subr.bf16.mxu0 0
  %179 = vmatpush1.bf16.msra.mxu0 0
  %180 = vmatprep.subr.bf16.mxu0 0
  %181 = vmatpush1.bf16.msra.mxu0 0
  %182 = vmatprep.subr.bf16.mxu0 0
  %183 = vmatpush1.bf16.msra.mxu0 0
  %184 = vmatprep.subr.bf16.mxu0 0
  %185 = vmatpush1.bf16.msra.mxu0 0
  %186 = vmatprep.subr.bf16.mxu0 0
  %187 = vmatpush1.bf16.msra.mxu0 0
  %188 = vmatprep.subr.bf16.mxu0 0
  %189 = vmatpush1.bf16.msra.mxu0 0
  %190 = vmatprep.subr.bf16.mxu0 0
  %191 = vmatpush1.bf16.msra.mxu0 0
  %192 = vmatprep.subr.bf16.mxu0 0
  %193 = vmatpush1.bf16.msra.mxu0 0
  %194 = vmatprep.mubr.bf16.mxu0 0
  %195 = vmatmul.mubr.bf16.gmra.mrb[0].mxu0 %v78
  %v196 = vpop.f32.mrb[0].mxu0
  %v197 = vadd.f32 %v63, %v196
  %v198 = vpop.f32.mrb[0].mxu0
  %v199 = vadd.f32 %v67, %v198
  %v200 = vpop.f32.mrb[0].mxu0
  %v201 = vadd.f32 %v63, %v200
  %v202 = vpop.f32.mrb[0].mxu0
  %v203 = vadd.f32 %v67, %v202
  %204 = vmatprep.mubr.bf16.mxu0 0
  %205 = vmatmul.mubr.bf16.gmra.mrb[0].mxu0 %v79
  %v206 = vpop.f32.mrb[0].mxu0
  %v207 = vadd.f32 %v63, %v206
  %v208 = vpop.f32.mrb[0].mxu0
  %v209 = vadd.f32 %v67, %v208
  %v210 = vpop.f32.mrb[0].mxu0
  %v211 = vadd.f32 %v63, %v210
  %v212 = vpop.f32.mrb[0].mxu0
  %v213 = vadd.f32 %v67, %v212
  %214 = vdwg.mxu0
  %v215 = vmul.f32 %v197, 0.5
  %v216 = vmul.f32 %v199, 0.5
  %v217 = vmul.f32 %v201, 0.5
  %v218 = vmul.f32 %v203, 0.5
  %v219 = vmul.f32 %v207, 0.5
  %v220 = vmul.f32 %v209, 0.5
  %v221 = vmul.f32 %v211, 0.5
  %v222 = vmul.f32 %v213, 0.5
  %v223 = vmul.f32 %v197, 0.044715
  %v224 = vmul.f32 %v199, 0.044715
  %v225 = vmul.f32 %v201, 0.044715
  %v226 = vmul.f32 %v203, 0.044715
  %v227 = vmul.f32 %v207, 0.044715
  %v228 = vmul.f32 %v209, 0.044715
  %v229 = vmul.f32 %v211, 0.044715
  %v230 = vmul.f32 %v213, 0.044715
  %v231 = vmul.f32 %v223, %v197
  %v232 = vmul.f32 %v224, %v199
  %v233 = vmul.f32 %v225, %v201
  %v234 = vmul.f32 %v226, %v203
  %v235 = vmul.f32 %v227, %v207
  %v236 = vmul.f32 %v228, %v209
  %v237 = vmul.f32 %v229, %v211
  %v238 = vmul.f32 %v230, %v213
  %v239 = vmul.f32 %v231, %v197
  %v240 = vmul.f32 %v232, %v199
  %v241 = vmul.f32 %v233, %v201
  %v242 = vmul.f32 %v234, %v203
  %v243 = vmul.f32 %v235, %v207
  %v244 = vmul.f32 %v236, %v209
  %v245 = vmul.f32 %v237, %v211
  %v246 = vmul.f32 %v238, %v213
  %v247 = vadd.f32 %v197, %v239
  %v248 = vadd.f32 %v199, %v240
  %v249 = vadd.f32 %v201, %v241
  %v250 = vadd.f32 %v203, %v242
  %v251 = vadd.f32 %v207, %v243
  %v252 = vadd.f32 %v209, %v244
  %v253 = vadd.f32 %v211, %v245
  %v254 = vadd.f32 %v213, %v246
  %v255 = vmul.f32 %v247, 0.7978846
  %v256 = vmul.f32 %v248, 0.7978846
  %v257 = vmul.f32 %v249, 0.7978846
  %v258 = vmul.f32 %v250, 0.7978846
  %v259 = vmul.f32 %v251, 0.7978846
  %v260 = vmul.f32 %v252, 0.7978846
  %v261 = vmul.f32 %v253, 0.7978846
  %v262 = vmul.f32 %v254, 0.7978846
  %v263 = vtanh.pop %v255
  %v264 = vtanh.pop %v256
  %v265 = vtanh.pop %v257
  %v266 = vtanh.pop %v258
  %v267 = vtanh.pop %v259
  %v268 = vtanh.pop %v260
  %v269 = vtanh.pop %v261
  %v270 = vtanh.pop %v262
  %v271 = vadd.f32 %v263, 1.0
  %v272 = vadd.f32 %v264, 1.0
  %v273 = vadd.f32 %v265, 1.0
  %v274 = vadd.f32 %v266, 1.0
  %v275 = vadd.f32 %v267, 1.0
  %v276 = vadd.f32 %v268, 1.0
  %v277 = vadd.f32 %v269, 1.0
  %v278 = vadd.f32 %v270, 1.0
  %v279 = vmul.f32 %v215, %v271
  %v280 = vmul.f32 %v216, %v272
  %v281 = vmul.f32 %v217, %v273
  %v282 = vmul.f32 %v218, %v274
  %v283 = vmul.f32 %v219, %v275
  %v284 = vmul.f32 %v220, %v276
  %v285 = vmul.f32 %v221, %v277
  %v286 = vmul.f32 %v222, %v278
  %v287 = vld [vmem:[#allocation2] sm:$0xff]
  %v288 = vld [vmem:[#allocation2 + $0x8] sm:$0xff]
  %v289 = vld [vmem:[#allocation2 + $0x10] sm:$0xff]
  %v290 = vld [vmem:[#allocation2 + $0x18] sm:$0xff]
  %v291 = vpack.c.bf16 %v281, %v279
  %v292 = vpack.c.bf16 %v282, %v280
  %v293 = vpack.c.bf16 %v285, %v283
  %v294 = vpack.c.bf16 %v286, %v284
  %v295 = vld [vmem:[%s3] sm:$0xf]
  %v296 = vld [vmem:[%s3 + $0x4] sm:$0xf]
  %v297 = vld [vmem:[%s3 + $0x8] sm:$0xf]
  %v298 = vld [vmem:[%s3 + $0xc] sm:$0xf]
  %v299 = vld [vmem:[%s3 + $0x10] sm:$0xf]
  %v300 = vld [vmem:[%s3 + $0x14] sm:$0xf]
  %v301 = vld [vmem:[%s3 + $0x18] sm:$0xf]
  %v302 = vld [vmem:[%s3 + $0x1c] sm:$0xf]
  %v303 = vld [vmem:[%s3 + $0x20] sm:$0xf]
  %v304 = vld [vmem:[%s3 + $0x24] sm:$0xf]
  %v305 = vld [vmem:[%s3 + $0x28] sm:$0xf]
  %v306 = vld [vmem:[%s3 + $0x2c] sm:$0xf]
  %v307 = vld [vmem:[%s3 + $0x30] sm:$0xf]
  %v308 = vld [vmem:[%s3 + $0x34] sm:$0xf]
  %v309 = vld [vmem:[%s3 + $0x38] sm:$0xf]
  %v310 = vld [vmem:[%s3 + $0x3c] sm:$0xf]
  %v311 = vld [vmem:[%s3 + $0x40] sm:$0xf]
  %v312 = vld [vmem:[%s3 + $0x44] sm:$0xf]
  %v313 = vld [vmem:[%s3 + $0x48] sm:$0xf]
  %v314 = vld [vmem:[%s3 + $0x4c] sm:$0xf]
  %v315 = vld [vmem:[%s3 + $0x50] sm:$0xf]
  %v316 = vld [vmem:[%s3 + $0x54] sm:$0xf]
  %v317 = vld [vmem:[%s3 + $0x58] sm:$0xf]
  %v318 = vld [vmem:[%s3 + $0x5c] sm:$0xf]
  %v319 = vld [vmem:[%s3 + $0x60] sm:$0xf]
  %v320 = vld [vmem:[%s3 + $0x64] sm:$0xf]
  %v321 = vld [vmem:[%s3 + $0x68] sm:$0xf]
  %v322 = vld [vmem:[%s3 + $0x6c] sm:$0xf]
  %v323 = vld [vmem:[%s3 + $0x70] sm:$0xf]
  %v324 = vld [vmem:[%s3 + $0x74] sm:$0xf]
  %v325 = vld [vmem:[%s3 + $0x78] sm:$0xf]
  %v326 = vld [vmem:[%s3 + $0x7c] sm:$0xf]
  %v359 = vunpack.c.l.b16 %v295
  %v360 = vunpack.c.l.b16 %v296
  %v361 = vunpack.c.l.b16 %v297
  %v362 = vunpack.c.l.b16 %v298
  %v363 = vunpack.c.l.b16 %v299
  %v364 = vunpack.c.l.b16 %v300
  %v365 = vunpack.c.l.b16 %v301
  %v366 = vunpack.c.l.b16 %v302
  %v367 = vunpack.c.l.b16 %v303
  %v368 = vunpack.c.l.b16 %v304
  %v369 = vunpack.c.l.b16 %v305
  %v370 = vunpack.c.l.b16 %v306
  %v371 = vunpack.c.l.b16 %v307
  %v372 = vunpack.c.l.b16 %v308
  %v373 = vunpack.c.l.b16 %v309
  %v374 = vunpack.c.l.b16 %v310
  %v375 = vunpack.c.l.b16 %v311
  %v376 = vunpack.c.l.b16 %v312
  %v377 = vunpack.c.l.b16 %v313
  %v378 = vunpack.c.l.b16 %v314
  %v379 = vunpack.c.l.b16 %v315
  %v380 = vunpack.c.l.b16 %v316
  %v381 = vunpack.c.l.b16 %v317
  %v382 = vunpack.c.l.b16 %v318
  %v383 = vunpack.c.l.b16 %v319
  %v384 = vunpack.c.l.b16 %v320
  %v385 = vunpack.c.l.b16 %v321
  %v386 = vunpack.c.l.b16 %v322
  %v387 = vunpack.c.l.b16 %v323
  %v388 = vunpack.c.l.b16 %v324
  %v389 = vunpack.c.l.b16 %v325
  %v390 = vunpack.c.l.b16 %v326
  %v391 = vpack.c.b16 %v360, %v359
  %v392 = vpack.c.b16 %v362, %v361
  %v393 = vpack.c.b16 %v364, %v363
  %v394 = vpack.c.b16 %v366, %v365
  %v395 = vpack.c.b16 %v368, %v367
  %v396 = vpack.c.b16 %v370, %v369
  %v397 = vpack.c.b16 %v372, %v371
  %v398 = vpack.c.b16 %v374, %v373
  %v399 = vpack.c.b16 %v376, %v375
  %v400 = vpack.c.b16 %v378, %v377
  %v401 = vpack.c.b16 %v380, %v379
  %v402 = vpack.c.b16 %v382, %v381
  %v403 = vpack.c.b16 %v384, %v383
  %v404 = vpack.c.b16 %v386, %v385
  %v405 = vpack.c.b16 %v388, %v387
  %v406 = vpack.c.b16 %v390, %v389
  %423 = vmatprep.subr.bf16.mxu0 0
  %424 = vmatpush1.bf16.msra.mxu0 %v391
  %425 = vmatprep.subr.bf16.mxu0 0
  %426 = vmatpush1.bf16.msra.mxu0 %v392
  %427 = vmatprep.subr.bf16.mxu0 0
  %428 = vmatpush1.bf16.msra.mxu0 %v393
  %429 = vmatprep.subr.bf16.mxu0 0
  %430 = vmatpush1.bf16.msra.mxu0 %v394
  %431 = vmatprep.subr.bf16.mxu0 0
  %432 = vmatpush1.bf16.msra.mxu0 %v395
  %433 = vmatprep.subr.bf16.mxu0 0
  %434 = vmatpush1.bf16.msra.mxu0 %v396
  %435 = vmatprep.subr.bf16.mxu0 0
  %436 = vmatpush1.bf16.msra.mxu0 %v397
  %437 = vmatprep.subr.bf16.mxu0 0
  %438 = vmatpush1.bf16.msra.mxu0 %v398
  %439 = vmatprep.subr.bf16.mxu0 0
  %440 = vmatpush1.bf16.msra.mxu0 %v399
  %441 = vmatprep.subr.bf16.mxu0 0
  %442 = vmatpush1.bf16.msra.mxu0 %v400
  %443 = vmatprep.subr.bf16.mxu0 0
  %444 = vmatpush1.bf16.msra.mxu0 %v401
  %445 = vmatprep.subr.bf16.mxu0 0
  %446 = vmatpush1.bf16.msra.mxu0 %v402
  %447 = vmatprep.subr.bf16.mxu0 0
  %448 = vmatpush1.bf16.msra.mxu0 %v403
  %449 = vmatprep.subr.bf16.mxu0 0
  %450 = vmatpush1.bf16.msra.mxu0 %v404
  %451 = vmatprep.subr.bf16.mxu0 0
  %452 = vmatpush1.bf16.msra.mxu0 %v405
  %453 = vmatprep.subr.bf16.mxu0 0
  %454 = vmatpush1.bf16.msra.mxu0 %v406
  %455 = vmatprep.mubr.bf16.mxu0 %v292
  %456 = vmatmul.mubr.bf16.gmra.mrb[0].mxu0 %v291
  %v457 = vpop.f32.mrb[0].mxu0
  %v458 = vadd.f32 0.0, %v457
  %v459 = vpop.f32.mrb[0].mxu0
  %v460 = vpop.f32.mrb[0].mxu0
  %v461 = vadd.f32 0.0, %v460
  %v462 = vpop.f32.mrb[0].mxu0
  %463 = vmatprep.mubr.bf16.mxu0 %v294
  %464 = vmatmul.mubr.bf16.gmra.mrb[0].mxu0 %v293
  %v465 = vpop.f32.mrb[0].mxu0
  %v466 = vadd.f32 0.0, %v465
  %v467 = vpop.f32.mrb[0].mxu0
  %v468 = vpop.f32.mrb[0].mxu0
  %v469 = vadd.f32 0.0, %v468
  %v470 = vpop.f32.mrb[0].mxu0
  %471 = vdwg.mxu0
  %v472 = vadd.f32 %v287, %v458
  %v473 = vadd.f32 %v288, %v461
  %v474 = vadd.f32 %v289, %v466
  %v475 = vadd.f32 %v290, %v469
  %476 = vst [vmem:[#allocation2] sm:$0xff] %v472
  %477 = vst [vmem:[#allocation2 + $0x8] sm:$0xff] %v473
  %478 = vst [vmem:[#allocation2 + $0x10] sm:$0xff] %v474
  %479 = vst [vmem:[#allocation2 + $0x18] sm:$0xff] %v475
  // Predicated region
  $region38: #{_lambda_.14} parent=0 // pred_check
    %p480 = pneg %p30
  $region39: #{_lambda_.14} parent=0 // pred_check_branch
    %482 = sbr.rel (%p480) target = $region41
  $region40: #{_lambda_.14} parent=0 // pred_region
    %v483 = vld [vmem:[#allocation2] sm:$0xff]
    %v484 = vld [vmem:[#allocation2 + $0x8] sm:$0xff]
    %v485 = vld [vmem:[#allocation2 + $0x10] sm:$0xff]
    %v486 = vld [vmem:[#allocation2 + $0x18] sm:$0xff]
    %v487 = vld [vmem:[%s4] sm:$0x1]
    %v489 = vlaneseq
    %v490 = vshrl.u32 %v489, 7
    %v491 = vsub.s32 0, %v490
    %v492 = vrot.slane %v487, %v491
    %v494 = vadd.f32 %v483, %v492
    %v495 = vadd.f32 %v484, %v492
    %v496 = vadd.f32 %v485, %v492
    %v497 = vadd.f32 %v486, %v492
    %v498 = vld [vmem:[%s5] sm:$0xf]
    %v499 = vld [vmem:[%s5 + $0x4] sm:$0xf]
    %v500 = vld [vmem:[%s5 + $0x8] sm:$0xf]
    %v501 = vld [vmem:[%s5 + $0xc] sm:$0xf]
    %v502 = vunpack.c.l.bf16 %v498
    %v503 = vunpack.c.l.bf16 %v499
    %v504 = vunpack.c.l.bf16 %v500
    %v505 = vunpack.c.l.bf16 %v501
    %v506 = vadd.f32 %v494, %v502
    %v507 = vadd.f32 %v495, %v503
    %v508 = vadd.f32 %v496, %v504
    %v509 = vadd.f32 %v497, %v505
    %510 = vadd.xlane.f32.xlu0 %v506
    %v511 = vpop.xlane.xlu0 %510
    %512 = vadd.xlane.f32.xlu0 %v507
    %v513 = vpop.xlane.xlu0 %512
    %514 = vadd.xlane.f32.xlu0 %v508
    %v515 = vpop.xlane.xlu0 %514
    %516 = vadd.xlane.f32.xlu0 %v509
    %v517 = vpop.xlane.xlu0 %516
    %v518 = vrcp.pop 128.0
    %v519 = vmul.f32 %v511, %v518
    %v520 = vmul.f32 %v513, %v518
    %v521 = vmul.f32 %v515, %v518
    %v522 = vmul.f32 %v517, %v518
    %v523 = vsub.f32 %v506, %v519
    %v524 = vsub.f32 %v507, %v520
    %v525 = vsub.f32 %v508, %v521
    %v526 = vsub.f32 %v509, %v522
    %v527 = vmul.f32 %v523, %v523
    %v528 = vmul.f32 %v524, %v524
    %v529 = vmul.f32 %v525, %v525
    %v530 = vmul.f32 %v526, %v526
    %531 = vadd.xlane.f32.xlu0 %v527
    %v532 = vpop.xlane.xlu0 %531
    %533 = vadd.xlane.f32.xlu0 %v528
    %v534 = vpop.xlane.xlu0 %533
    %535 = vadd.xlane.f32.xlu0 %v529
    %v536 = vpop.xlane.xlu0 %535
    %537 = vadd.xlane.f32.xlu0 %v530
    %v538 = vpop.xlane.xlu0 %537
    %v539 = vmul.f32 %v532, %v518
    %v540 = vmul.f32 %v534, %v518
    %v541 = vmul.f32 %v536, %v518
    %v542 = vmul.f32 %v538, %v518
    %v543 = vadd.f32 %v539, 1e-12
    %v544 = vadd.f32 %v540, 1e-12
    %v545 = vadd.f32 %v541, 1e-12
    %v546 = vadd.f32 %v542, 1e-12
    %v547 = vrsqrt.pop %v543
    %v548 = vrsqrt.pop %v544
    %v549 = vrsqrt.pop %v545
    %v550 = vrsqrt.pop %v546
    %v551 = vmul.f32 %v523, %v547
    %v552 = vmul.f32 %v524, %v548
    %v553 = vmul.f32 %v525, %v549
    %v554 = vmul.f32 %v526, %v550
    %v555 = vld [vmem:[%s6] sm:$0x1]
    %v557 = vlaneseq
    %v558 = vshrl.u32 %v557, 7
    %v559 = vsub.s32 0, %v558
    %v560 = vrot.slane %v555, %v559
    %v562 = vmul.f32 %v551, %v560
    %v563 = vmul.f32 %v552, %v560
    %v564 = vmul.f32 %v553, %v560
    %v565 = vmul.f32 %v554, %v560
    %v566 = vld [vmem:[%s7] sm:$0x1]
    %v568 = vlaneseq
    %v569 = vshrl.u32 %v568, 7
    %v570 = vsub.s32 0, %v569
    %v571 = vrot.slane %v566, %v570
    %v573 = vadd.f32 %v562, %v571
    %v574 = vadd.f32 %v563, %v571
    %v575 = vadd.f32 %v564, %v571
    %v576 = vadd.f32 %v565, %v571
    %v577 = vpack.c.bf16 %v574, %v573
    %v578 = vpack.c.bf16 %v576, %v575
    %v581 = vunpack.c.l.b16 %v577
    %v582 = vunpack.c.h.b16 %v577
    %v583 = vunpack.c.l.b16 %v578
    %v584 = vunpack.c.h.b16 %v578
    %v585 = vpack.c.b16 %v581, %v581
    %v586 = vpack.c.b16 %v582, %v582
    %v587 = vpack.c.b16 %v583, %v583
    %v588 = vpack.c.b16 %v584, %v584
    %593 = vst [vmem:[%s8] sm:$0xf] %v585
    %594 = vst [vmem:[%s8 + $0x4] sm:$0xf] %v586
    %595 = vst [vmem:[%s8 + $0x8] sm:$0xf] %v587
    %596 = vst [vmem:[%s8 + $0xc] sm:$0xf] %v588
  $region41: #{_lambda_.14} parent=0 // pred_fallthru
    _
  // Predicated region
  $region42: #{_lambda_.14} parent=0 // pred_check
    _
  $region43: #{_lambda_.14} parent=0 // pred_check_branch
    %598 = sbr.rel (0) target = $region45
  $region44: #{_lambda_.14} parent=0 // pred_region
    _
  $region45: #{_lambda_.14} parent=0 // pred_fallthru
    _
  // Predicated region
  $region46: #{_lambda_.14} parent=0 // pred_check
    _
  $region47: #{_lambda_.14} parent=0 // pred_check_branch
    %600 = sbr.rel (0) target = $region49
  $region48: #{_lambda_.14} parent=0 // pred_region
    _
  $region49: #{_lambda_.14} parent=0 // pred_fallthru
    _

</llo_original>
